<compile_context>
chip_gen: v7x
topology: tpu7x:2x2x1
jax: 0.10.0
libtpu: 0.0.40
codegen_flags: <defaults>
</compile_context>

<pallas_src>
import jax
import jax.numpy as jnp
from jax.experimental import pallas as pl
from jax.experimental.pallas import tpu as pltpu


_TB_MAX = 32   # batch tile: M = 14*TB >= 256 on v6e/v7x MXU; multiple of 8


def _round_up(a, b):
    return (a + b - 1) // b * b


# ------------------------------ fused kernel ------------------------------- #

def _conv_encoder_kernel(x_ref,      # (H*TB, W*Cin)       batch-minor input slab
                         b1w_ref,    # (3, W*Cin, W1*C1)   banded conv1 weights
                         b1b_ref,    # (1, W1*C1)          tiled conv1 bias
                         b2w_ref,    # (3, W1*C1, W2*C2)   banded conv2 weights
                         b2b_ref,    # (1, W2*C2)          tiled conv2 bias
                         w1c_ref,    # (H2, W2*C2, 128)    fc1 weight, per-row chunks
                         fb1_ref,    # (1, 128)
                         w2_ref,     # (128, out_dim)
                         fb2_ref,    # (1, out_dim)
                         o_ref,      # (TB, out_dim)       output block
                         c1_ref,     # scratch (H1*TB, W1*C1)
                         c2_ref):    # scratch (H2*TB, W2*C2)
    tb = o_ref.shape[0]             # batch tile
    h1tb = c1_ref.shape[0]          # (H - 2) * TB
    h2tb = c2_ref.shape[0]          # (H - 4) * TB
    kh = b1w_ref.shape[0]           # 3
    h2 = w1c_ref.shape[0]           # H - 4

    # conv1 + bias + ReLU: VALID 3x3 as banded matmuls, M = (H-2)*TB.
    # Row r = ho*TB + n of the output only reads input row r + i*TB (same
    # sample n, height ho+i), so batch interleaving never mixes samples.
    acc1 = jnp.dot(x_ref[0:h1tb, :], b1w_ref[0],
                   preferred_element_type=jnp.float32)
    for i in range(1, kh):
        acc1 += jnp.dot(x_ref[i * tb:i * tb + h1tb, :], b1w_ref[i],
                        preferred_element_type=jnp.float32)
    c1_ref[...] = jnp.maximum(acc1 + b1b_ref[...], 0.0)

    # conv2 + bias + ReLU, M = (H-4)*TB.
    acc2 = jnp.dot(c1_ref[0:h2tb, :], b2w_ref[0],
                   preferred_element_type=jnp.float32)
    for i in range(1, kh):
        acc2 += jnp.dot(c1_ref[i * tb:i * tb + h2tb, :], b2w_ref[i],
                        preferred_element_type=jnp.float32)
    c2_ref[...] = jnp.maximum(acc2 + b2b_ref[...], 0.0)

    # fc1 + ReLU: contract the conv2 slab against per-height weight chunks,
    # (TB, W2*C2) @ (W2*C2, 128) per chunk; reproduces torch's NCHW flatten
    # order with no in-kernel reshape/transpose.
    f1 = jnp.dot(c2_ref[0:tb, :], w1c_ref[0],
                 preferred_element_type=jnp.float32)
    for hh in range(1, h2):
        f1 += jnp.dot(c2_ref[hh * tb:(hh + 1) * tb, :], w1c_ref[hh],
                      preferred_element_type=jnp.float32)
    f1 = jnp.maximum(f1 + fb1_ref[...], 0.0)

    # fc2 + ReLU, single block-wide lane store.
    f2 = jnp.dot(f1, w2_ref[...], preferred_element_type=jnp.float32)
    o_ref[...] = jnp.maximum(f2 + fb2_ref[...], 0.0).astype(o_ref.dtype)


# ------------------------ one-time weight preprocessing --------------------- #

def _banded_conv_weights(w, w_in):
    """Expand an OIHW 3x3 conv weight into per-row-offset banded matrices.

    Returns B of shape (kh, w_in*cin, w_out*cout) with
        B[i, (wo + j)*cin + c, wo*cout + co] = w[co, c, i, j]
    so a VALID conv of an (H, w_in*cin) activation slab (channels fastest) is
        out[ho, :] = sum_i  x[ho + i, :] @ B[i]
    where output rows are laid out as (wo, cout).
    """
    cout, cin, kh, kw = w.shape
    w_out = w_in - kw + 1
    eye = jnp.eye(w_out, dtype=w.dtype)
    bands = []
    for i in range(kh):
        band = jnp.zeros((w_in * cin, w_out * cout), w.dtype)
        for j in range(kw):
            tap = w[:, :, i, j].T                      # (cin, cout)
            blk = jnp.kron(eye, tap)                   # (w_out*cin, w_out*cout)
            band = band.at[j * cin:j * cin + w_out * cin, :].add(blk)
        bands.append(band)
    return jnp.stack(bands)


def preprocess_params(params, in_shape):
    """One-time re-layout of PyTorch-shaped parameters into kernel operands."""
    w1, b1, w2, b2, fw1, fb1, fw2, fb2 = params
    cin, h, w = in_shape
    c1, c2 = w1.shape[0], w2.shape[0]
    w1o = w - 2
    h2, w2o = h - 4, w - 4

    band1 = _banded_conv_weights(w1, w)        # (3, w*cin,   w1o*c1)
    band2 = _banded_conv_weights(w2, w1o)      # (3, w1o*c1,  w2o*c2)
    b1row = jnp.tile(b1, w1o)[None, :]         # (1, w1o*c1)
    b2row = jnp.tile(b2, w2o)[None, :]         # (1, w2o*c2)

    # fc1 weight (128, c2*h2*w2o): flat index = c*h2*w2o + hh*w2o + ww (NCHW
    # flatten).  Re-chunk to (h2, w2o*c2, 128) so chunk[hh][ww*c2 + c, :] is
    # the column block multiplying conv2-slab row hh.
    nf1 = fw1.shape[0]
    w1c = (fw1.reshape(nf1, c2, h2, w2o)
              .transpose(2, 3, 1, 0)
              .reshape(h2, w2o * c2, nf1))
    return (band1, b1row, band2, b2row, w1c, fb1[None, :], fw2.T, fb2[None, :])


# ------------------------------- jitted forward ----------------------------- #

@jax.jit
def conv_encoder_forward(x_nchw, prep):
    band1, b1row, band2, b2row, w1c, fb1r, w2t, fb2r = prep
    n, cin, h, w = x_nchw.shape
    h1, h2 = h - 2, h - 4
    wc = w * cin
    out_dim = w2t.shape[1]

    # Batch tile: multiple of 8 (sublane-aligned slices), capped at _TB_MAX.
    tb = min(_TB_MAX, _round_up(n, 8))
    n_pad = _round_up(n, tb)
    nb = n_pad // tb

    # NCHW -> batch-minor (nb, H, TB, W*Cin) slabs, flattened to 2D so each
    # grid block is an (H*TB, W*Cin) slab (channels fastest on the lane axis).
    x_nhwc = jnp.transpose(x_nchw, (0, 2, 3, 1)).reshape(n, h, wc)
    if n_pad != n:
        x_nhwc = jnp.pad(x_nhwc, ((0, n_pad - n), (0, 0), (0, 0)))
    x_slab = (x_nhwc.reshape(nb, tb, h, wc)
                    .transpose(0, 2, 1, 3)
                    .reshape(nb * h * tb, wc))

    out = pl.pallas_call(
        _conv_encoder_kernel,
        out_shape=jax.ShapeDtypeStruct((n_pad, out_dim), jnp.float32),
        grid_spec=pltpu.PrefetchScalarGridSpec(
            num_scalar_prefetch=0,
            grid=(nb,),
            in_specs=[
                # Per-step input slab (double-buffered by the pipeline).
                pl.BlockSpec((h * tb, wc), lambda b: (b, 0)),
                # Weights: full-array blocks, constant index_map -> DMA'd once,
                # VMEM-resident across all grid steps.
                pl.BlockSpec(band1.shape, lambda b: (0, 0, 0)),
                pl.BlockSpec(b1row.shape, lambda b: (0, 0)),
                pl.BlockSpec(band2.shape, lambda b: (0, 0, 0)),
                pl.BlockSpec(b2row.shape, lambda b: (0, 0)),
                pl.BlockSpec(w1c.shape, lambda b: (0, 0, 0)),
                pl.BlockSpec(fb1r.shape, lambda b: (0, 0)),
                pl.BlockSpec(w2t.shape, lambda b: (0, 0)),
                pl.BlockSpec(fb2r.shape, lambda b: (0, 0)),
            ],
            out_specs=pl.BlockSpec((tb, out_dim), lambda b: (b, 0)),
            scratch_shapes=[
                pltpu.VMEM((h1 * tb, band1.shape[2]), jnp.float32),  # conv1 slab
                pltpu.VMEM((h2 * tb, band2.shape[2]), jnp.float32),  # conv2 slab
            ],
        ),
        compiler_params=pltpu.CompilerParams(
            dimension_semantics=("parallel",)),
    )(x_slab, band1, b1row, band2, b2row, w1c, fb1r, w2t, fb2r)
    return out[:n]


# --------------------------- parameters / reference ------------------------- #

def init_params(key, in_shape=(4, 16, 16), out_dim=20):
    """Deterministic synthetic parameters with PyTorch-module shapes."""
    cin, h, w = in_shape
    h2, w2 = h - 4, w - 4
    fc1_in = 10 * h2 * w2
    ks = jax.random.split(key, 8)

    def u(k, shape, fan_in):
        s = 1.0 / (fan_in ** 0.5)
        return jax.random.uniform(k, shape, jnp.float32, -s, s)

    conv1_w = u(ks[0], (40, cin, 3, 3), cin * 9)     # OIHW, like nn.Conv2d
    conv1_b = u(ks[1], (40,), cin * 9)
    conv2_w = u(ks[2], (10, 40, 3, 3), 40 * 9)
    conv2_b = u(ks[3], (10,), 40 * 9)
    fc1_w = u(ks[4], (128, fc1_in), fc1_in)          # (out, in), like nn.Linear
    fc1_b = u(ks[5], (128,), fc1_in)
    fc2_w = u(ks[6], (out_dim, 128), 128)
    fc2_b = u(ks[7], (out_dim,), 128)
    return (conv1_w, conv1_b, conv2_w, conv2_b, fc1_w, fc1_b, fc2_w, fc2_b)


def reference_forward(x_nchw, params):
    """Pure-JAX (XLA) reference mirroring the PyTorch module."""
    w1, b1, w2, b2, fw1, fb1, fw2, fb2 = params
    dn = ("NCHW", "OIHW", "NCHW")
    c1 = jax.lax.conv_general_dilated(x_nchw, w1, (1, 1), "VALID",
                                      dimension_numbers=dn)
    c1 = jax.nn.relu(c1 + b1[None, :, None, None])
    c2 = jax.lax.conv_general_dilated(c1, w2, (1, 1), "VALID",
                                      dimension_numbers=dn)
    c2 = jax.nn.relu(c2 + b2[None, :, None, None])
    f = c2.reshape(c2.shape[0], -1)
    f1 = jax.nn.relu(f @ fw1.T + fb1)
    f2 = jax.nn.relu(f1 @ fw2.T + fb2)
    return f2


# ----------------------------------- main ----------------------------------- #

if __name__ == "__main__":
    key = jax.random.PRNGKey(0)
    kx, kp = jax.random.split(key)

    in_shape = (4, 16, 16)   # (C, H, W), as in ConvEncoder(in_shape=...)
    batch = 2
    out_dim = 20

    x = jax.random.normal(kx, (batch,) + in_shape, jnp.float32)   # NCHW like torch
    params = init_params(kp, in_shape=in_shape, out_dim=out_dim)
    prep = preprocess_params(params, in_shape)   # one-time weight re-layout

    out = conv_encoder_forward(x, prep)
    out = jax.block_until_ready(out)
    assert out.shape == (batch, out_dim), out.shape

    ref = reference_forward(x, params)
    max_err = float(jnp.max(jnp.abs(out - ref)))
    assert jnp.allclose(out, ref, atol=1e-3, rtol=1e-3), max_err

    print("KERNEL_OK")
</pallas_src>

<mosaic_0001>
module attributes {stable_mosaic.version = 11 : i64} {
  func.func @_conv_encoder_kernel(%arg0: i32, %arg1: memref<128x64xf32, #tpu.memory_space<vmem>>, %arg2: memref<3x64x560xf32, #tpu.memory_space<vmem>>, %arg3: memref<1x560xf32, #tpu.memory_space<vmem>>, %arg4: memref<3x560x120xf32, #tpu.memory_space<vmem>>, %arg5: memref<1x120xf32, #tpu.memory_space<vmem>>, %arg6: memref<12x120x128xf32, #tpu.memory_space<vmem>>, %arg7: memref<1x128xf32, #tpu.memory_space<vmem>>, %arg8: memref<128x20xf32, #tpu.memory_space<vmem>>, %arg9: memref<1x20xf32, #tpu.memory_space<vmem>>, %arg10: memref<8x20xf32, #tpu.memory_space<vmem>>, %arg11: memref<112x560xf32, #tpu.memory_space<vmem>>, %arg12: memref<96x120xf32, #tpu.memory_space<vmem>>) attributes {dimension_semantics = [#tpu.dimension_semantics<parallel>], iteration_bounds = array<i64: 1>, scalar_prefetch = 0 : i64, scratch_operands = 2 : i64, tpu.core_type = #tpu.core_type<tc>, window_params = [{transform_indices = @transform_0, window_bounds = array<i64: 128, 64>}, {pipeline_mode = #tpu.pipeline_mode<synchronous>, transform_indices = @transform_1, window_bounds = array<i64: 3, 64, 560>}, {pipeline_mode = #tpu.pipeline_mode<synchronous>, transform_indices = @transform_2, window_bounds = array<i64: 1, 560>}, {pipeline_mode = #tpu.pipeline_mode<synchronous>, transform_indices = @transform_3, window_bounds = array<i64: 3, 560, 120>}, {pipeline_mode = #tpu.pipeline_mode<synchronous>, transform_indices = @transform_4, window_bounds = array<i64: 1, 120>}, {pipeline_mode = #tpu.pipeline_mode<synchronous>, transform_indices = @transform_5, window_bounds = array<i64: 12, 120, 128>}, {pipeline_mode = #tpu.pipeline_mode<synchronous>, transform_indices = @transform_6, window_bounds = array<i64: 1, 128>}, {pipeline_mode = #tpu.pipeline_mode<synchronous>, transform_indices = @transform_7, window_bounds = array<i64: 128, 20>}, {pipeline_mode = #tpu.pipeline_mode<synchronous>, transform_indices = @transform_8, window_bounds = array<i64: 1, 20>}, {transform_indices = @transform_9, window_bounds = array<i64: 8, 20>}]} {
    %c0 = arith.constant 0 : index
    %c0_0 = arith.constant 0 : index
    %0 = vector.load %arg1[%c0, %c0_0] : memref<128x64xf32, #tpu.memory_space<vmem>>, vector<112x64xf32>
    %c0_1 = arith.constant 0 : index
    %c0_2 = arith.constant 0 : index
    %c0_3 = arith.constant 0 : index
    %1 = vector.load %arg2[%c0_1, %c0_2, %c0_3] : memref<3x64x560xf32, #tpu.memory_space<vmem>>, vector<1x64x560xf32>
    %2 = vector.shape_cast %1 : vector<1x64x560xf32> to vector<64x560xf32>
    %cst = arith.constant dense<0.000000e+00> : vector<112x560xf32>
    %3 = tpu.matmul %0, %2, %cst {dimension_numbers = #tpu.dot_dimension_numbers<[1], [0], [0], [1], [0, 0, 1, 1], [], []>} : vector<112x64xf32>, vector<64x560xf32>, vector<112x560xf32> -> vector<112x560xf32>
    %c8 = arith.constant 8 : index
    %c0_4 = arith.constant 0 : index
    %4 = vector.load %arg1[%c8, %c0_4] : memref<128x64xf32, #tpu.memory_space<vmem>>, vector<112x64xf32>
    %c1 = arith.constant 1 : index
    %c0_5 = arith.constant 0 : index
    %c0_6 = arith.constant 0 : index
    %5 = vector.load %arg2[%c1, %c0_5, %c0_6] : memref<3x64x560xf32, #tpu.memory_space<vmem>>, vector<1x64x560xf32>
    %6 = vector.shape_cast %5 : vector<1x64x560xf32> to vector<64x560xf32>
    %cst_7 = arith.constant dense<0.000000e+00> : vector<112x560xf32>
    %7 = tpu.matmul %4, %6, %cst_7 {dimension_numbers = #tpu.dot_dimension_numbers<[1], [0], [0], [1], [0, 0, 1, 1], [], []>} : vector<112x64xf32>, vector<64x560xf32>, vector<112x560xf32> -> vector<112x560xf32>
    %8 = arith.addf %3, %7 : vector<112x560xf32>
    %c16 = arith.constant 16 : index
    %c0_8 = arith.constant 0 : index
    %9 = vector.load %arg1[%c16, %c0_8] : memref<128x64xf32, #tpu.memory_space<vmem>>, vector<112x64xf32>
    %c2 = arith.constant 2 : index
    %c0_9 = arith.constant 0 : index
    %c0_10 = arith.constant 0 : index
    %10 = vector.load %arg2[%c2, %c0_9, %c0_10] : memref<3x64x560xf32, #tpu.memory_space<vmem>>, vector<1x64x560xf32>
    %11 = vector.shape_cast %10 : vector<1x64x560xf32> to vector<64x560xf32>
    %cst_11 = arith.constant dense<0.000000e+00> : vector<112x560xf32>
    %12 = tpu.matmul %9, %11, %cst_11 {dimension_numbers = #tpu.dot_dimension_numbers<[1], [0], [0], [1], [0, 0, 1, 1], [], []>} : vector<112x64xf32>, vector<64x560xf32>, vector<112x560xf32> -> vector<112x560xf32>
    %13 = arith.addf %8, %12 : vector<112x560xf32>
    %c0_12 = arith.constant 0 : index
    %c0_13 = arith.constant 0 : index
    %14 = vector.load %arg3[%c0_12, %c0_13] : memref<1x560xf32, #tpu.memory_space<vmem>>, vector<1x560xf32>
    %15 = vector.broadcast %14 : vector<1x560xf32> to vector<112x560xf32>
    %16 = arith.addf %13, %15 : vector<112x560xf32>
    %cst_14 = arith.constant 0.000000e+00 : f32
    %17 = vector.broadcast %cst_14 : f32 to vector<112x560xf32>
    %18 = arith.maximumf %16, %17 : vector<112x560xf32>
    %c0_15 = arith.constant 0 : index
    %c0_16 = arith.constant 0 : index
    %19 = vector.load %arg11[%c0_15, %c0_16] : memref<112x560xf32, #tpu.memory_space<vmem>>, vector<112x560xf32>
    tpu.vector_store %arg11[%c0_15, %c0_16], %18 {strides = array<i32>} : memref<112x560xf32, #tpu.memory_space<vmem>>, vector<112x560xf32>,
    %c0_17 = arith.constant 0 : index
    %c0_18 = arith.constant 0 : index
    %20 = vector.load %arg11[%c0_17, %c0_18] : memref<112x560xf32, #tpu.memory_space<vmem>>, vector<96x560xf32>
    %c0_19 = arith.constant 0 : index
    %c0_20 = arith.constant 0 : index
    %c0_21 = arith.constant 0 : index
    %21 = vector.load %arg4[%c0_19, %c0_20, %c0_21] : memref<3x560x120xf32, #tpu.memory_space<vmem>>, vector<1x560x120xf32>
    %22 = vector.shape_cast %21 : vector<1x560x120xf32> to vector<560x120xf32>
    %cst_22 = arith.constant dense<0.000000e+00> : vector<96x120xf32>
    %23 = tpu.matmul %20, %22, %cst_22 {dimension_numbers = #tpu.dot_dimension_numbers<[1], [0], [0], [1], [0, 0, 1, 1], [], []>} : vector<96x560xf32>, vector<560x120xf32>, vector<96x120xf32> -> vector<96x120xf32>
    %c8_23 = arith.constant 8 : index
    %c0_24 = arith.constant 0 : index
    %24 = vector.load %arg11[%c8_23, %c0_24] : memref<112x560xf32, #tpu.memory_space<vmem>>, vector<96x560xf32>
    %c1_25 = arith.constant 1 : index
    %c0_26 = arith.constant 0 : index
    %c0_27 = arith.constant 0 : index
    %25 = vector.load %arg4[%c1_25, %c0_26, %c0_27] : memref<3x560x120xf32, #tpu.memory_space<vmem>>, vector<1x560x120xf32>
    %26 = vector.shape_cast %25 : vector<1x560x120xf32> to vector<560x120xf32>
    %cst_28 = arith.constant dense<0.000000e+00> : vector<96x120xf32>
    %27 = tpu.matmul %24, %26, %cst_28 {dimension_numbers = #tpu.dot_dimension_numbers<[1], [0], [0], [1], [0, 0, 1, 1], [], []>} : vector<96x560xf32>, vector<560x120xf32>, vector<96x120xf32> -> vector<96x120xf32>
    %28 = arith.addf %23, %27 : vector<96x120xf32>
    %c16_29 = arith.constant 16 : index
    %c0_30 = arith.constant 0 : index
    %29 = vector.load %arg11[%c16_29, %c0_30] : memref<112x560xf32, #tpu.memory_space<vmem>>, vector<96x560xf32>
    %c2_31 = arith.constant 2 : index
    %c0_32 = arith.constant 0 : index
    %c0_33 = arith.constant 0 : index
    %30 = vector.load %arg4[%c2_31, %c0_32, %c0_33] : memref<3x560x120xf32, #tpu.memory_space<vmem>>, vector<1x560x120xf32>
    %31 = vector.shape_cast %30 : vector<1x560x120xf32> to vector<560x120xf32>
    %cst_34 = arith.constant dense<0.000000e+00> : vector<96x120xf32>
    %32 = tpu.matmul %29, %31, %cst_34 {dimension_numbers = #tpu.dot_dimension_numbers<[1], [0], [0], [1], [0, 0, 1, 1], [], []>} : vector<96x560xf32>, vector<560x120xf32>, vector<96x120xf32> -> vector<96x120xf32>
    %33 = arith.addf %28, %32 : vector<96x120xf32>
    %c0_35 = arith.constant 0 : index
    %c0_36 = arith.constant 0 : index
    %34 = vector.load %arg5[%c0_35, %c0_36] : memref<1x120xf32, #tpu.memory_space<vmem>>, vector<1x120xf32>
    %35 = vector.broadcast %34 : vector<1x120xf32> to vector<96x120xf32>
    %36 = arith.addf %33, %35 : vector<96x120xf32>
    %cst_37 = arith.constant 0.000000e+00 : f32
    %37 = vector.broadcast %cst_37 : f32 to vector<96x120xf32>
    %38 = arith.maximumf %36, %37 : vector<96x120xf32>
    %c0_38 = arith.constant 0 : index
    %c0_39 = arith.constant 0 : index
    %39 = vector.load %arg12[%c0_38, %c0_39] : memref<96x120xf32, #tpu.memory_space<vmem>>, vector<96x120xf32>
    tpu.vector_store %arg12[%c0_38, %c0_39], %38 {strides = array<i32>} : memref<96x120xf32, #tpu.memory_space<vmem>>, vector<96x120xf32>,
    %c0_40 = arith.constant 0 : index
    %c0_41 = arith.constant 0 : index
    %40 = vector.load %arg12[%c0_40, %c0_41] : memref<96x120xf32, #tpu.memory_space<vmem>>, vector<8x120xf32>
    %c0_42 = arith.constant 0 : index
    %c0_43 = arith.constant 0 : index
    %c0_44 = arith.constant 0 : index
    %41 = vector.load %arg6[%c0_42, %c0_43, %c0_44] : memref<12x120x128xf32, #tpu.memory_space<vmem>>, vector<1x120x128xf32>
    %42 = vector.shape_cast %41 : vector<1x120x128xf32> to vector<120x128xf32>
    %cst_45 = arith.constant dense<0.000000e+00> : vector<8x128xf32>
    %43 = tpu.matmul %40, %42, %cst_45 {dimension_numbers = #tpu.dot_dimension_numbers<[1], [0], [0], [1], [0, 0, 1, 1], [], []>} : vector<8x120xf32>, vector<120x128xf32>, vector<8x128xf32> -> vector<8x128xf32>
    %c8_46 = arith.constant 8 : index
    %c0_47 = arith.constant 0 : index
    %44 = vector.load %arg12[%c8_46, %c0_47] : memref<96x120xf32, #tpu.memory_space<vmem>>, vector<8x120xf32>
    %c1_48 = arith.constant 1 : index
    %c0_49 = arith.constant 0 : index
    %c0_50 = arith.constant 0 : index
    %45 = vector.load %arg6[%c1_48, %c0_49, %c0_50] : memref<12x120x128xf32, #tpu.memory_space<vmem>>, vector<1x120x128xf32>
    %46 = vector.shape_cast %45 : vector<1x120x128xf32> to vector<120x128xf32>
    %cst_51 = arith.constant dense<0.000000e+00> : vector<8x128xf32>
    %47 = tpu.matmul %44, %46, %cst_51 {dimension_numbers = #tpu.dot_dimension_numbers<[1], [0], [0], [1], [0, 0, 1, 1], [], []>} : vector<8x120xf32>, vector<120x128xf32>, vector<8x128xf32> -> vector<8x128xf32>
    %48 = arith.addf %43, %47 : vector<8x128xf32>
    %c16_52 = arith.constant 16 : index
    %c0_53 = arith.constant 0 : index
    %49 = vector.load %arg12[%c16_52, %c0_53] : memref<96x120xf32, #tpu.memory_space<vmem>>, vector<8x120xf32>
    %c2_54 = arith.constant 2 : index
    %c0_55 = arith.constant 0 : index
    %c0_56 = arith.constant 0 : index
    %50 = vector.load %arg6[%c2_54, %c0_55, %c0_56] : memref<12x120x128xf32, #tpu.memory_space<vmem>>, vector<1x120x128xf32>
    %51 = vector.shape_cast %50 : vector<1x120x128xf32> to vector<120x128xf32>
    %cst_57 = arith.constant dense<0.000000e+00> : vector<8x128xf32>
    %52 = tpu.matmul %49, %51, %cst_57 {dimension_numbers = #tpu.dot_dimension_numbers<[1], [0], [0], [1], [0, 0, 1, 1], [], []>} : vector<8x120xf32>, vector<120x128xf32>, vector<8x128xf32> -> vector<8x128xf32>
    %53 = arith.addf %48, %52 : vector<8x128xf32>
    %c24 = arith.constant 24 : index
    %c0_58 = arith.constant 0 : index
    %54 = vector.load %arg12[%c24, %c0_58] : memref<96x120xf32, #tpu.memory_space<vmem>>, vector<8x120xf32>
    %c3 = arith.constant 3 : index
    %c0_59 = arith.constant 0 : index
    %c0_60 = arith.constant 0 : index
    %55 = vector.load %arg6[%c3, %c0_59, %c0_60] : memref<12x120x128xf32, #tpu.memory_space<vmem>>, vector<1x120x128xf32>
    %56 = vector.shape_cast %55 : vector<1x120x128xf32> to vector<120x128xf32>
    %cst_61 = arith.constant dense<0.000000e+00> : vector<8x128xf32>
    %57 = tpu.matmul %54, %56, %cst_61 {dimension_numbers = #tpu.dot_dimension_numbers<[1], [0], [0], [1], [0, 0, 1, 1], [], []>} : vector<8x120xf32>, vector<120x128xf32>, vector<8x128xf32> -> vector<8x128xf32>
    %58 = arith.addf %53, %57 : vector<8x128xf32>
    %c32 = arith.constant 32 : index
    %c0_62 = arith.constant 0 : index
    %59 = vector.load %arg12[%c32, %c0_62] : memref<96x120xf32, #tpu.memory_space<vmem>>, vector<8x120xf32>
    %c4 = arith.constant 4 : index
    %c0_63 = arith.constant 0 : index
    %c0_64 = arith.constant 0 : index
    %60 = vector.load %arg6[%c4, %c0_63, %c0_64] : memref<12x120x128xf32, #tpu.memory_space<vmem>>, vector<1x120x128xf32>
    %61 = vector.shape_cast %60 : vector<1x120x128xf32> to vector<120x128xf32>
    %cst_65 = arith.constant dense<0.000000e+00> : vector<8x128xf32>
    %62 = tpu.matmul %59, %61, %cst_65 {dimension_numbers = #tpu.dot_dimension_numbers<[1], [0], [0], [1], [0, 0, 1, 1], [], []>} : vector<8x120xf32>, vector<120x128xf32>, vector<8x128xf32> -> vector<8x128xf32>
    %63 = arith.addf %58, %62 : vector<8x128xf32>
    %c40 = arith.constant 40 : index
    %c0_66 = arith.constant 0 : index
    %64 = vector.load %arg12[%c40, %c0_66] : memref<96x120xf32, #tpu.memory_space<vmem>>, vector<8x120xf32>
    %c5 = arith.constant 5 : index
    %c0_67 = arith.constant 0 : index
    %c0_68 = arith.constant 0 : index
    %65 = vector.load %arg6[%c5, %c0_67, %c0_68] : memref<12x120x128xf32, #tpu.memory_space<vmem>>, vector<1x120x128xf32>
    %66 = vector.shape_cast %65 : vector<1x120x128xf32> to vector<120x128xf32>
    %cst_69 = arith.constant dense<0.000000e+00> : vector<8x128xf32>
    %67 = tpu.matmul %64, %66, %cst_69 {dimension_numbers = #tpu.dot_dimension_numbers<[1], [0], [0], [1], [0, 0, 1, 1], [], []>} : vector<8x120xf32>, vector<120x128xf32>, vector<8x128xf32> -> vector<8x128xf32>
    %68 = arith.addf %63, %67 : vector<8x128xf32>
    %c48 = arith.constant 48 : index
    %c0_70 = arith.constant 0 : index
    %69 = vector.load %arg12[%c48, %c0_70] : memref<96x120xf32, #tpu.memory_space<vmem>>, vector<8x120xf32>
    %c6 = arith.constant 6 : index
    %c0_71 = arith.constant 0 : index
    %c0_72 = arith.constant 0 : index
    %70 = vector.load %arg6[%c6, %c0_71, %c0_72] : memref<12x120x128xf32, #tpu.memory_space<vmem>>, vector<1x120x128xf32>
    %71 = vector.shape_cast %70 : vector<1x120x128xf32> to vector<120x128xf32>
    %cst_73 = arith.constant dense<0.000000e+00> : vector<8x128xf32>
    %72 = tpu.matmul %69, %71, %cst_73 {dimension_numbers = #tpu.dot_dimension_numbers<[1], [0], [0], [1], [0, 0, 1, 1], [], []>} : vector<8x120xf32>, vector<120x128xf32>, vector<8x128xf32> -> vector<8x128xf32>
    %73 = arith.addf %68, %72 : vector<8x128xf32>
    %c56 = arith.constant 56 : index
    %c0_74 = arith.constant 0 : index
    %74 = vector.load %arg12[%c56, %c0_74] : memref<96x120xf32, #tpu.memory_space<vmem>>, vector<8x120xf32>
    %c7 = arith.constant 7 : index
    %c0_75 = arith.constant 0 : index
    %c0_76 = arith.constant 0 : index
    %75 = vector.load %arg6[%c7, %c0_75, %c0_76] : memref<12x120x128xf32, #tpu.memory_space<vmem>>, vector<1x120x128xf32>
    %76 = vector.shape_cast %75 : vector<1x120x128xf32> to vector<120x128xf32>
    %cst_77 = arith.constant dense<0.000000e+00> : vector<8x128xf32>
    %77 = tpu.matmul %74, %76, %cst_77 {dimension_numbers = #tpu.dot_dimension_numbers<[1], [0], [0], [1], [0, 0, 1, 1], [], []>} : vector<8x120xf32>, vector<120x128xf32>, vector<8x128xf32> -> vector<8x128xf32>
    %78 = arith.addf %73, %77 : vector<8x128xf32>
    %c64 = arith.constant 64 : index
    %c0_78 = arith.constant 0 : index
    %79 = vector.load %arg12[%c64, %c0_78] : memref<96x120xf32, #tpu.memory_space<vmem>>, vector<8x120xf32>
    %c8_79 = arith.constant 8 : index
    %c0_80 = arith.constant 0 : index
    %c0_81 = arith.constant 0 : index
    %80 = vector.load %arg6[%c8_79, %c0_80, %c0_81] : memref<12x120x128xf32, #tpu.memory_space<vmem>>, vector<1x120x128xf32>
    %81 = vector.shape_cast %80 : vector<1x120x128xf32> to vector<120x128xf32>
    %cst_82 = arith.constant dense<0.000000e+00> : vector<8x128xf32>
    %82 = tpu.matmul %79, %81, %cst_82 {dimension_numbers = #tpu.dot_dimension_numbers<[1], [0], [0], [1], [0, 0, 1, 1], [], []>} : vector<8x120xf32>, vector<120x128xf32>, vector<8x128xf32> -> vector<8x128xf32>
    %83 = arith.addf %78, %82 : vector<8x128xf32>
    %c72 = arith.constant 72 : index
    %c0_83 = arith.constant 0 : index
    %84 = vector.load %arg12[%c72, %c0_83] : memref<96x120xf32, #tpu.memory_space<vmem>>, vector<8x120xf32>
    %c9 = arith.constant 9 : index
    %c0_84 = arith.constant 0 : index
    %c0_85 = arith.constant 0 : index
    %85 = vector.load %arg6[%c9, %c0_84, %c0_85] : memref<12x120x128xf32, #tpu.memory_space<vmem>>, vector<1x120x128xf32>
    %86 = vector.shape_cast %85 : vector<1x120x128xf32> to vector<120x128xf32>
    %cst_86 = arith.constant dense<0.000000e+00> : vector<8x128xf32>
    %87 = tpu.matmul %84, %86, %cst_86 {dimension_numbers = #tpu.dot_dimension_numbers<[1], [0], [0], [1], [0, 0, 1, 1], [], []>} : vector<8x120xf32>, vector<120x128xf32>, vector<8x128xf32> -> vector<8x128xf32>
    %88 = arith.addf %83, %87 : vector<8x128xf32>
    %c80 = arith.constant 80 : index
    %c0_87 = arith.constant 0 : index
    %89 = vector.load %arg12[%c80, %c0_87] : memref<96x120xf32, #tpu.memory_space<vmem>>, vector<8x120xf32>
    %c10 = arith.constant 10 : index
    %c0_88 = arith.constant 0 : index
    %c0_89 = arith.constant 0 : index
    %90 = vector.load %arg6[%c10, %c0_88, %c0_89] : memref<12x120x128xf32, #tpu.memory_space<vmem>>, vector<1x120x128xf32>
    %91 = vector.shape_cast %90 : vector<1x120x128xf32> to vector<120x128xf32>
    %cst_90 = arith.constant dense<0.000000e+00> : vector<8x128xf32>
    %92 = tpu.matmul %89, %91, %cst_90 {dimension_numbers = #tpu.dot_dimension_numbers<[1], [0], [0], [1], [0, 0, 1, 1], [], []>} : vector<8x120xf32>, vector<120x128xf32>, vector<8x128xf32> -> vector<8x128xf32>
    %93 = arith.addf %88, %92 : vector<8x128xf32>
    %c88 = arith.constant 88 : index
    %c0_91 = arith.constant 0 : index
    %94 = vector.load %arg12[%c88, %c0_91] : memref<96x120xf32, #tpu.memory_space<vmem>>, vector<8x120xf32>
    %c11 = arith.constant 11 : index
    %c0_92 = arith.constant 0 : index
    %c0_93 = arith.constant 0 : index
    %95 = vector.load %arg6[%c11, %c0_92, %c0_93] : memref<12x120x128xf32, #tpu.memory_space<vmem>>, vector<1x120x128xf32>
    %96 = vector.shape_cast %95 : vector<1x120x128xf32> to vector<120x128xf32>
    %cst_94 = arith.constant dense<0.000000e+00> : vector<8x128xf32>
    %97 = tpu.matmul %94, %96, %cst_94 {dimension_numbers = #tpu.dot_dimension_numbers<[1], [0], [0], [1], [0, 0, 1, 1], [], []>} : vector<8x120xf32>, vector<120x128xf32>, vector<8x128xf32> -> vector<8x128xf32>
    %98 = arith.addf %93, %97 : vector<8x128xf32>
    %c0_95 = arith.constant 0 : index
    %c0_96 = arith.constant 0 : index
    %99 = vector.load %arg7[%c0_95, %c0_96] : memref<1x128xf32, #tpu.memory_space<vmem>>, vector<1x128xf32>
    %100 = vector.broadcast %99 : vector<1x128xf32> to vector<8x128xf32>
    %101 = arith.addf %98, %100 : vector<8x128xf32>
    %cst_97 = arith.constant 0.000000e+00 : f32
    %102 = vector.broadcast %cst_97 : f32 to vector<8x128xf32>
    %103 = arith.maximumf %101, %102 : vector<8x128xf32>
    %c0_98 = arith.constant 0 : index
    %c0_99 = arith.constant 0 : index
    %104 = vector.load %arg8[%c0_98, %c0_99] : memref<128x20xf32, #tpu.memory_space<vmem>>, vector<128x20xf32>
    %cst_100 = arith.constant dense<0.000000e+00> : vector<8x20xf32>
    %105 = tpu.matmul %103, %104, %cst_100 {dimension_numbers = #tpu.dot_dimension_numbers<[1], [0], [0], [1], [0, 0, 1, 1], [], []>} : vector<8x128xf32>, vector<128x20xf32>, vector<8x20xf32> -> vector<8x20xf32>
    %c0_101 = arith.constant 0 : index
    %c0_102 = arith.constant 0 : index
    %106 = vector.load %arg9[%c0_101, %c0_102] : memref<1x20xf32, #tpu.memory_space<vmem>>, vector<1x20xf32>
    %107 = vector.broadcast %106 : vector<1x20xf32> to vector<8x20xf32>
    %108 = arith.addf %105, %107 : vector<8x20xf32>
    %cst_103 = arith.constant 0.000000e+00 : f32
    %109 = vector.broadcast %cst_103 : f32 to vector<8x20xf32>
    %110 = arith.maximumf %108, %109 : vector<8x20xf32>
    %c0_104 = arith.constant 0 : index
    %c0_105 = arith.constant 0 : index
    %111 = vector.load %arg10[%c0_104, %c0_105] : memref<8x20xf32, #tpu.memory_space<vmem>>, vector<8x20xf32>
    tpu.vector_store %arg10[%c0_104, %c0_105], %110 {strides = array<i32>} : memref<8x20xf32, #tpu.memory_space<vmem>>, vector<8x20xf32>,
    return
  }
  func.func @transform_0(%arg0: i32) -> (i32, i32) {
    %c0_i32 = arith.constant 0 : i32
    %c0_i32_0 = arith.constant 0 : i32
    return %arg0, %c0_i32 : i32, i32
  }
  func.func @transform_1(%arg0: i32) -> (i32, i32, i32) {
    %c0_i32 = arith.constant 0 : i32
    %c0_i32_0 = arith.constant 0 : i32
    %c0_i32_1 = arith.constant 0 : i32
    %c0_i32_2 = arith.constant 0 : i32
    return %c0_i32, %c0_i32_0, %c0_i32_1 : i32, i32, i32
  }
  func.func @transform_2(%arg0: i32) -> (i32, i32) {
    %c0_i32 = arith.constant 0 : i32
    %c0_i32_0 = arith.constant 0 : i32
    %c0_i32_1 = arith.constant 0 : i32
    return %c0_i32, %c0_i32_0 : i32, i32
  }
  func.func @transform_3(%arg0: i32) -> (i32, i32, i32) {
    %c0_i32 = arith.constant 0 : i32
    %c0_i32_0 = arith.constant 0 : i32
    %c0_i32_1 = arith.constant 0 : i32
    %c0_i32_2 = arith.constant 0 : i32
    return %c0_i32, %c0_i32_0, %c0_i32_1 : i32, i32, i32
  }
  func.func @transform_4(%arg0: i32) -> (i32, i32) {
    %c0_i32 = arith.constant 0 : i32
    %c0_i32_0 = arith.constant 0 : i32
    %c0_i32_1 = arith.constant 0 : i32
    return %c0_i32, %c0_i32_0 : i32, i32
  }
  func.func @transform_5(%arg0: i32) -> (i32, i32, i32) {
    %c0_i32 = arith.constant 0 : i32
    %c0_i32_0 = arith.constant 0 : i32
    %c0_i32_1 = arith.constant 0 : i32
    %c0_i32_2 = arith.constant 0 : i32
    return %c0_i32, %c0_i32_0, %c0_i32_1 : i32, i32, i32
  }
  func.func @transform_6(%arg0: i32) -> (i32, i32) {
    %c0_i32 = arith.constant 0 : i32
    %c0_i32_0 = arith.constant 0 : i32
    %c0_i32_1 = arith.constant 0 : i32
    return %c0_i32, %c0_i32_0 : i32, i32
  }
  func.func @transform_7(%arg0: i32) -> (i32, i32) {
    %c0_i32 = arith.constant 0 : i32
    %c0_i32_0 = arith.constant 0 : i32
    %c0_i32_1 = arith.constant 0 : i32
    return %c0_i32, %c0_i32_0 : i32, i32
  }
  func.func @transform_8(%arg0: i32) -> (i32, i32) {
    %c0_i32 = arith.constant 0 : i32
    %c0_i32_0 = arith.constant 0 : i32
    %c0_i32_1 = arith.constant 0 : i32
    return %c0_i32, %c0_i32_0 : i32, i32
  }
  func.func @transform_9(%arg0: i32) -> (i32, i32) {
    %c0_i32 = arith.constant 0 : i32
    %c0_i32_0 = arith.constant 0 : i32
    return %arg0, %c0_i32 : i32, i32
  }
}

</mosaic_0001>

<llo_original>
// kernel: conv_encoder_forward.1
$region0: #{conv_encoder_forward.1}
  #allocation0 [shape = 'u32[]', space=smem, size = 0x4, offset = 0x4, fixed_abs, tag = 'smem constant byte address 0x4 - core index']
  #allocation1 [shape = 'u32[144,128]{1,0:T(1,128)}', space=vmem, size = 0x12000, scoped, tag = 'internal scratch']
  #allocation2 [shape = 'f32[112,560]{1,0:T(8,128)}', space=vmem, size = 0x46000, scoped, tag = 'scratch operand']
  #allocation3 [shape = 'f32[96,120]{1,0:T(8,128)}', space=vmem, size = 0xc000, scoped, tag = 'scratch operand']
  %s0 = inlined_call_operand.vmem [shape: f32[128,64], index: 0, kind: input, shape index: {}]
  %s1 = inlined_call_operand.hbm [shape: f32[3,64,560], index: 1, kind: input, shape index: {}]
  %s2 = inlined_call_operand.vmem [shape: f32[1,560], index: 2, kind: input, shape index: {}]
  %s3 = inlined_call_operand.vmem [shape: f32[3,560,120], index: 3, kind: input, shape index: {}]
  %s4 = inlined_call_operand.vmem [shape: f32[1,120], index: 4, kind: input, shape index: {}]
  %s5 = inlined_call_operand.hbm [shape: f32[12,120,128], index: 5, kind: input, shape index: {}]
  %s6 = inlined_call_operand.vmem [shape: f32[1,128], index: 6, kind: input, shape index: {}]
  %s7 = inlined_call_operand.vmem [shape: f32[128,20], index: 7, kind: input, shape index: {}]
  %s8 = inlined_call_operand.vmem [shape: f32[1,20], index: 8, kind: input, shape index: {}]
  %s9 = inlined_call_operand.vmem [shape: f32[8,20], index: 9, kind: output, shape index: {}]
  %s10 = sld [smem:[#allocation0]]
  $region54: #{conv_encoder_forward.1} parent=0
    _
  %s12 = ssub.s32 1, %s10
  %s13 = scalar_select 0, %s12, %s10
  $region1: #{conv_encoder_forward.1} parent=0
    #allocation4 [shape = 'u8[491520]{0}', space=vmem, size = 0x78000, scoped, tag = 'input window, operand 1, single buffered']
    #allocation5 [shape = 's32[1]{0}', space=sflag, size = 0x4, scoped, tag = 'scoped memory for conv_encoder_forward.1']
    #allocation6 [shape = 'u8[737280]{0}', space=vmem, size = 0xb4000, scoped, tag = 'input window, operand 5, single buffered']
    #allocation7 [shape = 's32[1]{0}', space=sflag, size = 0x4, scoped, tag = 'scoped memory for conv_encoder_forward.1']
    %14 = vsyncpa [#allocation5], 0
    %15 = vsyncpa [#allocation7], 0
    // Predicated region
    $region2: #{conv_encoder_forward.1} parent=1 // pred_check
      _
    $region3: #{conv_encoder_forward.1} parent=1 // pred_check_branch
      %17 = sbr.rel (0) target = $region5
    $region4: #{conv_encoder_forward.1} parent=1 // pred_region
      _
    $region5: #{conv_encoder_forward.1} parent=1 // pred_fallthru
      _
    // Predicated region
    $region6: #{conv_encoder_forward.1} parent=1 // pred_check
      _
    $region7: #{conv_encoder_forward.1} parent=1 // pred_check_branch
      %19 = sbr.rel (0) target = $region9
    $region8: #{conv_encoder_forward.1} parent=1 // pred_region
      %s21 = ssub.s32 15360, 15360
      %22 = vsyncadd [#allocation5], %s21
      %s23 = sshll.u32 [#allocation4], 4
      %s24 = int_to_ptr.vmem [resolvable:$true] %s23
      %29 = dma.hbm_to_vmem [thread:$0]  %s1, 15360, %s24, [#allocation5], 640, 640, 40
    $region9: #{conv_encoder_forward.1} parent=1 // pred_fallthru
      _
    // Predicated region
    $region10: #{conv_encoder_forward.1} parent=1 // pred_check
      _
    $region11: #{conv_encoder_forward.1} parent=1 // pred_check_branch
      %31 = sbr.rel (0) target = $region13
    $region12: #{conv_encoder_forward.1} parent=1 // pred_region
      _
    $region13: #{conv_encoder_forward.1} parent=1 // pred_fallthru
      _
    // Predicated region
    $region14: #{conv_encoder_forward.1} parent=1 // pred_check
      _
    $region15: #{conv_encoder_forward.1} parent=1 // pred_check_branch
      %33 = sbr.rel (0) target = $region17
    $region16: #{conv_encoder_forward.1} parent=1 // pred_region
      _
    $region17: #{conv_encoder_forward.1} parent=1 // pred_fallthru
      _
    // Predicated region
    $region18: #{conv_encoder_forward.1} parent=1 // pred_check
      _
    $region19: #{conv_encoder_forward.1} parent=1 // pred_check_branch
      %35 = sbr.rel (0) target = $region21
    $region20: #{conv_encoder_forward.1} parent=1 // pred_region
      _
    $region21: #{conv_encoder_forward.1} parent=1 // pred_fallthru
      _
    // Predicated region
    $region22: #{conv_encoder_forward.1} parent=1 // pred_check
      _
    $region23: #{conv_encoder_forward.1} parent=1 // pred_check_branch
      %37 = sbr.rel (0) target = $region25
    $region24: #{conv_encoder_forward.1} parent=1 // pred_region
      %s39 = ssub.s32 23040, 23040
      %40 = vsyncadd [#allocation7], %s39
      %s41 = sshll.u32 [#allocation6], 4
      %s42 = int_to_ptr.vmem [resolvable:$true] %s41
      %47 = dma.hbm_to_vmem [thread:$0]  %s5, 23040, %s42, [#allocation7], 128, 128, 8
    $region25: #{conv_encoder_forward.1} parent=1 // pred_fallthru
      _
    // Predicated region
    $region26: #{conv_encoder_forward.1} parent=1 // pred_check
      _
    $region27: #{conv_encoder_forward.1} parent=1 // pred_check_branch
      %49 = sbr.rel (0) target = $region29
    $region28: #{conv_encoder_forward.1} parent=1 // pred_region
      _
    $region29: #{conv_encoder_forward.1} parent=1 // pred_fallthru
      _
    // Predicated region
    $region30: #{conv_encoder_forward.1} parent=1 // pred_check
      _
    $region31: #{conv_encoder_forward.1} parent=1 // pred_check_branch
      %51 = sbr.rel (0) target = $region33
    $region32: #{conv_encoder_forward.1} parent=1 // pred_region
      _
    $region33: #{conv_encoder_forward.1} parent=1 // pred_fallthru
      _
    // Predicated region
    $region34: #{conv_encoder_forward.1} parent=1 // pred_check
      _
    $region35: #{conv_encoder_forward.1} parent=1 // pred_check_branch
      %53 = sbr.rel (0) target = $region37
    $region36: #{conv_encoder_forward.1} parent=1 // pred_region
      _
    $region37: #{conv_encoder_forward.1} parent=1 // pred_fallthru
      _
    // Predicated region
    $region38: #{conv_encoder_forward.1} parent=1 // pred_check
      _
    $region39: #{conv_encoder_forward.1} parent=1 // pred_check_branch
      %55 = sbr.rel (0) target = $region41
    $region40: #{conv_encoder_forward.1} parent=1 // pred_region
      %56 = dma.done [#allocation5], 15360
    $region41: #{conv_encoder_forward.1} parent=1 // pred_fallthru
      _
    // Predicated region
    $region42: #{conv_encoder_forward.1} parent=1 // pred_check
      _
    $region43: #{conv_encoder_forward.1} parent=1 // pred_check_branch
      %58 = sbr.rel (0) target = $region45
    $region44: #{conv_encoder_forward.1} parent=1 // pred_region
      %59 = dma.done [#allocation7], 23040
    $region45: #{conv_encoder_forward.1} parent=1 // pred_fallthru
      _
    %v60 = vld [vmem:[%s0] sm:$0xff]
    %v61 = vld [vmem:[%s0 + $0x8] sm:$0xff]
    %v62 = vld [vmem:[%s0 + $0x10] sm:$0xff]
    %v63 = vld [vmem:[%s0 + $0x18] sm:$0xff]
    %v64 = vld [vmem:[%s0 + $0x20] sm:$0xff]
    %v65 = vld [vmem:[%s0 + $0x28] sm:$0xff]
    %v66 = vld [vmem:[%s0 + $0x30] sm:$0xff]
    %v67 = vld [vmem:[%s0 + $0x38] sm:$0xff]
    %v68 = vld [vmem:[%s0 + $0x40] sm:$0xff]
    %v69 = vld [vmem:[%s0 + $0x48] sm:$0xff]
    %v70 = vld [vmem:[%s0 + $0x50] sm:$0xff]
    %v71 = vld [vmem:[%s0 + $0x58] sm:$0xff]
    %v72 = vld [vmem:[%s0 + $0x60] sm:$0xff]
    %v73 = vld [vmem:[%s0 + $0x68] sm:$0xff]
    %v74 = vld [vmem:[#allocation4] sm:$0xff]
    %v75 = vld [vmem:[#allocation4 + $0x8] sm:$0xff]
    %v76 = vld [vmem:[#allocation4 + $0x10] sm:$0xff]
    %v77 = vld [vmem:[#allocation4 + $0x18] sm:$0xff]
    %v78 = vld [vmem:[#allocation4 + $0x20] sm:$0xff]
    %v79 = vld [vmem:[#allocation4 + $0x28] sm:$0xff]
    %v80 = vld [vmem:[#allocation4 + $0x30] sm:$0xff]
    %v81 = vld [vmem:[#allocation4 + $0x38] sm:$0xff]
    %v82 = vld [vmem:[#allocation4 + $0x40] sm:$0xff]
    %v83 = vld [vmem:[#allocation4 + $0x48] sm:$0xff]
    %v84 = vld [vmem:[#allocation4 + $0x50] sm:$0xff]
    %v85 = vld [vmem:[#allocation4 + $0x58] sm:$0xff]
    %v86 = vld [vmem:[#allocation4 + $0x60] sm:$0xff]
    %v87 = vld [vmem:[#allocation4 + $0x68] sm:$0xff]
    %v88 = vld [vmem:[#allocation4 + $0x70] sm:$0xff]
    %v89 = vld [vmem:[#allocation4 + $0x78] sm:$0xff]
    %v90 = vld [vmem:[#allocation4 + $0x80] sm:$0xff]
    %v91 = vld [vmem:[#allocation4 + $0x88] sm:$0xff]
    %v92 = vld [vmem:[#allocation4 + $0x90] sm:$0xff]
    %v93 = vld [vmem:[#allocation4 + $0x98] sm:$0xff]
    %v94 = vld [vmem:[#allocation4 + $0xa0] sm:$0xff]
    %v95 = vld [vmem:[#allocation4 + $0xa8] sm:$0xff]
    %v96 = vld [vmem:[#allocation4 + $0xb0] sm:$0xff]
    %v97 = vld [vmem:[#allocation4 + $0xb8] sm:$0xff]
    %v98 = vld [vmem:[#allocation4 + $0xc0] sm:$0xff]
    %v99 = vld [vmem:[#allocation4 + $0xc8] sm:$0xff]
    %v100 = vld [vmem:[#allocation4 + $0xd0] sm:$0xff]
    %v101 = vld [vmem:[#allocation4 + $0xd8] sm:$0xff]
    %v102 = vld [vmem:[#allocation4 + $0xe0] sm:$0xff]
    %v103 = vld [vmem:[#allocation4 + $0xe8] sm:$0xff]
    %v104 = vld [vmem:[#allocation4 + $0xf0] sm:$0xff]
    %v105 = vld [vmem:[#allocation4 + $0xf8] sm:$0xff]
    %v106 = vld [vmem:[#allocation4 + $0x100] sm:$0xff]
    %v107 = vld [vmem:[#allocation4 + $0x108] sm:$0xff]
    %v108 = vld [vmem:[#allocation4 + $0x110] sm:$0xff]
    %v109 = vld [vmem:[#allocation4 + $0x118] sm:$0xff]
    %v110 = vld [vmem:[#allocation4 + $0x120] sm:$0xff]
    %v111 = vld [vmem:[#allocation4 + $0x128] sm:$0xff]
    %v112 = vld [vmem:[#allocation4 + $0x130] sm:$0xff]
    %v113 = vld [vmem:[#allocation4 + $0x138] sm:$0xff]
    %v114 = vld [vmem:[%s0 + $0x70] sm:$0xff]
    %s115 = scalar_lea.vmem [#allocation4], 320
    %v116 = vld [vmem:[%s115] sm:$0xff]
    %v117 = vld [vmem:[%s115 + $0x8] sm:$0xff]
    %v118 = vld [vmem:[%s115 + $0x10] sm:$0xff]
    %v119 = vld [vmem:[%s115 + $0x18] sm:$0xff]
    %v120 = vld [vmem:[%s115 + $0x20] sm:$0xff]
    %v121 = vld [vmem:[%s115 + $0x28] sm:$0xff]
    %v122 = vld [vmem:[%s115 + $0x30] sm:$0xff]
    %v123 = vld [vmem:[%s115 + $0x38] sm:$0xff]
    %v124 = vld [vmem:[%s115 + $0x40] sm:$0xff]
    %v125 = vld [vmem:[%s115 + $0x48] sm:$0xff]
    %v126 = vld [vmem:[%s115 + $0x50] sm:$0xff]
    %v127 = vld [vmem:[%s115 + $0x58] sm:$0xff]
    %v128 = vld [vmem:[%s115 + $0x60] sm:$0xff]
    %v129 = vld [vmem:[%s115 + $0x68] sm:$0xff]
    %v130 = vld [vmem:[%s115 + $0x70] sm:$0xff]
    %v131 = vld [vmem:[%s115 + $0x78] sm:$0xff]
    %v132 = vld [vmem:[%s115 + $0x80] sm:$0xff]
    %v133 = vld [vmem:[%s115 + $0x88] sm:$0xff]
    %v134 = vld [vmem:[%s115 + $0x90] sm:$0xff]
    %v135 = vld [vmem:[%s115 + $0x98] sm:$0xff]
    %v136 = vld [vmem:[%s115 + $0xa0] sm:$0xff]
    %v137 = vld [vmem:[%s115 + $0xa8] sm:$0xff]
    %v138 = vld [vmem:[%s115 + $0xb0] sm:$0xff]
    %v139 = vld [vmem:[%s115 + $0xb8] sm:$0xff]
    %v140 = vld [vmem:[%s115 + $0xc0] sm:$0xff]
    %v141 = vld [vmem:[%s115 + $0xc8] sm:$0xff]
    %v142 = vld [vmem:[%s115 + $0xd0] sm:$0xff]
    %v143 = vld [vmem:[%s115 + $0xd8] sm:$0xff]
    %v144 = vld [vmem:[%s115 + $0xe0] sm:$0xff]
    %v145 = vld [vmem:[%s115 + $0xe8] sm:$0xff]
    %v146 = vld [vmem:[%s115 + $0xf0] sm:$0xff]
    %v147 = vld [vmem:[%s115 + $0xf8] sm:$0xff]
    %v148 = vld [vmem:[%s115 + $0x100] sm:$0xff]
    %v149 = vld [vmem:[%s115 + $0x108] sm:$0xff]
    %v150 = vld [vmem:[%s115 + $0x110] sm:$0xff]
    %v151 = vld [vmem:[%s115 + $0x118] sm:$0xff]
    %v152 = vld [vmem:[%s115 + $0x120] sm:$0xff]
    %v153 = vld [vmem:[%s115 + $0x128] sm:$0xff]
    %v154 = vld [vmem:[%s115 + $0x130] sm:$0xff]
    %v155 = vld [vmem:[%s115 + $0x138] sm:$0xff]
    %vm156 = vcmask 523264
    %v158 = vsel %vm156, %v61, 0
    %v161 = vsel %vm156, %v62, 0
    %v164 = vsel %vm156, %v63, 0
    %v167 = vsel %vm156, %v64, 0
    %v170 = vsel %vm156, %v65, 0
    %v173 = vsel %vm156, %v66, 0
    %v176 = vsel %vm156, %v67, 0
    %v179 = vsel %vm156, %v68, 0
    %v182 = vsel %vm156, %v69, 0
    %v185 = vsel %vm156, %v70, 0
    %v188 = vsel %vm156, %v71, 0
    %v191 = vsel %vm156, %v72, 0
    %v194 = vsel %vm156, %v73, 0
    %v197 = vsel %vm156, %v114, 0
    %199 = vmatprep.subr.mxu0 %v117
    %200 = vmatpush1.msra.mxu0 %v116
    %201 = vmatprep.subr.mxu0 %v122
    %202 = vmatpush1.msra.mxu0 %v121
    %203 = vmatprep.subr.mxu0 %v127
    %204 = vmatpush1.msra.mxu0 %v126
    %205 = vmatprep.subr.mxu0 %v132
    %206 = vmatpush1.msra.mxu0 %v131
    %207 = vmatprep.subr.mxu0 %v137
    %208 = vmatpush1.msra.mxu0 %v136
    %209 = vmatprep.subr.mxu0 %v142
    %210 = vmatpush1.msra.mxu0 %v141
    %211 = vmatprep.subr.mxu0 %v147
    %212 = vmatpush1.msra.mxu0 %v146
    %213 = vmatprep.subr.mxu0 %v152
    %214 = vmatpush1.msra.mxu0 %v151
    %215 = vmatprep.subr.mxu0 0.0
    %216 = vmatpush1.msra.mxu0 0.0
    %217 = vmatprep.subr.mxu0 0.0
    %218 = vmatpush1.msra.mxu0 0.0
    %219 = vmatprep.subr.mxu0 0.0
    %220 = vmatpush1.msra.mxu0 0.0
    %221 = vmatprep.subr.mxu0 0.0
    %222 = vmatpush1.msra.mxu0 0.0
    %223 = vmatprep.subr.mxu0 0.0
    %224 = vmatpush1.msra.mxu0 0.0
    %225 = vmatprep.subr.mxu0 0.0
    %226 = vmatpush1.msra.mxu0 0.0
    %227 = vmatprep.subr.mxu0 0.0
    %228 = vmatpush1.msra.mxu0 0.0
    %229 = vmatprep.subr.mxu0 0.0
    %230 = vmatpush1.msra.mxu0 0.0
    %231 = vmatprep.subr.mxu0 0.0
    %232 = vmatpush1.msra.mxu0 0.0
    %233 = vmatprep.subr.mxu0 0.0
    %234 = vmatpush1.msra.mxu0 0.0
    %235 = vmatprep.subr.mxu0 0.0
    %236 = vmatpush1.msra.mxu0 0.0
    %237 = vmatprep.subr.mxu0 0.0
    %238 = vmatpush1.msra.mxu0 0.0
    %239 = vmatprep.subr.mxu0 0.0
    %240 = vmatpush1.msra.mxu0 0.0
    %241 = vmatprep.subr.mxu0 0.0
    %242 = vmatpush1.msra.mxu0 0.0
    %243 = vmatprep.subr.mxu0 0.0
    %244 = vmatpush1.msra.mxu0 0.0
    %245 = vmatprep.subr.mxu0 0.0
    %246 = vmatpush1.msra.mxu0 0.0
    %247 = vmatprep.subr.mxu0 0.0
    %248 = vmatpush1.msra.mxu0 0.0
    %249 = vmatprep.subr.mxu0 0.0
    %250 = vmatpush1.msra.mxu0 0.0
    %251 = vmatprep.subr.mxu0 0.0
    %252 = vmatpush1.msra.mxu0 0.0
    %253 = vmatprep.subr.mxu0 0.0
    %254 = vmatpush1.msra.mxu0 0.0
    %255 = vmatprep.subr.mxu0 0.0
    %256 = vmatpush1.msra.mxu0 0.0
    %257 = vmatprep.subr.mxu0 0.0
    %258 = vmatpush1.msra.mxu0 0.0
    %259 = vmatprep.subr.mxu0 0.0
    %260 = vmatpush1.msra.mxu0 0.0
    %261 = vmatprep.subr.mxu0 0.0
    %262 = vmatpush1.msra.mxu0 0.0
    %263 = vmatprep.mubr.f32.mxu0 0.0
    %264 = vmatmul.mubr.f32.gmra.mrb[0].mxu0 %v158
    %v265 = vpop.f32.mrb[0].mxu0
    %v266 = vadd.f32 0.0, %v265
    %v267 = vpop.f32.mrb[0].mxu0
    %v268 = vadd.f32 0.0, %v267
    %269 = vmatprep.mubr.f32.mxu0 0.0
    %270 = vmatmul.mubr.f32.gmra.mrb[0].mxu0 %v161
    %v271 = vpop.f32.mrb[0].mxu0
    %v272 = vadd.f32 0.0, %v271
    %v273 = vpop.f32.mrb[0].mxu0
    %v274 = vadd.f32 0.0, %v273
    %275 = vmatprep.mubr.f32.mxu0 0.0
    %276 = vmatmul.mubr.f32.gmra.mrb[0].mxu0 %v164
    %v277 = vpop.f32.mrb[0].mxu0
    %v278 = vadd.f32 0.0, %v277
    %v279 = vpop.f32.mrb[0].mxu0
    %v280 = vadd.f32 0.0, %v279
    %281 = vmatprep.mubr.f32.mxu0 0.0
    %282 = vmatmul.mubr.f32.gmra.mrb[0].mxu0 %v167
    %v283 = vpop.f32.mrb[0].mxu0
    %v284 = vadd.f32 0.0, %v283
    %v285 = vpop.f32.mrb[0].mxu0
    %v286 = vadd.f32 0.0, %v285
    %287 = vmatprep.mubr.f32.mxu0 0.0
    %288 = vmatmul.mubr.f32.gmra.mrb[0].mxu0 %v170
    %v289 = vpop.f32.mrb[0].mxu0
    %v290 = vadd.f32 0.0, %v289
    %v291 = vpop.f32.mrb[0].mxu0
    %v292 = vadd.f32 0.0, %v291
    %293 = vmatprep.mubr.f32.mxu0 0.0
    %294 = vmatmul.mubr.f32.gmra.mrb[0].mxu0 %v173
    %v295 = vpop.f32.mrb[0].mxu0
    %v296 = vadd.f32 0.0, %v295
    %v297 = vpop.f32.mrb[0].mxu0
    %v298 = vadd.f32 0.0, %v297
    %299 = vmatprep.mubr.f32.mxu0 0.0
    %300 = vmatmul.mubr.f32.gmra.mrb[0].mxu0 %v176
    %v301 = vpop.f32.mrb[0].mxu0
    %v302 = vadd.f32 0.0, %v301
    %v303 = vpop.f32.mrb[0].mxu0
    %v304 = vadd.f32 0.0, %v303
    %305 = vmatprep.mubr.f32.mxu0 0.0
    %306 = vmatmul.mubr.f32.gmra.mrb[0].mxu0 %v179
    %v307 = vpop.f32.mrb[0].mxu0
    %v308 = vadd.f32 0.0, %v307
    %v309 = vpop.f32.mrb[0].mxu0
    %v310 = vadd.f32 0.0, %v309
    %311 = vmatprep.mubr.f32.mxu0 0.0
    %312 = vmatmul.mubr.f32.gmra.mrb[0].mxu0 %v182
    %v313 = vpop.f32.mrb[0].mxu0
    %v314 = vadd.f32 0.0, %v313
    %v315 = vpop.f32.mrb[0].mxu0
    %v316 = vadd.f32 0.0, %v315
    %317 = vmatprep.mubr.f32.mxu0 0.0
    %318 = vmatmul.mubr.f32.gmra.mrb[0].mxu0 %v185
    %v319 = vpop.f32.mrb[0].mxu0
    %v320 = vadd.f32 0.0, %v319
    %v321 = vpop.f32.mrb[0].mxu0
    %v322 = vadd.f32 0.0, %v321
    %323 = vmatprep.mubr.f32.mxu0 0.0
    %324 = vmatmul.mubr.f32.gmra.mrb[0].mxu0 %v188
    %v325 = vpop.f32.mrb[0].mxu0
    %v326 = vadd.f32 0.0, %v325
    %v327 = vpop.f32.mrb[0].mxu0
    %v328 = vadd.f32 0.0, %v327
    %329 = vmatprep.mubr.f32.mxu0 0.0
    %330 = vmatmul.mubr.f32.gmra.mrb[0].mxu0 %v191
    %v331 = vpop.f32.mrb[0].mxu0
    %v332 = vadd.f32 0.0, %v331
    %v333 = vpop.f32.mrb[0].mxu0
    %v334 = vadd.f32 0.0, %v333
    %335 = vmatprep.mubr.f32.mxu0 0.0
    %336 = vmatmul.mubr.f32.gmra.mrb[0].mxu0 %v194
    %v337 = vpop.f32.mrb[0].mxu0
    %v338 = vadd.f32 0.0, %v337
    %v339 = vpop.f32.mrb[0].mxu0
    %v340 = vadd.f32 0.0, %v339
    %341 = vmatprep.mubr.f32.mxu0 0.0
    %342 = vmatmul.mubr.f32.gmra.mrb[0].mxu0 %v197
    %v343 = vpop.f32.mrb[0].mxu0
    %v344 = vadd.f32 0.0, %v343
    %v345 = vpop.f32.mrb[0].mxu0
    %v346 = vadd.f32 0.0, %v345
    %347 = vdwg.mxu0
    %348 = vmatprep.subr.mxu0 %v119
    %349 = vmatpush1.msra.mxu0 %v118
    %350 = vmatprep.subr.mxu0 %v124
    %351 = vmatpush1.msra.mxu0 %v123
    %352 = vmatprep.subr.mxu0 %v129
    %353 = vmatpush1.msra.mxu0 %v128
    %354 = vmatprep.subr.mxu0 %v134
    %355 = vmatpush1.msra.mxu0 %v133
    %356 = vmatprep.subr.mxu0 %v139
    %357 = vmatpush1.msra.mxu0 %v138
    %358 = vmatprep.subr.mxu0 %v144
    %359 = vmatpush1.msra.mxu0 %v143
    %360 = vmatprep.subr.mxu0 %v149
    %361 = vmatpush1.msra.mxu0 %v148
    %362 = vmatprep.subr.mxu0 %v154
    %363 = vmatpush1.msra.mxu0 %v153
    %364 = vmatprep.subr.mxu0 0.0
    %365 = vmatpush1.msra.mxu0 0.0
    %366 = vmatprep.subr.mxu0 0.0
    %367 = vmatpush1.msra.mxu0 0.0
    %368 = vmatprep.subr.mxu0 0.0
    %369 = vmatpush1.msra.mxu0 0.0
    %370 = vmatprep.subr.mxu0 0.0
    %371 = vmatpush1.msra.mxu0 0.0
    %372 = vmatprep.subr.mxu0 0.0
    %373 = vmatpush1.msra.mxu0 0.0
    %374 = vmatprep.subr.mxu0 0.0
    %375 = vmatpush1.msra.mxu0 0.0
    %376 = vmatprep.subr.mxu0 0.0
    %377 = vmatpush1.msra.mxu0 0.0
    %378 = vmatprep.subr.mxu0 0.0
    %379 = vmatpush1.msra.mxu0 0.0
    %380 = vmatprep.subr.mxu0 0.0
    %381 = vmatpush1.msra.mxu0 0.0
    %382 = vmatprep.subr.mxu0 0.0
    %383 = vmatpush1.msra.mxu0 0.0
    %384 = vmatprep.subr.mxu0 0.0
    %385 = vmatpush1.msra.mxu0 0.0
    %386 = vmatprep.subr.mxu0 0.0
    %387 = vmatpush1.msra.mxu0 0.0
    %388 = vmatprep.subr.mxu0 0.0
    %389 = vmatpush1.msra.mxu0 0.0
    %390 = vmatprep.subr.mxu0 0.0
    %391 = vmatpush1.msra.mxu0 0.0
    %392 = vmatprep.subr.mxu0 0.0
    %393 = vmatpush1.msra.mxu0 0.0
    %394 = vmatprep.subr.mxu0 0.0
    %395 = vmatpush1.msra.mxu0 0.0
    %396 = vmatprep.subr.mxu0 0.0
    %397 = vmatpush1.msra.mxu0 0.0
    %398 = vmatprep.subr.mxu0 0.0
    %399 = vmatpush1.msra.mxu0 0.0
    %400 = vmatprep.subr.mxu0 0.0
    %401 = vmatpush1.msra.mxu0 0.0
    %402 = vmatprep.subr.mxu0 0.0
    %403 = vmatpush1.msra.mxu0 0.0
    %404 = vmatprep.subr.mxu0 0.0
    %405 = vmatpush1.msra.mxu0 0.0
    %406 = vmatprep.subr.mxu0 0.0
    %407 = vmatpush1.msra.mxu0 0.0
    %408 = vmatprep.subr.mxu0 0.0
    %409 = vmatpush1.msra.mxu0 0.0
    %410 = vmatprep.subr.mxu0 0.0
    %411 = vmatpush1.msra.mxu0 0.0
    %412 = vmatprep.mubr.f32.mxu0 0.0
    %413 = vmatmul.mubr.f32.gmra.mrb[0].mxu0 %v158
    %v414 = vpop.f32.mrb[0].mxu0
    %v415 = vadd.f32 0.0, %v414
    %v416 = vpop.f32.mrb[0].mxu0
    %v417 = vadd.f32 0.0, %v416
    %418 = vmatprep.mubr.f32.mxu0 0.0
    %419 = vmatmul.mubr.f32.gmra.mrb[0].mxu0 %v161
    %v420 = vpop.f32.mrb[0].mxu0
    %v421 = vadd.f32 0.0, %v420
    %v422 = vpop.f32.mrb[0].mxu0
    %v423 = vadd.f32 0.0, %v422
    %424 = vmatprep.mubr.f32.mxu0 0.0
    %425 = vmatmul.mubr.f32.gmra.mrb[0].mxu0 %v164
    %v426 = vpop.f32.mrb[0].mxu0
    %v427 = vadd.f32 0.0, %v426
    %v428 = vpop.f32.mrb[0].mxu0
    %v429 = vadd.f32 0.0, %v428
    %430 = vmatprep.mubr.f32.mxu0 0.0
    %431 = vmatmul.mubr.f32.gmra.mrb[0].mxu0 %v167
    %v432 = vpop.f32.mrb[0].mxu0
    %v433 = vadd.f32 0.0, %v432
    %v434 = vpop.f32.mrb[0].mxu0
    %v435 = vadd.f32 0.0, %v434
    %436 = vmatprep.mubr.f32.mxu0 0.0
    %437 = vmatmul.mubr.f32.gmra.mrb[0].mxu0 %v170
    %v438 = vpop.f32.mrb[0].mxu0
    %v439 = vadd.f32 0.0, %v438
    %v440 = vpop.f32.mrb[0].mxu0
    %v441 = vadd.f32 0.0, %v440
    %442 = vmatprep.mubr.f32.mxu0 0.0
    %443 = vmatmul.mubr.f32.gmra.mrb[0].mxu0 %v173
    %v444 = vpop.f32.mrb[0].mxu0
    %v445 = vadd.f32 0.0, %v444
    %v446 = vpop.f32.mrb[0].mxu0
    %v447 = vadd.f32 0.0, %v446
    %448 = vmatprep.mubr.f32.mxu0 0.0
    %449 = vmatmul.mubr.f32.gmra.mrb[0].mxu0 %v176
    %v450 = vpop.f32.mrb[0].mxu0
    %v451 = vadd.f32 0.0, %v450
    %v452 = vpop.f32.mrb[0].mxu0
    %v453 = vadd.f32 0.0, %v452
    %454 = vmatprep.mubr.f32.mxu0 0.0
    %455 = vmatmul.mubr.f32.gmra.mrb[0].mxu0 %v179
    %v456 = vpop.f32.mrb[0].mxu0
    %v457 = vadd.f32 0.0, %v456
    %v458 = vpop.f32.mrb[0].mxu0
    %v459 = vadd.f32 0.0, %v458
    %460 = vmatprep.mubr.f32.mxu0 0.0
    %461 = vmatmul.mubr.f32.gmra.mrb[0].mxu0 %v182
    %v462 = vpop.f32.mrb[0].mxu0
    %v463 = vadd.f32 0.0, %v462
    %v464 = vpop.f32.mrb[0].mxu0
    %v465 = vadd.f32 0.0, %v464
    %466 = vmatprep.mubr.f32.mxu0 0.0
    %467 = vmatmul.mubr.f32.gmra.mrb[0].mxu0 %v185
    %v468 = vpop.f32.mrb[0].mxu0
    %v469 = vadd.f32 0.0, %v468
    %v470 = vpop.f32.mrb[0].mxu0
    %v471 = vadd.f32 0.0, %v470
    %472 = vmatprep.mubr.f32.mxu0 0.0
    %473 = vmatmul.mubr.f32.gmra.mrb[0].mxu0 %v188
    %v474 = vpop.f32.mrb[0].mxu0
    %v475 = vadd.f32 0.0, %v474
    %v476 = vpop.f32.mrb[0].mxu0
    %v477 = vadd.f32 0.0, %v476
    %478 = vmatprep.mubr.f32.mxu0 0.0
    %479 = vmatmul.mubr.f32.gmra.mrb[0].mxu0 %v191
    %v480 = vpop.f32.mrb[0].mxu0
    %v481 = vadd.f32 0.0, %v480
    %v482 = vpop.f32.mrb[0].mxu0
    %v483 = vadd.f32 0.0, %v482
    %484 = vmatprep.mubr.f32.mxu0 0.0
    %485 = vmatmul.mubr.f32.gmra.mrb[0].mxu0 %v194
    %v486 = vpop.f32.mrb[0].mxu0
    %v487 = vadd.f32 0.0, %v486
    %v488 = vpop.f32.mrb[0].mxu0
    %v489 = vadd.f32 0.0, %v488
    %490 = vmatprep.mubr.f32.mxu0 0.0
    %491 = vmatmul.mubr.f32.gmra.mrb[0].mxu0 %v197
    %v492 = vpop.f32.mrb[0].mxu0
    %v493 = vadd.f32 0.0, %v492
    %v494 = vpop.f32.mrb[0].mxu0
    %v495 = vadd.f32 0.0, %v494
    %496 = vdwg.mxu0
    %497 = vmatprep.subr.mxu0 0.0
    %498 = vmatpush1.msra.mxu0 %v120
    %499 = vmatprep.subr.mxu0 0.0
    %500 = vmatpush1.msra.mxu0 %v125
    %501 = vmatprep.subr.mxu0 0.0
    %502 = vmatpush1.msra.mxu0 %v130
    %503 = vmatprep.subr.mxu0 0.0
    %504 = vmatpush1.msra.mxu0 %v135
    %505 = vmatprep.subr.mxu0 0.0
    %506 = vmatpush1.msra.mxu0 %v140
    %507 = vmatprep.subr.mxu0 0.0
    %508 = vmatpush1.msra.mxu0 %v145
    %509 = vmatprep.subr.mxu0 0.0
    %510 = vmatpush1.msra.mxu0 %v150
    %511 = vmatprep.subr.mxu0 0.0
    %512 = vmatpush1.msra.mxu0 %v155
    %513 = vmatprep.subr.mxu0 0.0
    %514 = vmatpush1.msra.mxu0 0.0
    %515 = vmatprep.subr.mxu0 0.0
    %516 = vmatpush1.msra.mxu0 0.0
    %517 = vmatprep.subr.mxu0 0.0
    %518 = vmatpush1.msra.mxu0 0.0
    %519 = vmatprep.subr.mxu0 0.0
    %520 = vmatpush1.msra.mxu0 0.0
    %521 = vmatprep.subr.mxu0 0.0
    %522 = vmatpush1.msra.mxu0 0.0
    %523 = vmatprep.subr.mxu0 0.0
    %524 = vmatpush1.msra.mxu0 0.0
    %525 = vmatprep.subr.mxu0 0.0
    %526 = vmatpush1.msra.mxu0 0.0
    %527 = vmatprep.subr.mxu0 0.0
    %528 = vmatpush1.msra.mxu0 0.0
    %529 = vmatprep.subr.mxu0 0.0
    %530 = vmatpush1.msra.mxu0 0.0
    %531 = vmatprep.subr.mxu0 0.0
    %532 = vmatpush1.msra.mxu0 0.0
    %533 = vmatprep.subr.mxu0 0.0
    %534 = vmatpush1.msra.mxu0 0.0
    %535 = vmatprep.subr.mxu0 0.0
    %536 = vmatpush1.msra.mxu0 0.0
    %537 = vmatprep.subr.mxu0 0.0
    %538 = vmatpush1.msra.mxu0 0.0
    %539 = vmatprep.subr.mxu0 0.0
    %540 = vmatpush1.msra.mxu0 0.0
    %541 = vmatprep.subr.mxu0 0.0
    %542 = vmatpush1.msra.mxu0 0.0
    %543 = vmatprep.subr.mxu0 0.0
    %544 = vmatpush1.msra.mxu0 0.0
    %545 = vmatprep.subr.mxu0 0.0
    %546 = vmatpush1.msra.mxu0 0.0
    %547 = vmatprep.subr.mxu0 0.0
    %548 = vmatpush1.msra.mxu0 0.0
    %549 = vmatprep.subr.mxu0 0.0
    %550 = vmatpush1.msra.mxu0 0.0
    %551 = vmatprep.subr.mxu0 0.0
    %552 = vmatpush1.msra.mxu0 0.0
    %553 = vmatprep.subr.mxu0 0.0
    %554 = vmatpush1.msra.mxu0 0.0
    %555 = vmatprep.subr.mxu0 0.0
    %556 = vmatpush1.msra.mxu0 0.0
    %557 = vmatprep.subr.mxu0 0.0
    %558 = vmatpush1.msra.mxu0 0.0
    %559 = vmatprep.subr.mxu0 0.0
    %560 = vmatpush1.msra.mxu0 0.0
    %561 = vmatprep.mubr.f32.mxu0 0.0
    %562 = vmatmul.mubr.f32.gmra.mrb[0].mxu0 %v158
    %v563 = vpop.f32.mrb[0].mxu0
    %v564 = vadd.f32 0.0, %v563
    %v565 = vpop.f32.mrb[0].mxu0
    %566 = vmatprep.mubr.f32.mxu0 0.0
    %567 = vmatmul.mubr.f32.gmra.mrb[0].mxu0 %v161
    %v568 = vpop.f32.mrb[0].mxu0
    %v569 = vadd.f32 0.0, %v568
    %v570 = vpop.f32.mrb[0].mxu0
    %571 = vmatprep.mubr.f32.mxu0 0.0
    %572 = vmatmul.mubr.f32.gmra.mrb[0].mxu0 %v164
    %v573 = vpop.f32.mrb[0].mxu0
    %v574 = vadd.f32 0.0, %v573
    %v575 = vpop.f32.mrb[0].mxu0
    %576 = vmatprep.mubr.f32.mxu0 0.0
    %577 = vmatmul.mubr.f32.gmra.mrb[0].mxu0 %v167
    %v578 = vpop.f32.mrb[0].mxu0
    %v579 = vadd.f32 0.0, %v578
    %v580 = vpop.f32.mrb[0].mxu0
    %581 = vmatprep.mubr.f32.mxu0 0.0
    %582 = vmatmul.mubr.f32.gmra.mrb[0].mxu0 %v170
    %v583 = vpop.f32.mrb[0].mxu0
    %v584 = vadd.f32 0.0, %v583
    %v585 = vpop.f32.mrb[0].mxu0
    %586 = vmatprep.mubr.f32.mxu0 0.0
    %587 = vmatmul.mubr.f32.gmra.mrb[0].mxu0 %v173
    %v588 = vpop.f32.mrb[0].mxu0
    %v589 = vadd.f32 0.0, %v588
    %v590 = vpop.f32.mrb[0].mxu0
    %591 = vmatprep.mubr.f32.mxu0 0.0
    %592 = vmatmul.mubr.f32.gmra.mrb[0].mxu0 %v176
    %v593 = vpop.f32.mrb[0].mxu0
    %v594 = vadd.f32 0.0, %v593
    %v595 = vpop.f32.mrb[0].mxu0
    %596 = vmatprep.mubr.f32.mxu0 0.0
    %597 = vmatmul.mubr.f32.gmra.mrb[0].mxu0 %v179
    %v598 = vpop.f32.mrb[0].mxu0
    %v599 = vadd.f32 0.0, %v598
    %v600 = vpop.f32.mrb[0].mxu0
    %601 = vmatprep.mubr.f32.mxu0 0.0
    %602 = vmatmul.mubr.f32.gmra.mrb[0].mxu0 %v182
    %v603 = vpop.f32.mrb[0].mxu0
    %v604 = vadd.f32 0.0, %v603
    %v605 = vpop.f32.mrb[0].mxu0
    %606 = vmatprep.mubr.f32.mxu0 0.0
    %607 = vmatmul.mubr.f32.gmra.mrb[0].mxu0 %v185
    %v608 = vpop.f32.mrb[0].mxu0
    %v609 = vadd.f32 0.0, %v608
    %v610 = vpop.f32.mrb[0].mxu0
    %611 = vmatprep.mubr.f32.mxu0 0.0
    %612 = vmatmul.mubr.f32.gmra.mrb[0].mxu0 %v188
    %v613 = vpop.f32.mrb[0].mxu0
    %v614 = vadd.f32 0.0, %v613
    %v615 = vpop.f32.mrb[0].mxu0
    %616 = vmatprep.mubr.f32.mxu0 0.0
    %617 = vmatmul.mubr.f32.gmra.mrb[0].mxu0 %v191
    %v618 = vpop.f32.mrb[0].mxu0
    %v619 = vadd.f32 0.0, %v618
    %v620 = vpop.f32.mrb[0].mxu0
    %621 = vmatprep.mubr.f32.mxu0 0.0
    %622 = vmatmul.mubr.f32.gmra.mrb[0].mxu0 %v194
    %v623 = vpop.f32.mrb[0].mxu0
    %v624 = vadd.f32 0.0, %v623
    %v625 = vpop.f32.mrb[0].mxu0
    %626 = vmatprep.mubr.f32.mxu0 0.0
    %627 = vmatmul.mubr.f32.gmra.mrb[0].mxu0 %v197
    %v628 = vpop.f32.mrb[0].mxu0
    %v629 = vadd.f32 0.0, %v628
    %v630 = vpop.f32.mrb[0].mxu0
    %631 = vdwg.mxu0
    %v633 = vsel %vm156, %v60, 0
    %635 = vmatprep.subr.mxu0 %v75
    %636 = vmatpush1.msra.mxu0 %v74
    %637 = vmatprep.subr.mxu0 %v80
    %638 = vmatpush1.msra.mxu0 %v79
    %639 = vmatprep.subr.mxu0 %v85
    %640 = vmatpush1.msra.mxu0 %v84
    %641 = vmatprep.subr.mxu0 %v90
    %642 = vmatpush1.msra.mxu0 %v89
    %643 = vmatprep.subr.mxu0 %v95
    %644 = vmatpush1.msra.mxu0 %v94
    %645 = vmatprep.subr.mxu0 %v100
    %646 = vmatpush1.msra.mxu0 %v99
    %647 = vmatprep.subr.mxu0 %v105
    %648 = vmatpush1.msra.mxu0 %v104
    %649 = vmatprep.subr.mxu0 %v110
    %650 = vmatpush1.msra.mxu0 %v109
    %651 = vmatprep.subr.mxu0 0.0
    %652 = vmatpush1.msra.mxu0 0.0
    %653 = vmatprep.subr.mxu0 0.0
    %654 = vmatpush1.msra.mxu0 0.0
    %655 = vmatprep.subr.mxu0 0.0
    %656 = vmatpush1.msra.mxu0 0.0
    %657 = vmatprep.subr.mxu0 0.0
    %658 = vmatpush1.msra.mxu0 0.0
    %659 = vmatprep.subr.mxu0 0.0
    %660 = vmatpush1.msra.mxu0 0.0
    %661 = vmatprep.subr.mxu0 0.0
    %662 = vmatpush1.msra.mxu0 0.0
    %663 = vmatprep.subr.mxu0 0.0
    %664 = vmatpush1.msra.mxu0 0.0
    %665 = vmatprep.subr.mxu0 0.0
    %666 = vmatpush1.msra.mxu0 0.0
    %667 = vmatprep.subr.mxu0 0.0
    %668 = vmatpush1.msra.mxu0 0.0
    %669 = vmatprep.subr.mxu0 0.0
    %670 = vmatpush1.msra.mxu0 0.0
    %671 = vmatprep.subr.mxu0 0.0
    %672 = vmatpush1.msra.mxu0 0.0
    %673 = vmatprep.subr.mxu0 0.0
    %674 = vmatpush1.msra.mxu0 0.0
    %675 = vmatprep.subr.mxu0 0.0
    %676 = vmatpush1.msra.mxu0 0.0
    %677 = vmatprep.subr.mxu0 0.0
    %678 = vmatpush1.msra.mxu0 0.0
    %679 = vmatprep.subr.mxu0 0.0
    %680 = vmatpush1.msra.mxu0 0.0
    %681 = vmatprep.subr.mxu0 0.0
    %682 = vmatpush1.msra.mxu0 0.0
    %683 = vmatprep.subr.mxu0 0.0
    %684 = vmatpush1.msra.mxu0 0.0
    %685 = vmatprep.subr.mxu0 0.0
    %686 = vmatpush1.msra.mxu0 0.0
    %687 = vmatprep.subr.mxu0 0.0
    %688 = vmatpush1.msra.mxu0 0.0
    %689 = vmatprep.subr.mxu0 0.0
    %690 = vmatpush1.msra.mxu0 0.0
    %691 = vmatprep.subr.mxu0 0.0
    %692 = vmatpush1.msra.mxu0 0.0
    %693 = vmatprep.subr.mxu0 0.0
    %694 = vmatpush1.msra.mxu0 0.0
    %695 = vmatprep.subr.mxu0 0.0
    %696 = vmatpush1.msra.mxu0 0.0
    %697 = vmatprep.subr.mxu0 0.0
    %698 = vmatpush1.msra.mxu0 0.0
    %699 = vmatprep.mubr.f32.mxu0 0.0
    %700 = vmatmul.mubr.f32.gmra.mrb[0].mxu0 %v633
    %v701 = vpop.f32.mrb[0].mxu0
    %v702 = vadd.f32 %v266, %v701
    %v703 = vpop.f32.mrb[0].mxu0
    %v704 = vadd.f32 %v268, %v703
    %705 = vmatprep.mubr.f32.mxu0 0.0
    %706 = vmatmul.mubr.f32.gmra.mrb[0].mxu0 %v158
    %v707 = vpop.f32.mrb[0].mxu0
    %v708 = vadd.f32 %v272, %v707
    %v709 = vpop.f32.mrb[0].mxu0
    %v710 = vadd.f32 %v274, %v709
    %711 = vmatprep.mubr.f32.mxu0 0.0
    %712 = vmatmul.mubr.f32.gmra.mrb[0].mxu0 %v161
    %v713 = vpop.f32.mrb[0].mxu0
    %v714 = vadd.f32 %v278, %v713
    %v715 = vpop.f32.mrb[0].mxu0
    %v716 = vadd.f32 %v280, %v715
    %717 = vmatprep.mubr.f32.mxu0 0.0
    %718 = vmatmul.mubr.f32.gmra.mrb[0].mxu0 %v164
    %v719 = vpop.f32.mrb[0].mxu0
    %v720 = vadd.f32 %v284, %v719
    %v721 = vpop.f32.mrb[0].mxu0
    %v722 = vadd.f32 %v286, %v721
    %723 = vmatprep.mubr.f32.mxu0 0.0
    %724 = vmatmul.mubr.f32.gmra.mrb[0].mxu0 %v167
    %v725 = vpop.f32.mrb[0].mxu0
    %v726 = vadd.f32 %v290, %v725
    %v727 = vpop.f32.mrb[0].mxu0
    %v728 = vadd.f32 %v292, %v727
    %729 = vmatprep.mubr.f32.mxu0 0.0
    %730 = vmatmul.mubr.f32.gmra.mrb[0].mxu0 %v170
    %v731 = vpop.f32.mrb[0].mxu0
    %v732 = vadd.f32 %v296, %v731
    %v733 = vpop.f32.mrb[0].mxu0
    %v734 = vadd.f32 %v298, %v733
    %735 = vmatprep.mubr.f32.mxu0 0.0
    %736 = vmatmul.mubr.f32.gmra.mrb[0].mxu0 %v173
    %v737 = vpop.f32.mrb[0].mxu0
    %v738 = vadd.f32 %v302, %v737
    %v739 = vpop.f32.mrb[0].mxu0
    %v740 = vadd.f32 %v304, %v739
    %741 = vmatprep.mubr.f32.mxu0 0.0
    %742 = vmatmul.mubr.f32.gmra.mrb[0].mxu0 %v176
    %v743 = vpop.f32.mrb[0].mxu0
    %v744 = vadd.f32 %v308, %v743
    %v745 = vpop.f32.mrb[0].mxu0
    %v746 = vadd.f32 %v310, %v745
    %747 = vmatprep.mubr.f32.mxu0 0.0
    %748 = vmatmul.mubr.f32.gmra.mrb[0].mxu0 %v179
    %v749 = vpop.f32.mrb[0].mxu0
    %v750 = vadd.f32 %v314, %v749
    %v751 = vpop.f32.mrb[0].mxu0
    %v752 = vadd.f32 %v316, %v751
    %753 = vmatprep.mubr.f32.mxu0 0.0
    %754 = vmatmul.mubr.f32.gmra.mrb[0].mxu0 %v182
    %v755 = vpop.f32.mrb[0].mxu0
    %v756 = vadd.f32 %v320, %v755
    %v757 = vpop.f32.mrb[0].mxu0
    %v758 = vadd.f32 %v322, %v757
    %759 = vmatprep.mubr.f32.mxu0 0.0
    %760 = vmatmul.mubr.f32.gmra.mrb[0].mxu0 %v185
    %v761 = vpop.f32.mrb[0].mxu0
    %v762 = vadd.f32 %v326, %v761
    %v763 = vpop.f32.mrb[0].mxu0
    %v764 = vadd.f32 %v328, %v763
    %765 = vmatprep.mubr.f32.mxu0 0.0
    %766 = vmatmul.mubr.f32.gmra.mrb[0].mxu0 %v188
    %v767 = vpop.f32.mrb[0].mxu0
    %v768 = vadd.f32 %v332, %v767
    %v769 = vpop.f32.mrb[0].mxu0
    %v770 = vadd.f32 %v334, %v769
    %771 = vmatprep.mubr.f32.mxu0 0.0
    %772 = vmatmul.mubr.f32.gmra.mrb[0].mxu0 %v191
    %v773 = vpop.f32.mrb[0].mxu0
    %v774 = vadd.f32 %v338, %v773
    %v775 = vpop.f32.mrb[0].mxu0
    %v776 = vadd.f32 %v340, %v775
    %777 = vmatprep.mubr.f32.mxu0 0.0
    %778 = vmatmul.mubr.f32.gmra.mrb[0].mxu0 %v194
    %v779 = vpop.f32.mrb[0].mxu0
    %v780 = vadd.f32 %v344, %v779
    %v781 = vpop.f32.mrb[0].mxu0
    %v782 = vadd.f32 %v346, %v781
    %783 = vdwg.mxu0
    %784 = vmatprep.subr.mxu0 %v77
    %785 = vmatpush1.msra.mxu0 %v76
    %786 = vmatprep.subr.mxu0 %v82
    %787 = vmatpush1.msra.mxu0 %v81
    %788 = vmatprep.subr.mxu0 %v87
    %789 = vmatpush1.msra.mxu0 %v86
    %790 = vmatprep.subr.mxu0 %v92
    %791 = vmatpush1.msra.mxu0 %v91
    %792 = vmatprep.subr.mxu0 %v97
    %793 = vmatpush1.msra.mxu0 %v96
    %794 = vmatprep.subr.mxu0 %v102
    %795 = vmatpush1.msra.mxu0 %v101
    %796 = vmatprep.subr.mxu0 %v107
    %797 = vmatpush1.msra.mxu0 %v106
    %798 = vmatprep.subr.mxu0 %v112
    %799 = vmatpush1.msra.mxu0 %v111
    %800 = vmatprep.subr.mxu0 0.0
    %801 = vmatpush1.msra.mxu0 0.0
    %802 = vmatprep.subr.mxu0 0.0
    %803 = vmatpush1.msra.mxu0 0.0
    %804 = vmatprep.subr.mxu0 0.0
    %805 = vmatpush1.msra.mxu0 0.0
    %806 = vmatprep.subr.mxu0 0.0
    %807 = vmatpush1.msra.mxu0 0.0
    %808 = vmatprep.subr.mxu0 0.0
    %809 = vmatpush1.msra.mxu0 0.0
    %810 = vmatprep.subr.mxu0 0.0
    %811 = vmatpush1.msra.mxu0 0.0
    %812 = vmatprep.subr.mxu0 0.0
    %813 = vmatpush1.msra.mxu0 0.0
    %814 = vmatprep.subr.mxu0 0.0
    %815 = vmatpush1.msra.mxu0 0.0
    %816 = vmatprep.subr.mxu0 0.0
    %817 = vmatpush1.msra.mxu0 0.0
    %818 = vmatprep.subr.mxu0 0.0
    %819 = vmatpush1.msra.mxu0 0.0
    %820 = vmatprep.subr.mxu0 0.0
    %821 = vmatpush1.msra.mxu0 0.0
    %822 = vmatprep.subr.mxu0 0.0
    %823 = vmatpush1.msra.mxu0 0.0
    %824 = vmatprep.subr.mxu0 0.0
    %825 = vmatpush1.msra.mxu0 0.0
    %826 = vmatprep.subr.mxu0 0.0
    %827 = vmatpush1.msra.mxu0 0.0
    %828 = vmatprep.subr.mxu0 0.0
    %829 = vmatpush1.msra.mxu0 0.0
    %830 = vmatprep.subr.mxu0 0.0
    %831 = vmatpush1.msra.mxu0 0.0
    %832 = vmatprep.subr.mxu0 0.0
    %833 = vmatpush1.msra.mxu0 0.0
    %834 = vmatprep.subr.mxu0 0.0
    %835 = vmatpush1.msra.mxu0 0.0
    %836 = vmatprep.subr.mxu0 0.0
    %837 = vmatpush1.msra.mxu0 0.0
    %838 = vmatprep.subr.mxu0 0.0
    %839 = vmatpush1.msra.mxu0 0.0
    %840 = vmatprep.subr.mxu0 0.0
    %841 = vmatpush1.msra.mxu0 0.0
    %842 = vmatprep.subr.mxu0 0.0
    %843 = vmatpush1.msra.mxu0 0.0
    %844 = vmatprep.subr.mxu0 0.0
    %845 = vmatpush1.msra.mxu0 0.0
    %846 = vmatprep.subr.mxu0 0.0
    %847 = vmatpush1.msra.mxu0 0.0
    %848 = vmatprep.mubr.f32.mxu0 0.0
    %849 = vmatmul.mubr.f32.gmra.mrb[0].mxu0 %v633
    %v850 = vpop.f32.mrb[0].mxu0
    %v851 = vadd.f32 %v415, %v850
    %v852 = vpop.f32.mrb[0].mxu0
    %v853 = vadd.f32 %v417, %v852
    %854 = vmatprep.mubr.f32.mxu0 0.0
    %855 = vmatmul.mubr.f32.gmra.mrb[0].mxu0 %v158
    %v856 = vpop.f32.mrb[0].mxu0
    %v857 = vadd.f32 %v421, %v856
    %v858 = vpop.f32.mrb[0].mxu0
    %v859 = vadd.f32 %v423, %v858
    %860 = vmatprep.mubr.f32.mxu0 0.0
    %861 = vmatmul.mubr.f32.gmra.mrb[0].mxu0 %v161
    %v862 = vpop.f32.mrb[0].mxu0
    %v863 = vadd.f32 %v427, %v862
    %v864 = vpop.f32.mrb[0].mxu0
    %v865 = vadd.f32 %v429, %v864
    %866 = vmatprep.mubr.f32.mxu0 0.0
    %867 = vmatmul.mubr.f32.gmra.mrb[0].mxu0 %v164
    %v868 = vpop.f32.mrb[0].mxu0
    %v869 = vadd.f32 %v433, %v868
    %v870 = vpop.f32.mrb[0].mxu0
    %v871 = vadd.f32 %v435, %v870
    %872 = vmatprep.mubr.f32.mxu0 0.0
    %873 = vmatmul.mubr.f32.gmra.mrb[0].mxu0 %v167
    %v874 = vpop.f32.mrb[0].mxu0
    %v875 = vadd.f32 %v439, %v874
    %v876 = vpop.f32.mrb[0].mxu0
    %v877 = vadd.f32 %v441, %v876
    %878 = vmatprep.mubr.f32.mxu0 0.0
    %879 = vmatmul.mubr.f32.gmra.mrb[0].mxu0 %v170
    %v880 = vpop.f32.mrb[0].mxu0
    %v881 = vadd.f32 %v445, %v880
    %v882 = vpop.f32.mrb[0].mxu0
    %v883 = vadd.f32 %v447, %v882
    %884 = vmatprep.mubr.f32.mxu0 0.0
    %885 = vmatmul.mubr.f32.gmra.mrb[0].mxu0 %v173
    %v886 = vpop.f32.mrb[0].mxu0
    %v887 = vadd.f32 %v451, %v886
    %v888 = vpop.f32.mrb[0].mxu0
    %v889 = vadd.f32 %v453, %v888
    %890 = vmatprep.mubr.f32.mxu0 0.0
    %891 = vmatmul.mubr.f32.gmra.mrb[0].mxu0 %v176
    %v892 = vpop.f32.mrb[0].mxu0
    %v893 = vadd.f32 %v457, %v892
    %v894 = vpop.f32.mrb[0].mxu0
    %v895 = vadd.f32 %v459, %v894
    %896 = vmatprep.mubr.f32.mxu0 0.0
    %897 = vmatmul.mubr.f32.gmra.mrb[0].mxu0 %v179
    %v898 = vpop.f32.mrb[0].mxu0
    %v899 = vadd.f32 %v463, %v898
    %v900 = vpop.f32.mrb[0].mxu0
    %v901 = vadd.f32 %v465, %v900
    %902 = vmatprep.mubr.f32.mxu0 0.0
    %903 = vmatmul.mubr.f32.gmra.mrb[0].mxu0 %v182
    %v904 = vpop.f32.mrb[0].mxu0
    %v905 = vadd.f32 %v469, %v904
    %v906 = vpop.f32.mrb[0].mxu0
    %v907 = vadd.f32 %v471, %v906
    %908 = vmatprep.mubr.f32.mxu0 0.0
    %909 = vmatmul.mubr.f32.gmra.mrb[0].mxu0 %v185
    %v910 = vpop.f32.mrb[0].mxu0
    %v911 = vadd.f32 %v475, %v910
    %v912 = vpop.f32.mrb[0].mxu0
    %v913 = vadd.f32 %v477, %v912
    %914 = vmatprep.mubr.f32.mxu0 0.0
    %915 = vmatmul.mubr.f32.gmra.mrb[0].mxu0 %v188
    %v916 = vpop.f32.mrb[0].mxu0
    %v917 = vadd.f32 %v481, %v916
    %v918 = vpop.f32.mrb[0].mxu0
    %v919 = vadd.f32 %v483, %v918
    %920 = vmatprep.mubr.f32.mxu0 0.0
    %921 = vmatmul.mubr.f32.gmra.mrb[0].mxu0 %v191
    %v922 = vpop.f32.mrb[0].mxu0
    %v923 = vadd.f32 %v487, %v922
    %v924 = vpop.f32.mrb[0].mxu0
    %v925 = vadd.f32 %v489, %v924
    %926 = vmatprep.mubr.f32.mxu0 0.0
    %927 = vmatmul.mubr.f32.gmra.mrb[0].mxu0 %v194
    %v928 = vpop.f32.mrb[0].mxu0
    %v929 = vadd.f32 %v493, %v928
    %v930 = vpop.f32.mrb[0].mxu0
    %v931 = vadd.f32 %v495, %v930
    %932 = vdwg.mxu0
    %933 = vmatprep.subr.mxu0 0.0
    %934 = vmatpush1.msra.mxu0 %v78
    %935 = vmatprep.subr.mxu0 0.0
    %936 = vmatpush1.msra.mxu0 %v83
    %937 = vmatprep.subr.mxu0 0.0
    %938 = vmatpush1.msra.mxu0 %v88
    %939 = vmatprep.subr.mxu0 0.0
    %940 = vmatpush1.msra.mxu0 %v93
    %941 = vmatprep.subr.mxu0 0.0
    %942 = vmatpush1.msra.mxu0 %v98
    %943 = vmatprep.subr.mxu0 0.0
    %944 = vmatpush1.msra.mxu0 %v103
    %945 = vmatprep.subr.mxu0 0.0
    %946 = vmatpush1.msra.mxu0 %v108
    %947 = vmatprep.subr.mxu0 0.0
    %948 = vmatpush1.msra.mxu0 %v113
    %949 = vmatprep.subr.mxu0 0.0
    %950 = vmatpush1.msra.mxu0 0.0
    %951 = vmatprep.subr.mxu0 0.0
    %952 = vmatpush1.msra.mxu0 0.0
    %953 = vmatprep.subr.mxu0 0.0
    %954 = vmatpush1.msra.mxu0 0.0
    %955 = vmatprep.subr.mxu0 0.0
    %956 = vmatpush1.msra.mxu0 0.0
    %957 = vmatprep.subr.mxu0 0.0
    %958 = vmatpush1.msra.mxu0 0.0
    %959 = vmatprep.subr.mxu0 0.0
    %960 = vmatpush1.msra.mxu0 0.0
    %961 = vmatprep.subr.mxu0 0.0
    %962 = vmatpush1.msra.mxu0 0.0
    %963 = vmatprep.subr.mxu0 0.0
    %964 = vmatpush1.msra.mxu0 0.0
    %965 = vmatprep.subr.mxu0 0.0
    %966 = vmatpush1.msra.mxu0 0.0
    %967 = vmatprep.subr.mxu0 0.0
    %968 = vmatpush1.msra.mxu0 0.0
    %969 = vmatprep.subr.mxu0 0.0
    %970 = vmatpush1.msra.mxu0 0.0
    %971 = vmatprep.subr.mxu0 0.0
    %972 = vmatpush1.msra.mxu0 0.0
    %973 = vmatprep.subr.mxu0 0.0
    %974 = vmatpush1.msra.mxu0 0.0
    %975 = vmatprep.subr.mxu0 0.0
    %976 = vmatpush1.msra.mxu0 0.0
    %977 = vmatprep.subr.mxu0 0.0
    %978 = vmatpush1.msra.mxu0 0.0
    %979 = vmatprep.subr.mxu0 0.0
    %980 = vmatpush1.msra.mxu0 0.0
    %981 = vmatprep.subr.mxu0 0.0
    %982 = vmatpush1.msra.mxu0 0.0
    %983 = vmatprep.subr.mxu0 0.0
    %984 = vmatpush1.msra.mxu0 0.0
    %985 = vmatprep.subr.mxu0 0.0
    %986 = vmatpush1.msra.mxu0 0.0
    %987 = vmatprep.subr.mxu0 0.0
    %988 = vmatpush1.msra.mxu0 0.0
    %989 = vmatprep.subr.mxu0 0.0
    %990 = vmatpush1.msra.mxu0 0.0
    %991 = vmatprep.subr.mxu0 0.0
    %992 = vmatpush1.msra.mxu0 0.0
    %993 = vmatprep.subr.mxu0 0.0
    %994 = vmatpush1.msra.mxu0 0.0
    %995 = vmatprep.subr.mxu0 0.0
    %996 = vmatpush1.msra.mxu0 0.0
    %997 = vmatprep.mubr.f32.mxu0 0.0
    %998 = vmatmul.mubr.f32.gmra.mrb[0].mxu0 %v633
    %v999 = vpop.f32.mrb[0].mxu0
    %v1000 = vadd.f32 %v564, %v999
    %v1001 = vpop.f32.mrb[0].mxu0
    %1002 = vmatprep.mubr.f32.mxu0 0.0
    %1003 = vmatmul.mubr.f32.gmra.mrb[0].mxu0 %v158
    %v1004 = vpop.f32.mrb[0].mxu0
    %v1005 = vadd.f32 %v569, %v1004
    %v1006 = vpop.f32.mrb[0].mxu0
    %1007 = vmatprep.mubr.f32.mxu0 0.0
    %1008 = vmatmul.mubr.f32.gmra.mrb[0].mxu0 %v161
    %v1009 = vpop.f32.mrb[0].mxu0
    %v1010 = vadd.f32 %v574, %v1009
    %v1011 = vpop.f32.mrb[0].mxu0
    %1012 = vmatprep.mubr.f32.mxu0 0.0
    %1013 = vmatmul.mubr.f32.gmra.mrb[0].mxu0 %v164
    %v1014 = vpop.f32.mrb[0].mxu0
    %v1015 = vadd.f32 %v579, %v1014
    %v1016 = vpop.f32.mrb[0].mxu0
    %1017 = vmatprep.mubr.f32.mxu0 0.0
    %1018 = vmatmul.mubr.f32.gmra.mrb[0].mxu0 %v167
    %v1019 = vpop.f32.mrb[0].mxu0
    %v1020 = vadd.f32 %v584, %v1019
    %v1021 = vpop.f32.mrb[0].mxu0
    %1022 = vmatprep.mubr.f32.mxu0 0.0
    %1023 = vmatmul.mubr.f32.gmra.mrb[0].mxu0 %v170
    %v1024 = vpop.f32.mrb[0].mxu0
    %v1025 = vadd.f32 %v589, %v1024
    %v1026 = vpop.f32.mrb[0].mxu0
    %1027 = vmatprep.mubr.f32.mxu0 0.0
    %1028 = vmatmul.mubr.f32.gmra.mrb[0].mxu0 %v173
    %v1029 = vpop.f32.mrb[0].mxu0
    %v1030 = vadd.f32 %v594, %v1029
    %v1031 = vpop.f32.mrb[0].mxu0
    %1032 = vmatprep.mubr.f32.mxu0 0.0
    %1033 = vmatmul.mubr.f32.gmra.mrb[0].mxu0 %v176
    %v1034 = vpop.f32.mrb[0].mxu0
    %v1035 = vadd.f32 %v599, %v1034
    %v1036 = vpop.f32.mrb[0].mxu0
    %1037 = vmatprep.mubr.f32.mxu0 0.0
    %1038 = vmatmul.mubr.f32.gmra.mrb[0].mxu0 %v179
    %v1039 = vpop.f32.mrb[0].mxu0
    %v1040 = vadd.f32 %v604, %v1039
    %v1041 = vpop.f32.mrb[0].mxu0
    %1042 = vmatprep.mubr.f32.mxu0 0.0
    %1043 = vmatmul.mubr.f32.gmra.mrb[0].mxu0 %v182
    %v1044 = vpop.f32.mrb[0].mxu0
    %v1045 = vadd.f32 %v609, %v1044
    %v1046 = vpop.f32.mrb[0].mxu0
    %1047 = vmatprep.mubr.f32.mxu0 0.0
    %1048 = vmatmul.mubr.f32.gmra.mrb[0].mxu0 %v185
    %v1049 = vpop.f32.mrb[0].mxu0
    %v1050 = vadd.f32 %v614, %v1049
    %v1051 = vpop.f32.mrb[0].mxu0
    %1052 = vmatprep.mubr.f32.mxu0 0.0
    %1053 = vmatmul.mubr.f32.gmra.mrb[0].mxu0 %v188
    %v1054 = vpop.f32.mrb[0].mxu0
    %v1055 = vadd.f32 %v619, %v1054
    %v1056 = vpop.f32.mrb[0].mxu0
    %1057 = vmatprep.mubr.f32.mxu0 0.0
    %1058 = vmatmul.mubr.f32.gmra.mrb[0].mxu0 %v191
    %v1059 = vpop.f32.mrb[0].mxu0
    %v1060 = vadd.f32 %v624, %v1059
    %v1061 = vpop.f32.mrb[0].mxu0
    %1062 = vmatprep.mubr.f32.mxu0 0.0
    %1063 = vmatmul.mubr.f32.gmra.mrb[0].mxu0 %v194
    %v1064 = vpop.f32.mrb[0].mxu0
    %v1065 = vadd.f32 %v629, %v1064
    %v1066 = vpop.f32.mrb[0].mxu0
    %1067 = vdwg.mxu0
    %v1068 = vld [vmem:[%s0 + $0x10] sm:$0xff]
    %v1069 = vld [vmem:[%s0 + $0x18] sm:$0xff]
    %v1070 = vld [vmem:[%s0 + $0x20] sm:$0xff]
    %v1071 = vld [vmem:[%s0 + $0x28] sm:$0xff]
    %v1072 = vld [vmem:[%s0 + $0x30] sm:$0xff]
    %v1073 = vld [vmem:[%s0 + $0x38] sm:$0xff]
    %v1074 = vld [vmem:[%s0 + $0x40] sm:$0xff]
    %v1075 = vld [vmem:[%s0 + $0x48] sm:$0xff]
    %v1076 = vld [vmem:[%s0 + $0x50] sm:$0xff]
    %v1077 = vld [vmem:[%s0 + $0x58] sm:$0xff]
    %v1078 = vld [vmem:[%s0 + $0x60] sm:$0xff]
    %v1079 = vld [vmem:[%s0 + $0x68] sm:$0xff]
    %v1080 = vld [vmem:[%s0 + $0x70] sm:$0xff]
    %v1081 = vld [vmem:[%s0 + $0x78] sm:$0xff]
    %s1082 = scalar_lea.vmem [#allocation4], 640
    %v1083 = vld [vmem:[%s1082] sm:$0xff]
    %v1084 = vld [vmem:[%s1082 + $0x8] sm:$0xff]
    %v1085 = vld [vmem:[%s1082 + $0x10] sm:$0xff]
    %v1086 = vld [vmem:[%s1082 + $0x18] sm:$0xff]
    %v1087 = vld [vmem:[%s1082 + $0x20] sm:$0xff]
    %v1088 = vld [vmem:[%s1082 + $0x28] sm:$0xff]
    %v1089 = vld [vmem:[%s1082 + $0x30] sm:$0xff]
    %v1090 = vld [vmem:[%s1082 + $0x38] sm:$0xff]
    %v1091 = vld [vmem:[%s1082 + $0x40] sm:$0xff]
    %v1092 = vld [vmem:[%s1082 + $0x48] sm:$0xff]
    %v1093 = vld [vmem:[%s1082 + $0x50] sm:$0xff]
    %v1094 = vld [vmem:[%s1082 + $0x58] sm:$0xff]
    %v1095 = vld [vmem:[%s1082 + $0x60] sm:$0xff]
    %v1096 = vld [vmem:[%s1082 + $0x68] sm:$0xff]
    %v1097 = vld [vmem:[%s1082 + $0x70] sm:$0xff]
    %v1098 = vld [vmem:[%s1082 + $0x78] sm:$0xff]
    %v1099 = vld [vmem:[%s1082 + $0x80] sm:$0xff]
    %v1100 = vld [vmem:[%s1082 + $0x88] sm:$0xff]
    %v1101 = vld [vmem:[%s1082 + $0x90] sm:$0xff]
    %v1102 = vld [vmem:[%s1082 + $0x98] sm:$0xff]
    %v1103 = vld [vmem:[%s1082 + $0xa0] sm:$0xff]
    %v1104 = vld [vmem:[%s1082 + $0xa8] sm:$0xff]
    %v1105 = vld [vmem:[%s1082 + $0xb0] sm:$0xff]
    %v1106 = vld [vmem:[%s1082 + $0xb8] sm:$0xff]
    %v1107 = vld [vmem:[%s1082 + $0xc0] sm:$0xff]
    %v1108 = vld [vmem:[%s1082 + $0xc8] sm:$0xff]
    %v1109 = vld [vmem:[%s1082 + $0xd0] sm:$0xff]
    %v1110 = vld [vmem:[%s1082 + $0xd8] sm:$0xff]
    %v1111 = vld [vmem:[%s1082 + $0xe0] sm:$0xff]
    %v1112 = vld [vmem:[%s1082 + $0xe8] sm:$0xff]
    %v1113 = vld [vmem:[%s1082 + $0xf0] sm:$0xff]
    %v1114 = vld [vmem:[%s1082 + $0xf8] sm:$0xff]
    %v1115 = vld [vmem:[%s1082 + $0x100] sm:$0xff]
    %v1116 = vld [vmem:[%s1082 + $0x108] sm:$0xff]
    %v1117 = vld [vmem:[%s1082 + $0x110] sm:$0xff]
    %v1118 = vld [vmem:[%s1082 + $0x118] sm:$0xff]
    %v1119 = vld [vmem:[%s1082 + $0x120] sm:$0xff]
    %v1120 = vld [vmem:[%s1082 + $0x128] sm:$0xff]
    %v1121 = vld [vmem:[%s1082 + $0x130] sm:$0xff]
    %v1122 = vld [vmem:[%s1082 + $0x138] sm:$0xff]
    %v1124 = vsel %vm156, %v1068, 0
    %v1127 = vsel %vm156, %v1069, 0
    %v1130 = vsel %vm156, %v1070, 0
    %v1133 = vsel %vm156, %v1071, 0
    %v1136 = vsel %vm156, %v1072, 0
    %v1139 = vsel %vm156, %v1073, 0
    %v1142 = vsel %vm156, %v1074, 0
    %v1145 = vsel %vm156, %v1075, 0
    %v1148 = vsel %vm156, %v1076, 0
    %v1151 = vsel %vm156, %v1077, 0
    %v1154 = vsel %vm156, %v1078, 0
    %v1157 = vsel %vm156, %v1079, 0
    %v1160 = vsel %vm156, %v1080, 0
    %v1163 = vsel %vm156, %v1081, 0
    %1165 = vmatprep.subr.mxu0 %v1084
    %1166 = vmatpush1.msra.mxu0 %v1083
    %1167 = vmatprep.subr.mxu0 %v1089
    %1168 = vmatpush1.msra.mxu0 %v1088
    %1169 = vmatprep.subr.mxu0 %v1094
    %1170 = vmatpush1.msra.mxu0 %v1093
    %1171 = vmatprep.subr.mxu0 %v1099
    %1172 = vmatpush1.msra.mxu0 %v1098
    %1173 = vmatprep.subr.mxu0 %v1104
    %1174 = vmatpush1.msra.mxu0 %v1103
    %1175 = vmatprep.subr.mxu0 %v1109
    %1176 = vmatpush1.msra.mxu0 %v1108
    %1177 = vmatprep.subr.mxu0 %v1114
    %1178 = vmatpush1.msra.mxu0 %v1113
    %1179 = vmatprep.subr.mxu0 %v1119
    %1180 = vmatpush1.msra.mxu0 %v1118
    %1181 = vmatprep.subr.mxu0 0.0
    %1182 = vmatpush1.msra.mxu0 0.0
    %1183 = vmatprep.subr.mxu0 0.0
    %1184 = vmatpush1.msra.mxu0 0.0
    %1185 = vmatprep.subr.mxu0 0.0
    %1186 = vmatpush1.msra.mxu0 0.0
    %1187 = vmatprep.subr.mxu0 0.0
    %1188 = vmatpush1.msra.mxu0 0.0
    %1189 = vmatprep.subr.mxu0 0.0
    %1190 = vmatpush1.msra.mxu0 0.0
    %1191 = vmatprep.subr.mxu0 0.0
    %1192 = vmatpush1.msra.mxu0 0.0
    %1193 = vmatprep.subr.mxu0 0.0
    %1194 = vmatpush1.msra.mxu0 0.0
    %1195 = vmatprep.subr.mxu0 0.0
    %1196 = vmatpush1.msra.mxu0 0.0
    %1197 = vmatprep.subr.mxu0 0.0
    %1198 = vmatpush1.msra.mxu0 0.0
    %1199 = vmatprep.subr.mxu0 0.0
    %1200 = vmatpush1.msra.mxu0 0.0
    %1201 = vmatprep.subr.mxu0 0.0
    %1202 = vmatpush1.msra.mxu0 0.0
    %1203 = vmatprep.subr.mxu0 0.0
    %1204 = vmatpush1.msra.mxu0 0.0
    %1205 = vmatprep.subr.mxu0 0.0
    %1206 = vmatpush1.msra.mxu0 0.0
    %1207 = vmatprep.subr.mxu0 0.0
    %1208 = vmatpush1.msra.mxu0 0.0
    %1209 = vmatprep.subr.mxu0 0.0
    %1210 = vmatpush1.msra.mxu0 0.0
    %1211 = vmatprep.subr.mxu0 0.0
    %1212 = vmatpush1.msra.mxu0 0.0
    %1213 = vmatprep.subr.mxu0 0.0
    %1214 = vmatpush1.msra.mxu0 0.0
    %1215 = vmatprep.subr.mxu0 0.0
    %1216 = vmatpush1.msra.mxu0 0.0
    %1217 = vmatprep.subr.mxu0 0.0
    %1218 = vmatpush1.msra.mxu0 0.0
    %1219 = vmatprep.subr.mxu0 0.0
    %1220 = vmatpush1.msra.mxu0 0.0
    %1221 = vmatprep.subr.mxu0 0.0
    %1222 = vmatpush1.msra.mxu0 0.0
    %1223 = vmatprep.subr.mxu0 0.0
    %1224 = vmatpush1.msra.mxu0 0.0
    %1225 = vmatprep.subr.mxu0 0.0
    %1226 = vmatpush1.msra.mxu0 0.0
    %1227 = vmatprep.subr.mxu0 0.0
    %1228 = vmatpush1.msra.mxu0 0.0
    %1229 = vmatprep.mubr.f32.mxu0 0.0
    %1230 = vmatmul.mubr.f32.gmra.mrb[0].mxu0 %v1124
    %v1231 = vpop.f32.mrb[0].mxu0
    %v1232 = vadd.f32 0.0, %v1231
    %v1233 = vpop.f32.mrb[0].mxu0
    %v1234 = vadd.f32 0.0, %v1233
    %1235 = vmatprep.mubr.f32.mxu0 0.0
    %1236 = vmatmul.mubr.f32.gmra.mrb[0].mxu0 %v1127
    %v1237 = vpop.f32.mrb[0].mxu0
    %v1238 = vadd.f32 0.0, %v1237
    %v1239 = vpop.f32.mrb[0].mxu0
    %v1240 = vadd.f32 0.0, %v1239
    %1241 = vmatprep.mubr.f32.mxu0 0.0
    %1242 = vmatmul.mubr.f32.gmra.mrb[0].mxu0 %v1130
    %v1243 = vpop.f32.mrb[0].mxu0
    %v1244 = vadd.f32 0.0, %v1243
    %v1245 = vpop.f32.mrb[0].mxu0
    %v1246 = vadd.f32 0.0, %v1245
    %1247 = vmatprep.mubr.f32.mxu0 0.0
    %1248 = vmatmul.mubr.f32.gmra.mrb[0].mxu0 %v1133
    %v1249 = vpop.f32.mrb[0].mxu0
    %v1250 = vadd.f32 0.0, %v1249
    %v1251 = vpop.f32.mrb[0].mxu0
    %v1252 = vadd.f32 0.0, %v1251
    %1253 = vmatprep.mubr.f32.mxu0 0.0
    %1254 = vmatmul.mubr.f32.gmra.mrb[0].mxu0 %v1136
    %v1255 = vpop.f32.mrb[0].mxu0
    %v1256 = vadd.f32 0.0, %v1255
    %v1257 = vpop.f32.mrb[0].mxu0
    %v1258 = vadd.f32 0.0, %v1257
    %1259 = vmatprep.mubr.f32.mxu0 0.0
    %1260 = vmatmul.mubr.f32.gmra.mrb[0].mxu0 %v1139
    %v1261 = vpop.f32.mrb[0].mxu0
    %v1262 = vadd.f32 0.0, %v1261
    %v1263 = vpop.f32.mrb[0].mxu0
    %v1264 = vadd.f32 0.0, %v1263
    %1265 = vmatprep.mubr.f32.mxu0 0.0
    %1266 = vmatmul.mubr.f32.gmra.mrb[0].mxu0 %v1142
    %v1267 = vpop.f32.mrb[0].mxu0
    %v1268 = vadd.f32 0.0, %v1267
    %v1269 = vpop.f32.mrb[0].mxu0
    %v1270 = vadd.f32 0.0, %v1269
    %1271 = vmatprep.mubr.f32.mxu0 0.0
    %1272 = vmatmul.mubr.f32.gmra.mrb[0].mxu0 %v1145
    %v1273 = vpop.f32.mrb[0].mxu0
    %v1274 = vadd.f32 0.0, %v1273
    %v1275 = vpop.f32.mrb[0].mxu0
    %v1276 = vadd.f32 0.0, %v1275
    %1277 = vmatprep.mubr.f32.mxu0 0.0
    %1278 = vmatmul.mubr.f32.gmra.mrb[0].mxu0 %v1148
    %v1279 = vpop.f32.mrb[0].mxu0
    %v1280 = vadd.f32 0.0, %v1279
    %v1281 = vpop.f32.mrb[0].mxu0
    %v1282 = vadd.f32 0.0, %v1281
    %1283 = vmatprep.mubr.f32.mxu0 0.0
    %1284 = vmatmul.mubr.f32.gmra.mrb[0].mxu0 %v1151
    %v1285 = vpop.f32.mrb[0].mxu0
    %v1286 = vadd.f32 0.0, %v1285
    %v1287 = vpop.f32.mrb[0].mxu0
    %v1288 = vadd.f32 0.0, %v1287
    %1289 = vmatprep.mubr.f32.mxu0 0.0
    %1290 = vmatmul.mubr.f32.gmra.mrb[0].mxu0 %v1154
    %v1291 = vpop.f32.mrb[0].mxu0
    %v1292 = vadd.f32 0.0, %v1291
    %v1293 = vpop.f32.mrb[0].mxu0
    %v1294 = vadd.f32 0.0, %v1293
    %1295 = vmatprep.mubr.f32.mxu0 0.0
    %1296 = vmatmul.mubr.f32.gmra.mrb[0].mxu0 %v1157
    %v1297 = vpop.f32.mrb[0].mxu0
    %v1298 = vadd.f32 0.0, %v1297
    %v1299 = vpop.f32.mrb[0].mxu0
    %v1300 = vadd.f32 0.0, %v1299
    %1301 = vmatprep.mubr.f32.mxu0 0.0
    %1302 = vmatmul.mubr.f32.gmra.mrb[0].mxu0 %v1160
    %v1303 = vpop.f32.mrb[0].mxu0
    %v1304 = vadd.f32 0.0, %v1303
    %v1305 = vpop.f32.mrb[0].mxu0
    %v1306 = vadd.f32 0.0, %v1305
    %1307 = vmatprep.mubr.f32.mxu0 0.0
    %1308 = vmatmul.mubr.f32.gmra.mrb[0].mxu0 %v1163
    %v1309 = vpop.f32.mrb[0].mxu0
    %v1310 = vadd.f32 0.0, %v1309
    %v1311 = vpop.f32.mrb[0].mxu0
    %v1312 = vadd.f32 0.0, %v1311
    %1313 = vdwg.mxu0
    %1314 = vmatprep.subr.mxu0 %v1086
    %1315 = vmatpush1.msra.mxu0 %v1085
    %1316 = vmatprep.subr.mxu0 %v1091
    %1317 = vmatpush1.msra.mxu0 %v1090
    %1318 = vmatprep.subr.mxu0 %v1096
    %1319 = vmatpush1.msra.mxu0 %v1095
    %1320 = vmatprep.subr.mxu0 %v1101
    %1321 = vmatpush1.msra.mxu0 %v1100
    %1322 = vmatprep.subr.mxu0 %v1106
    %1323 = vmatpush1.msra.mxu0 %v1105
    %1324 = vmatprep.subr.mxu0 %v1111
    %1325 = vmatpush1.msra.mxu0 %v1110
    %1326 = vmatprep.subr.mxu0 %v1116
    %1327 = vmatpush1.msra.mxu0 %v1115
    %1328 = vmatprep.subr.mxu0 %v1121
    %1329 = vmatpush1.msra.mxu0 %v1120
    %1330 = vmatprep.subr.mxu0 0.0
    %1331 = vmatpush1.msra.mxu0 0.0
    %1332 = vmatprep.subr.mxu0 0.0
    %1333 = vmatpush1.msra.mxu0 0.0
    %1334 = vmatprep.subr.mxu0 0.0
    %1335 = vmatpush1.msra.mxu0 0.0
    %1336 = vmatprep.subr.mxu0 0.0
    %1337 = vmatpush1.msra.mxu0 0.0
    %1338 = vmatprep.subr.mxu0 0.0
    %1339 = vmatpush1.msra.mxu0 0.0
    %1340 = vmatprep.subr.mxu0 0.0
    %1341 = vmatpush1.msra.mxu0 0.0
    %1342 = vmatprep.subr.mxu0 0.0
    %1343 = vmatpush1.msra.mxu0 0.0
    %1344 = vmatprep.subr.mxu0 0.0
    %1345 = vmatpush1.msra.mxu0 0.0
    %1346 = vmatprep.subr.mxu0 0.0
    %1347 = vmatpush1.msra.mxu0 0.0
    %1348 = vmatprep.subr.mxu0 0.0
    %1349 = vmatpush1.msra.mxu0 0.0
    %1350 = vmatprep.subr.mxu0 0.0
    %1351 = vmatpush1.msra.mxu0 0.0
    %1352 = vmatprep.subr.mxu0 0.0
    %1353 = vmatpush1.msra.mxu0 0.0
    %1354 = vmatprep.subr.mxu0 0.0
    %1355 = vmatpush1.msra.mxu0 0.0
    %1356 = vmatprep.subr.mxu0 0.0
    %1357 = vmatpush1.msra.mxu0 0.0
    %1358 = vmatprep.subr.mxu0 0.0
    %1359 = vmatpush1.msra.mxu0 0.0
    %1360 = vmatprep.subr.mxu0 0.0
    %1361 = vmatpush1.msra.mxu0 0.0
    %1362 = vmatprep.subr.mxu0 0.0
    %1363 = vmatpush1.msra.mxu0 0.0
    %1364 = vmatprep.subr.mxu0 0.0
    %1365 = vmatpush1.msra.mxu0 0.0
    %1366 = vmatprep.subr.mxu0 0.0
    %1367 = vmatpush1.msra.mxu0 0.0
    %1368 = vmatprep.subr.mxu0 0.0
    %1369 = vmatpush1.msra.mxu0 0.0
    %1370 = vmatprep.subr.mxu0 0.0
    %1371 = vmatpush1.msra.mxu0 0.0
    %1372 = vmatprep.subr.mxu0 0.0
    %1373 = vmatpush1.msra.mxu0 0.0
    %1374 = vmatprep.subr.mxu0 0.0
    %1375 = vmatpush1.msra.mxu0 0.0
    %1376 = vmatprep.subr.mxu0 0.0
    %1377 = vmatpush1.msra.mxu0 0.0
    %1378 = vmatprep.mubr.f32.mxu0 0.0
    %1379 = vmatmul.mubr.f32.gmra.mrb[0].mxu0 %v1124
    %v1380 = vpop.f32.mrb[0].mxu0
    %v1381 = vadd.f32 0.0, %v1380
    %v1382 = vpop.f32.mrb[0].mxu0
    %v1383 = vadd.f32 0.0, %v1382
    %1384 = vmatprep.mubr.f32.mxu0 0.0
    %1385 = vmatmul.mubr.f32.gmra.mrb[0].mxu0 %v1127
    %v1386 = vpop.f32.mrb[0].mxu0
    %v1387 = vadd.f32 0.0, %v1386
    %v1388 = vpop.f32.mrb[0].mxu0
    %v1389 = vadd.f32 0.0, %v1388
    %1390 = vmatprep.mubr.f32.mxu0 0.0
    %1391 = vmatmul.mubr.f32.gmra.mrb[0].mxu0 %v1130
    %v1392 = vpop.f32.mrb[0].mxu0
    %v1393 = vadd.f32 0.0, %v1392
    %v1394 = vpop.f32.mrb[0].mxu0
    %v1395 = vadd.f32 0.0, %v1394
    %1396 = vmatprep.mubr.f32.mxu0 0.0
    %1397 = vmatmul.mubr.f32.gmra.mrb[0].mxu0 %v1133
    %v1398 = vpop.f32.mrb[0].mxu0
    %v1399 = vadd.f32 0.0, %v1398
    %v1400 = vpop.f32.mrb[0].mxu0
    %v1401 = vadd.f32 0.0, %v1400
    %1402 = vmatprep.mubr.f32.mxu0 0.0
    %1403 = vmatmul.mubr.f32.gmra.mrb[0].mxu0 %v1136
    %v1404 = vpop.f32.mrb[0].mxu0
    %v1405 = vadd.f32 0.0, %v1404
    %v1406 = vpop.f32.mrb[0].mxu0
    %v1407 = vadd.f32 0.0, %v1406
    %1408 = vmatprep.mubr.f32.mxu0 0.0
    %1409 = vmatmul.mubr.f32.gmra.mrb[0].mxu0 %v1139
    %v1410 = vpop.f32.mrb[0].mxu0
    %v1411 = vadd.f32 0.0, %v1410
    %v1412 = vpop.f32.mrb[0].mxu0
    %v1413 = vadd.f32 0.0, %v1412
    %1414 = vmatprep.mubr.f32.mxu0 0.0
    %1415 = vmatmul.mubr.f32.gmra.mrb[0].mxu0 %v1142
    %v1416 = vpop.f32.mrb[0].mxu0
    %v1417 = vadd.f32 0.0, %v1416
    %v1418 = vpop.f32.mrb[0].mxu0
    %v1419 = vadd.f32 0.0, %v1418
    %1420 = vmatprep.mubr.f32.mxu0 0.0
    %1421 = vmatmul.mubr.f32.gmra.mrb[0].mxu0 %v1145
    %v1422 = vpop.f32.mrb[0].mxu0
    %v1423 = vadd.f32 0.0, %v1422
    %v1424 = vpop.f32.mrb[0].mxu0
    %v1425 = vadd.f32 0.0, %v1424
    %1426 = vmatprep.mubr.f32.mxu0 0.0
    %1427 = vmatmul.mubr.f32.gmra.mrb[0].mxu0 %v1148
    %v1428 = vpop.f32.mrb[0].mxu0
    %v1429 = vadd.f32 0.0, %v1428
    %v1430 = vpop.f32.mrb[0].mxu0
    %v1431 = vadd.f32 0.0, %v1430
    %1432 = vmatprep.mubr.f32.mxu0 0.0
    %1433 = vmatmul.mubr.f32.gmra.mrb[0].mxu0 %v1151
    %v1434 = vpop.f32.mrb[0].mxu0
    %v1435 = vadd.f32 0.0, %v1434
    %v1436 = vpop.f32.mrb[0].mxu0
    %v1437 = vadd.f32 0.0, %v1436
    %1438 = vmatprep.mubr.f32.mxu0 0.0
    %1439 = vmatmul.mubr.f32.gmra.mrb[0].mxu0 %v1154
    %v1440 = vpop.f32.mrb[0].mxu0
    %v1441 = vadd.f32 0.0, %v1440
    %v1442 = vpop.f32.mrb[0].mxu0
    %v1443 = vadd.f32 0.0, %v1442
    %1444 = vmatprep.mubr.f32.mxu0 0.0
    %1445 = vmatmul.mubr.f32.gmra.mrb[0].mxu0 %v1157
    %v1446 = vpop.f32.mrb[0].mxu0
    %v1447 = vadd.f32 0.0, %v1446
    %v1448 = vpop.f32.mrb[0].mxu0
    %v1449 = vadd.f32 0.0, %v1448
    %1450 = vmatprep.mubr.f32.mxu0 0.0
    %1451 = vmatmul.mubr.f32.gmra.mrb[0].mxu0 %v1160
    %v1452 = vpop.f32.mrb[0].mxu0
    %v1453 = vadd.f32 0.0, %v1452
    %v1454 = vpop.f32.mrb[0].mxu0
    %v1455 = vadd.f32 0.0, %v1454
    %1456 = vmatprep.mubr.f32.mxu0 0.0
    %1457 = vmatmul.mubr.f32.gmra.mrb[0].mxu0 %v1163
    %v1458 = vpop.f32.mrb[0].mxu0
    %v1459 = vadd.f32 0.0, %v1458
    %v1460 = vpop.f32.mrb[0].mxu0
    %v1461 = vadd.f32 0.0, %v1460
    %1462 = vdwg.mxu0
    %1463 = vmatprep.subr.mxu0 0.0
    %1464 = vmatpush1.msra.mxu0 %v1087
    %1465 = vmatprep.subr.mxu0 0.0
    %1466 = vmatpush1.msra.mxu0 %v1092
    %1467 = vmatprep.subr.mxu0 0.0
    %1468 = vmatpush1.msra.mxu0 %v1097
    %1469 = vmatprep.subr.mxu0 0.0
    %1470 = vmatpush1.msra.mxu0 %v1102
    %1471 = vmatprep.subr.mxu0 0.0
    %1472 = vmatpush1.msra.mxu0 %v1107
    %1473 = vmatprep.subr.mxu0 0.0
    %1474 = vmatpush1.msra.mxu0 %v1112
    %1475 = vmatprep.subr.mxu0 0.0
    %1476 = vmatpush1.msra.mxu0 %v1117
    %1477 = vmatprep.subr.mxu0 0.0
    %1478 = vmatpush1.msra.mxu0 %v1122
    %1479 = vmatprep.subr.mxu0 0.0
    %1480 = vmatpush1.msra.mxu0 0.0
    %1481 = vmatprep.subr.mxu0 0.0
    %1482 = vmatpush1.msra.mxu0 0.0
    %1483 = vmatprep.subr.mxu0 0.0
    %1484 = vmatpush1.msra.mxu0 0.0
    %1485 = vmatprep.subr.mxu0 0.0
    %1486 = vmatpush1.msra.mxu0 0.0
    %1487 = vmatprep.subr.mxu0 0.0
    %1488 = vmatpush1.msra.mxu0 0.0
    %1489 = vmatprep.subr.mxu0 0.0
    %1490 = vmatpush1.msra.mxu0 0.0
    %1491 = vmatprep.subr.mxu0 0.0
    %1492 = vmatpush1.msra.mxu0 0.0
    %1493 = vmatprep.subr.mxu0 0.0
    %1494 = vmatpush1.msra.mxu0 0.0
    %1495 = vmatprep.subr.mxu0 0.0
    %1496 = vmatpush1.msra.mxu0 0.0
    %1497 = vmatprep.subr.mxu0 0.0
    %1498 = vmatpush1.msra.mxu0 0.0
    %1499 = vmatprep.subr.mxu0 0.0
    %1500 = vmatpush1.msra.mxu0 0.0
    %1501 = vmatprep.subr.mxu0 0.0
    %1502 = vmatpush1.msra.mxu0 0.0
    %1503 = vmatprep.subr.mxu0 0.0
    %1504 = vmatpush1.msra.mxu0 0.0
    %1505 = vmatprep.subr.mxu0 0.0
    %1506 = vmatpush1.msra.mxu0 0.0
    %1507 = vmatprep.subr.mxu0 0.0
    %1508 = vmatpush1.msra.mxu0 0.0
    %1509 = vmatprep.subr.mxu0 0.0
    %1510 = vmatpush1.msra.mxu0 0.0
    %1511 = vmatprep.subr.mxu0 0.0
    %1512 = vmatpush1.msra.mxu0 0.0
    %1513 = vmatprep.subr.mxu0 0.0
    %1514 = vmatpush1.msra.mxu0 0.0
    %1515 = vmatprep.subr.mxu0 0.0
    %1516 = vmatpush1.msra.mxu0 0.0
    %1517 = vmatprep.subr.mxu0 0.0
    %1518 = vmatpush1.msra.mxu0 0.0
    %1519 = vmatprep.subr.mxu0 0.0
    %1520 = vmatpush1.msra.mxu0 0.0
    %1521 = vmatprep.subr.mxu0 0.0
    %1522 = vmatpush1.msra.mxu0 0.0
    %1523 = vmatprep.subr.mxu0 0.0
    %1524 = vmatpush1.msra.mxu0 0.0
    %1525 = vmatprep.subr.mxu0 0.0
    %1526 = vmatpush1.msra.mxu0 0.0
    %1527 = vmatprep.mubr.f32.mxu0 0.0
    %1528 = vmatmul.mubr.f32.gmra.mrb[0].mxu0 %v1124
    %v1529 = vpop.f32.mrb[0].mxu0
    %v1530 = vadd.f32 0.0, %v1529
    %v1531 = vpop.f32.mrb[0].mxu0
    %1532 = vmatprep.mubr.f32.mxu0 0.0
    %1533 = vmatmul.mubr.f32.gmra.mrb[0].mxu0 %v1127
    %v1534 = vpop.f32.mrb[0].mxu0
    %v1535 = vadd.f32 0.0, %v1534
    %v1536 = vpop.f32.mrb[0].mxu0
    %1537 = vmatprep.mubr.f32.mxu0 0.0
    %1538 = vmatmul.mubr.f32.gmra.mrb[0].mxu0 %v1130
    %v1539 = vpop.f32.mrb[0].mxu0
    %v1540 = vadd.f32 0.0, %v1539
    %v1541 = vpop.f32.mrb[0].mxu0
    %1542 = vmatprep.mubr.f32.mxu0 0.0
    %1543 = vmatmul.mubr.f32.gmra.mrb[0].mxu0 %v1133
    %v1544 = vpop.f32.mrb[0].mxu0
    %v1545 = vadd.f32 0.0, %v1544
    %v1546 = vpop.f32.mrb[0].mxu0
    %1547 = vmatprep.mubr.f32.mxu0 0.0
    %1548 = vmatmul.mubr.f32.gmra.mrb[0].mxu0 %v1136
    %v1549 = vpop.f32.mrb[0].mxu0
    %v1550 = vadd.f32 0.0, %v1549
    %v1551 = vpop.f32.mrb[0].mxu0
    %1552 = vmatprep.mubr.f32.mxu0 0.0
    %1553 = vmatmul.mubr.f32.gmra.mrb[0].mxu0 %v1139
    %v1554 = vpop.f32.mrb[0].mxu0
    %v1555 = vadd.f32 0.0, %v1554
    %v1556 = vpop.f32.mrb[0].mxu0
    %1557 = vmatprep.mubr.f32.mxu0 0.0
    %1558 = vmatmul.mubr.f32.gmra.mrb[0].mxu0 %v1142
    %v1559 = vpop.f32.mrb[0].mxu0
    %v1560 = vadd.f32 0.0, %v1559
    %v1561 = vpop.f32.mrb[0].mxu0
    %1562 = vmatprep.mubr.f32.mxu0 0.0
    %1563 = vmatmul.mubr.f32.gmra.mrb[0].mxu0 %v1145
    %v1564 = vpop.f32.mrb[0].mxu0
    %v1565 = vadd.f32 0.0, %v1564
    %v1566 = vpop.f32.mrb[0].mxu0
    %1567 = vmatprep.mubr.f32.mxu0 0.0
    %1568 = vmatmul.mubr.f32.gmra.mrb[0].mxu0 %v1148
    %v1569 = vpop.f32.mrb[0].mxu0
    %v1570 = vadd.f32 0.0, %v1569
    %v1571 = vpop.f32.mrb[0].mxu0
    %1572 = vmatprep.mubr.f32.mxu0 0.0
    %1573 = vmatmul.mubr.f32.gmra.mrb[0].mxu0 %v1151
    %v1574 = vpop.f32.mrb[0].mxu0
    %v1575 = vadd.f32 0.0, %v1574
    %v1576 = vpop.f32.mrb[0].mxu0
    %1577 = vmatprep.mubr.f32.mxu0 0.0
    %1578 = vmatmul.mubr.f32.gmra.mrb[0].mxu0 %v1154
    %v1579 = vpop.f32.mrb[0].mxu0
    %v1580 = vadd.f32 0.0, %v1579
    %v1581 = vpop.f32.mrb[0].mxu0
    %1582 = vmatprep.mubr.f32.mxu0 0.0
    %1583 = vmatmul.mubr.f32.gmra.mrb[0].mxu0 %v1157
    %v1584 = vpop.f32.mrb[0].mxu0
    %v1585 = vadd.f32 0.0, %v1584
    %v1586 = vpop.f32.mrb[0].mxu0
    %1587 = vmatprep.mubr.f32.mxu0 0.0
    %1588 = vmatmul.mubr.f32.gmra.mrb[0].mxu0 %v1160
    %v1589 = vpop.f32.mrb[0].mxu0
    %v1590 = vadd.f32 0.0, %v1589
    %v1591 = vpop.f32.mrb[0].mxu0
    %1592 = vmatprep.mubr.f32.mxu0 0.0
    %1593 = vmatmul.mubr.f32.gmra.mrb[0].mxu0 %v1163
    %v1594 = vpop.f32.mrb[0].mxu0
    %v1595 = vadd.f32 0.0, %v1594
    %v1596 = vpop.f32.mrb[0].mxu0
    %1597 = vdwg.mxu0
    %v1598 = vadd.f32 %v702, %v1232
    %v1599 = vadd.f32 %v704, %v1234
    %v1600 = vadd.f32 %v851, %v1381
    %v1601 = vadd.f32 %v853, %v1383
    %v1602 = vadd.f32 %v1000, %v1530
    %v1603 = vadd.f32 %v708, %v1238
    %v1604 = vadd.f32 %v710, %v1240
    %v1605 = vadd.f32 %v857, %v1387
    %v1606 = vadd.f32 %v859, %v1389
    %v1607 = vadd.f32 %v1005, %v1535
    %v1608 = vadd.f32 %v714, %v1244
    %v1609 = vadd.f32 %v716, %v1246
    %v1610 = vadd.f32 %v863, %v1393
    %v1611 = vadd.f32 %v865, %v1395
    %v1612 = vadd.f32 %v1010, %v1540
    %v1613 = vadd.f32 %v720, %v1250
    %v1614 = vadd.f32 %v722, %v1252
    %v1615 = vadd.f32 %v869, %v1399
    %v1616 = vadd.f32 %v871, %v1401
    %v1617 = vadd.f32 %v1015, %v1545
    %v1618 = vadd.f32 %v726, %v1256
    %v1619 = vadd.f32 %v728, %v1258
    %v1620 = vadd.f32 %v875, %v1405
    %v1621 = vadd.f32 %v877, %v1407
    %v1622 = vadd.f32 %v1020, %v1550
    %v1623 = vadd.f32 %v732, %v1262
    %v1624 = vadd.f32 %v734, %v1264
    %v1625 = vadd.f32 %v881, %v1411
    %v1626 = vadd.f32 %v883, %v1413
    %v1627 = vadd.f32 %v1025, %v1555
    %v1628 = vadd.f32 %v738, %v1268
    %v1629 = vadd.f32 %v740, %v1270
    %v1630 = vadd.f32 %v887, %v1417
    %v1631 = vadd.f32 %v889, %v1419
    %v1632 = vadd.f32 %v1030, %v1560
    %v1633 = vadd.f32 %v744, %v1274
    %v1634 = vadd.f32 %v746, %v1276
    %v1635 = vadd.f32 %v893, %v1423
    %v1636 = vadd.f32 %v895, %v1425
    %v1637 = vadd.f32 %v1035, %v1565
    %v1638 = vadd.f32 %v750, %v1280
    %v1639 = vadd.f32 %v752, %v1282
    %v1640 = vadd.f32 %v899, %v1429
    %v1641 = vadd.f32 %v901, %v1431
    %v1642 = vadd.f32 %v1040, %v1570
    %v1643 = vadd.f32 %v756, %v1286
    %v1644 = vadd.f32 %v758, %v1288
    %v1645 = vadd.f32 %v905, %v1435
    %v1646 = vadd.f32 %v907, %v1437
    %v1647 = vadd.f32 %v1045, %v1575
    %v1648 = vadd.f32 %v762, %v1292
    %v1649 = vadd.f32 %v764, %v1294
    %v1650 = vadd.f32 %v911, %v1441
    %v1651 = vadd.f32 %v913, %v1443
    %v1652 = vadd.f32 %v1050, %v1580
    %v1653 = vadd.f32 %v768, %v1298
    %v1654 = vadd.f32 %v770, %v1300
    %v1655 = vadd.f32 %v917, %v1447
    %v1656 = vadd.f32 %v919, %v1449
    %v1657 = vadd.f32 %v1055, %v1585
    %v1658 = vadd.f32 %v774, %v1304
    %v1659 = vadd.f32 %v776, %v1306
    %v1660 = vadd.f32 %v923, %v1453
    %v1661 = vadd.f32 %v925, %v1455
    %v1662 = vadd.f32 %v1060, %v1590
    %v1663 = vadd.f32 %v780, %v1310
    %v1664 = vadd.f32 %v782, %v1312
    %v1665 = vadd.f32 %v929, %v1459
    %v1666 = vadd.f32 %v931, %v1461
    %v1667 = vadd.f32 %v1065, %v1595
    %v1668 = vld [vmem:[%s2] sm:$0x1f]
    %v1670 = vlaneseq
    %v1671 = vshrl.u32 %v1670, 7
    %v1672 = vsub.s32 0, %v1671
    %v1673 = vrot.slane %v1668, %v1672
    %v1674 = vlaneseq
    %v1675 = vshrl.u32 %v1674, 7
    %v1676 = vsub.s32 1, %v1675
    %v1677 = vrot.slane %v1668, %v1676
    %v1678 = vlaneseq
    %v1679 = vshrl.u32 %v1678, 7
    %v1680 = vsub.s32 2, %v1679
    %v1681 = vrot.slane %v1668, %v1680
    %v1682 = vlaneseq
    %v1683 = vshrl.u32 %v1682, 7
    %v1684 = vsub.s32 3, %v1683
    %v1685 = vrot.slane %v1668, %v1684
    %v1686 = vlaneseq
    %v1687 = vshrl.u32 %v1686, 7
    %v1688 = vsub.s32 4, %v1687
    %v1689 = vrot.slane %v1668, %v1688
    %v1695 = vadd.f32 %v1598, %v1673
    %v1696 = vadd.f32 %v1599, %v1677
    %v1697 = vadd.f32 %v1600, %v1681
    %v1698 = vadd.f32 %v1601, %v1685
    %v1699 = vadd.f32 %v1602, %v1689
    %v1700 = vadd.f32 %v1603, %v1673
    %v1701 = vadd.f32 %v1604, %v1677
    %v1702 = vadd.f32 %v1605, %v1681
    %v1703 = vadd.f32 %v1606, %v1685
    %v1704 = vadd.f32 %v1607, %v1689
    %v1705 = vadd.f32 %v1608, %v1673
    %v1706 = vadd.f32 %v1609, %v1677
    %v1707 = vadd.f32 %v1610, %v1681
    %v1708 = vadd.f32 %v1611, %v1685
    %v1709 = vadd.f32 %v1612, %v1689
    %v1710 = vadd.f32 %v1613, %v1673
    %v1711 = vadd.f32 %v1614, %v1677
    %v1712 = vadd.f32 %v1615, %v1681
    %v1713 = vadd.f32 %v1616, %v1685
    %v1714 = vadd.f32 %v1617, %v1689
    %v1715 = vadd.f32 %v1618, %v1673
    %v1716 = vadd.f32 %v1619, %v1677
    %v1717 = vadd.f32 %v1620, %v1681
    %v1718 = vadd.f32 %v1621, %v1685
    %v1719 = vadd.f32 %v1622, %v1689
    %v1720 = vadd.f32 %v1623, %v1673
    %v1721 = vadd.f32 %v1624, %v1677
    %v1722 = vadd.f32 %v1625, %v1681
    %v1723 = vadd.f32 %v1626, %v1685
    %v1724 = vadd.f32 %v1627, %v1689
    %v1725 = vadd.f32 %v1628, %v1673
    %v1726 = vadd.f32 %v1629, %v1677
    %v1727 = vadd.f32 %v1630, %v1681
    %v1728 = vadd.f32 %v1631, %v1685
    %v1729 = vadd.f32 %v1632, %v1689
    %v1730 = vadd.f32 %v1633, %v1673
    %v1731 = vadd.f32 %v1634, %v1677
    %v1732 = vadd.f32 %v1635, %v1681
    %v1733 = vadd.f32 %v1636, %v1685
    %v1734 = vadd.f32 %v1637, %v1689
    %v1735 = vadd.f32 %v1638, %v1673
    %v1736 = vadd.f32 %v1639, %v1677
    %v1737 = vadd.f32 %v1640, %v1681
    %v1738 = vadd.f32 %v1641, %v1685
    %v1739 = vadd.f32 %v1642, %v1689
    %v1740 = vadd.f32 %v1643, %v1673
    %v1741 = vadd.f32 %v1644, %v1677
    %v1742 = vadd.f32 %v1645, %v1681
    %v1743 = vadd.f32 %v1646, %v1685
    %v1744 = vadd.f32 %v1647, %v1689
    %v1745 = vadd.f32 %v1648, %v1673
    %v1746 = vadd.f32 %v1649, %v1677
    %v1747 = vadd.f32 %v1650, %v1681
    %v1748 = vadd.f32 %v1651, %v1685
    %v1749 = vadd.f32 %v1652, %v1689
    %v1750 = vadd.f32 %v1653, %v1673
    %v1751 = vadd.f32 %v1654, %v1677
    %v1752 = vadd.f32 %v1655, %v1681
    %v1753 = vadd.f32 %v1656, %v1685
    %v1754 = vadd.f32 %v1657, %v1689
    %v1755 = vadd.f32 %v1658, %v1673
    %v1756 = vadd.f32 %v1659, %v1677
    %v1757 = vadd.f32 %v1660, %v1681
    %v1758 = vadd.f32 %v1661, %v1685
    %v1759 = vadd.f32 %v1662, %v1689
    %v1760 = vadd.f32 %v1663, %v1673
    %v1761 = vadd.f32 %v1664, %v1677
    %v1762 = vadd.f32 %v1665, %v1681
    %v1763 = vadd.f32 %v1666, %v1685
    %v1764 = vadd.f32 %v1667, %v1689
    %v1765 = vmax.f32 %v1695, 0.0
    %v1766 = vmax.f32 %v1696, 0.0
    %v1767 = vmax.f32 %v1697, 0.0
    %v1768 = vmax.f32 %v1698, 0.0
    %v1769 = vmax.f32 %v1699, 0.0
    %v1770 = vmax.f32 %v1700, 0.0
    %v1771 = vmax.f32 %v1701, 0.0
    %v1772 = vmax.f32 %v1702, 0.0
    %v1773 = vmax.f32 %v1703, 0.0
    %v1774 = vmax.f32 %v1704, 0.0
    %v1775 = vmax.f32 %v1705, 0.0
    %v1776 = vmax.f32 %v1706, 0.0
    %v1777 = vmax.f32 %v1707, 0.0
    %v1778 = vmax.f32 %v1708, 0.0
    %v1779 = vmax.f32 %v1709, 0.0
    %v1780 = vmax.f32 %v1710, 0.0
    %v1781 = vmax.f32 %v1711, 0.0
    %v1782 = vmax.f32 %v1712, 0.0
    %v1783 = vmax.f32 %v1713, 0.0
    %v1784 = vmax.f32 %v1714, 0.0
    %v1785 = vmax.f32 %v1715, 0.0
    %v1786 = vmax.f32 %v1716, 0.0
    %v1787 = vmax.f32 %v1717, 0.0
    %v1788 = vmax.f32 %v1718, 0.0
    %v1789 = vmax.f32 %v1719, 0.0
    %v1790 = vmax.f32 %v1720, 0.0
    %v1791 = vmax.f32 %v1721, 0.0
    %v1792 = vmax.f32 %v1722, 0.0
    %v1793 = vmax.f32 %v1723, 0.0
    %v1794 = vmax.f32 %v1724, 0.0
    %v1795 = vmax.f32 %v1725, 0.0
    %v1796 = vmax.f32 %v1726, 0.0
    %v1797 = vmax.f32 %v1727, 0.0
    %v1798 = vmax.f32 %v1728, 0.0
    %v1799 = vmax.f32 %v1729, 0.0
    %v1800 = vmax.f32 %v1730, 0.0
    %v1801 = vmax.f32 %v1731, 0.0
    %v1802 = vmax.f32 %v1732, 0.0
    %v1803 = vmax.f32 %v1733, 0.0
    %v1804 = vmax.f32 %v1734, 0.0
    %v1805 = vmax.f32 %v1735, 0.0
    %v1806 = vmax.f32 %v1736, 0.0
    %v1807 = vmax.f32 %v1737, 0.0
    %v1808 = vmax.f32 %v1738, 0.0
    %v1809 = vmax.f32 %v1739, 0.0
    %v1810 = vmax.f32 %v1740, 0.0
    %v1811 = vmax.f32 %v1741, 0.0
    %v1812 = vmax.f32 %v1742, 0.0
    %v1813 = vmax.f32 %v1743, 0.0
    %v1814 = vmax.f32 %v1744, 0.0
    %v1815 = vmax.f32 %v1745, 0.0
    %v1816 = vmax.f32 %v1746, 0.0
    %v1817 = vmax.f32 %v1747, 0.0
    %v1818 = vmax.f32 %v1748, 0.0
    %v1819 = vmax.f32 %v1749, 0.0
    %v1820 = vmax.f32 %v1750, 0.0
    %v1821 = vmax.f32 %v1751, 0.0
    %v1822 = vmax.f32 %v1752, 0.0
    %v1823 = vmax.f32 %v1753, 0.0
    %v1824 = vmax.f32 %v1754, 0.0
    %v1825 = vmax.f32 %v1755, 0.0
    %v1826 = vmax.f32 %v1756, 0.0
    %v1827 = vmax.f32 %v1757, 0.0
    %v1828 = vmax.f32 %v1758, 0.0
    %v1829 = vmax.f32 %v1759, 0.0
    %v1830 = vmax.f32 %v1760, 0.0
    %v1831 = vmax.f32 %v1761, 0.0
    %v1832 = vmax.f32 %v1762, 0.0
    %v1833 = vmax.f32 %v1763, 0.0
    %v1834 = vmax.f32 %v1764, 0.0
    %1835 = vst [vmem:[#allocation2] sm:$0xff] %v1765
    %1836 = vst [vmem:[#allocation2 + $0x8] sm:$0xff] %v1766
    %1837 = vst [vmem:[#allocation2 + $0x10] sm:$0xff] %v1767
    %1838 = vst [vmem:[#allocation2 + $0x18] sm:$0xff] %v1768
    %vm1839 = vcmask 392192
    %1840 = vst.msk [vmem:[#allocation2 + $0x20] sm:$0xff] %vm1839, %v1769
    %1841 = vst [vmem:[#allocation2 + $0x28] sm:$0xff] %v1770
    %1842 = vst [vmem:[#allocation2 + $0x30] sm:$0xff] %v1771
    %1843 = vst [vmem:[#allocation2 + $0x38] sm:$0xff] %v1772
    %1844 = vst [vmem:[#allocation2 + $0x40] sm:$0xff] %v1773
    %1845 = vst.msk [vmem:[#allocation2 + $0x48] sm:$0xff] %vm1839, %v1774
    %1846 = vst [vmem:[#allocation2 + $0x50] sm:$0xff] %v1775
    %1847 = vst [vmem:[#allocation2 + $0x58] sm:$0xff] %v1776
    %1848 = vst [vmem:[#allocation2 + $0x60] sm:$0xff] %v1777
    %1849 = vst [vmem:[#allocation2 + $0x68] sm:$0xff] %v1778
    %1850 = vst.msk [vmem:[#allocation2 + $0x70] sm:$0xff] %vm1839, %v1779
    %1851 = vst [vmem:[#allocation2 + $0x78] sm:$0xff] %v1780
    %1852 = vst [vmem:[#allocation2 + $0x80] sm:$0xff] %v1781
    %1853 = vst [vmem:[#allocation2 + $0x88] sm:$0xff] %v1782
    %1854 = vst [vmem:[#allocation2 + $0x90] sm:$0xff] %v1783
    %1855 = vst.msk [vmem:[#allocation2 + $0x98] sm:$0xff] %vm1839, %v1784
    %1856 = vst [vmem:[#allocation2 + $0xa0] sm:$0xff] %v1785
    %1857 = vst [vmem:[#allocation2 + $0xa8] sm:$0xff] %v1786
    %1858 = vst [vmem:[#allocation2 + $0xb0] sm:$0xff] %v1787
    %1859 = vst [vmem:[#allocation2 + $0xb8] sm:$0xff] %v1788
    %1860 = vst.msk [vmem:[#allocation2 + $0xc0] sm:$0xff] %vm1839, %v1789
    %1861 = vst [vmem:[#allocation2 + $0xc8] sm:$0xff] %v1790
    %1862 = vst [vmem:[#allocation2 + $0xd0] sm:$0xff] %v1791
    %1863 = vst [vmem:[#allocation2 + $0xd8] sm:$0xff] %v1792
    %1864 = vst [vmem:[#allocation2 + $0xe0] sm:$0xff] %v1793
    %1865 = vst.msk [vmem:[#allocation2 + $0xe8] sm:$0xff] %vm1839, %v1794
    %1866 = vst [vmem:[#allocation2 + $0xf0] sm:$0xff] %v1795
    %1867 = vst [vmem:[#allocation2 + $0xf8] sm:$0xff] %v1796
    %1868 = vst [vmem:[#allocation2 + $0x100] sm:$0xff] %v1797
    %1869 = vst [vmem:[#allocation2 + $0x108] sm:$0xff] %v1798
    %1870 = vst.msk [vmem:[#allocation2 + $0x110] sm:$0xff] %vm1839, %v1799
    %1871 = vst [vmem:[#allocation2 + $0x118] sm:$0xff] %v1800
    %1872 = vst [vmem:[#allocation2 + $0x120] sm:$0xff] %v1801
    %1873 = vst [vmem:[#allocation2 + $0x128] sm:$0xff] %v1802
    %1874 = vst [vmem:[#allocation2 + $0x130] sm:$0xff] %v1803
    %1875 = vst.msk [vmem:[#allocation2 + $0x138] sm:$0xff] %vm1839, %v1804
    %1876 = vst [vmem:[#allocation2 + $0x140] sm:$0xff] %v1805
    %1877 = vst [vmem:[#allocation2 + $0x148] sm:$0xff] %v1806
    %1878 = vst [vmem:[#allocation2 + $0x150] sm:$0xff] %v1807
    %1879 = vst [vmem:[#allocation2 + $0x158] sm:$0xff] %v1808
    %1880 = vst.msk [vmem:[#allocation2 + $0x160] sm:$0xff] %vm1839, %v1809
    %1881 = vst [vmem:[#allocation2 + $0x168] sm:$0xff] %v1810
    %1882 = vst [vmem:[#allocation2 + $0x170] sm:$0xff] %v1811
    %1883 = vst [vmem:[#allocation2 + $0x178] sm:$0xff] %v1812
    %1884 = vst [vmem:[#allocation2 + $0x180] sm:$0xff] %v1813
    %1885 = vst.msk [vmem:[#allocation2 + $0x188] sm:$0xff] %vm1839, %v1814
    %1886 = vst [vmem:[#allocation2 + $0x190] sm:$0xff] %v1815
    %1887 = vst [vmem:[#allocation2 + $0x198] sm:$0xff] %v1816
    %1888 = vst [vmem:[#allocation2 + $0x1a0] sm:$0xff] %v1817
    %1889 = vst [vmem:[#allocation2 + $0x1a8] sm:$0xff] %v1818
    %1890 = vst.msk [vmem:[#allocation2 + $0x1b0] sm:$0xff] %vm1839, %v1819
    %1891 = vst [vmem:[#allocation2 + $0x1b8] sm:$0xff] %v1820
    %1892 = vst [vmem:[#allocation2 + $0x1c0] sm:$0xff] %v1821
    %1893 = vst [vmem:[#allocation2 + $0x1c8] sm:$0xff] %v1822
    %1894 = vst [vmem:[#allocation2 + $0x1d0] sm:$0xff] %v1823
    %1895 = vst.msk [vmem:[#allocation2 + $0x1d8] sm:$0xff] %vm1839, %v1824
    %1896 = vst [vmem:[#allocation2 + $0x1e0] sm:$0xff] %v1825
    %1897 = vst [vmem:[#allocation2 + $0x1e8] sm:$0xff] %v1826
    %1898 = vst [vmem:[#allocation2 + $0x1f0] sm:$0xff] %v1827
    %1899 = vst [vmem:[#allocation2 + $0x1f8] sm:$0xff] %v1828
    %1900 = vst.msk [vmem:[#allocation2 + $0x200] sm:$0xff] %vm1839, %v1829
    %1901 = vst [vmem:[#allocation2 + $0x208] sm:$0xff] %v1830
    %1902 = vst [vmem:[#allocation2 + $0x210] sm:$0xff] %v1831
    %1903 = vst [vmem:[#allocation2 + $0x218] sm:$0xff] %v1832
    %1904 = vst [vmem:[#allocation2 + $0x220] sm:$0xff] %v1833
    %1905 = vst.msk [vmem:[#allocation2 + $0x228] sm:$0xff] %vm1839, %v1834
    %v1906 = vld [vmem:[#allocation2] sm:$0xff]
    %v1907 = vld [vmem:[#allocation2 + $0x8] sm:$0xff]
    %v1908 = vld [vmem:[#allocation2 + $0x10] sm:$0xff]
    %v1909 = vld [vmem:[#allocation2 + $0x18] sm:$0xff]
    %v1910 = vld [vmem:[#allocation2 + $0x20] sm:$0xff]
    %v1911 = vld [vmem:[#allocation2 + $0x28] sm:$0xff]
    %v1912 = vld [vmem:[#allocation2 + $0x30] sm:$0xff]
    %v1913 = vld [vmem:[#allocation2 + $0x38] sm:$0xff]
    %v1914 = vld [vmem:[#allocation2 + $0x40] sm:$0xff]
    %v1915 = vld [vmem:[#allocation2 + $0x48] sm:$0xff]
    %v1916 = vld [vmem:[#allocation2 + $0x50] sm:$0xff]
    %v1917 = vld [vmem:[#allocation2 + $0x58] sm:$0xff]
    %v1918 = vld [vmem:[#allocation2 + $0x60] sm:$0xff]
    %v1919 = vld [vmem:[#allocation2 + $0x68] sm:$0xff]
    %v1920 = vld [vmem:[#allocation2 + $0x70] sm:$0xff]
    %v1921 = vld [vmem:[#allocation2 + $0x78] sm:$0xff]
    %v1922 = vld [vmem:[#allocation2 + $0x80] sm:$0xff]
    %v1923 = vld [vmem:[#allocation2 + $0x88] sm:$0xff]
    %v1924 = vld [vmem:[#allocation2 + $0x90] sm:$0xff]
    %v1925 = vld [vmem:[#allocation2 + $0x98] sm:$0xff]
    %v1926 = vld [vmem:[#allocation2 + $0xa0] sm:$0xff]
    %v1927 = vld [vmem:[#allocation2 + $0xa8] sm:$0xff]
    %v1928 = vld [vmem:[#allocation2 + $0xb0] sm:$0xff]
    %v1929 = vld [vmem:[#allocation2 + $0xb8] sm:$0xff]
    %v1930 = vld [vmem:[#allocation2 + $0xc0] sm:$0xff]
    %v1931 = vld [vmem:[#allocation2 + $0xc8] sm:$0xff]
    %v1932 = vld [vmem:[#allocation2 + $0xd0] sm:$0xff]
    %v1933 = vld [vmem:[#allocation2 + $0xd8] sm:$0xff]
    %v1934 = vld [vmem:[#allocation2 + $0xe0] sm:$0xff]
    %v1935 = vld [vmem:[#allocation2 + $0xe8] sm:$0xff]
    %v1936 = vld [vmem:[#allocation2 + $0xf0] sm:$0xff]
    %v1937 = vld [vmem:[#allocation2 + $0xf8] sm:$0xff]
    %v1938 = vld [vmem:[#allocation2 + $0x100] sm:$0xff]
    %v1939 = vld [vmem:[#allocation2 + $0x108] sm:$0xff]
    %v1940 = vld [vmem:[#allocation2 + $0x110] sm:$0xff]
    %v1941 = vld [vmem:[#allocation2 + $0x118] sm:$0xff]
    %v1942 = vld [vmem:[#allocation2 + $0x120] sm:$0xff]
    %v1943 = vld [vmem:[#allocation2 + $0x128] sm:$0xff]
    %v1944 = vld [vmem:[#allocation2 + $0x130] sm:$0xff]
    %v1945 = vld [vmem:[#allocation2 + $0x138] sm:$0xff]
    %v1946 = vld [vmem:[#allocation2 + $0x140] sm:$0xff]
    %v1947 = vld [vmem:[#allocation2 + $0x148] sm:$0xff]
    %v1948 = vld [vmem:[#allocation2 + $0x150] sm:$0xff]
    %v1949 = vld [vmem:[#allocation2 + $0x158] sm:$0xff]
    %v1950 = vld [vmem:[#allocation2 + $0x160] sm:$0xff]
    %v1951 = vld [vmem:[#allocation2 + $0x168] sm:$0xff]
    %v1952 = vld [vmem:[#allocation2 + $0x170] sm:$0xff]
    %v1953 = vld [vmem:[#allocation2 + $0x178] sm:$0xff]
    %v1954 = vld [vmem:[#allocation2 + $0x180] sm:$0xff]
    %v1955 = vld [vmem:[#allocation2 + $0x188] sm:$0xff]
    %v1956 = vld [vmem:[#allocation2 + $0x190] sm:$0xff]
    %v1957 = vld [vmem:[#allocation2 + $0x198] sm:$0xff]
    %v1958 = vld [vmem:[#allocation2 + $0x1a0] sm:$0xff]
    %v1959 = vld [vmem:[#allocation2 + $0x1a8] sm:$0xff]
    %v1960 = vld [vmem:[#allocation2 + $0x1b0] sm:$0xff]
    %v1961 = vld [vmem:[#allocation2 + $0x1b8] sm:$0xff]
    %v1962 = vld [vmem:[#allocation2 + $0x1c0] sm:$0xff]
    %v1963 = vld [vmem:[#allocation2 + $0x1c8] sm:$0xff]
    %v1964 = vld [vmem:[#allocation2 + $0x1d0] sm:$0xff]
    %v1965 = vld [vmem:[#allocation2 + $0x1d8] sm:$0xff]
    %v1966 = vld [vmem:[%s3] sm:$0xff]
    %v1967 = vld [vmem:[%s3 + $0x8] sm:$0xff]
    %v1968 = vld [vmem:[%s3 + $0x10] sm:$0xff]
    %v1969 = vld [vmem:[%s3 + $0x18] sm:$0xff]
    %v1970 = vld [vmem:[%s3 + $0x20] sm:$0xff]
    %v1971 = vld [vmem:[%s3 + $0x28] sm:$0xff]
    %v1972 = vld [vmem:[%s3 + $0x30] sm:$0xff]
    %v1973 = vld [vmem:[%s3 + $0x38] sm:$0xff]
    %v1974 = vld [vmem:[%s3 + $0x40] sm:$0xff]
    %v1975 = vld [vmem:[%s3 + $0x48] sm:$0xff]
    %v1976 = vld [vmem:[%s3 + $0x50] sm:$0xff]
    %v1977 = vld [vmem:[%s3 + $0x58] sm:$0xff]
    %v1978 = vld [vmem:[%s3 + $0x60] sm:$0xff]
    %v1979 = vld [vmem:[%s3 + $0x68] sm:$0xff]
    %v1980 = vld [vmem:[%s3 + $0x70] sm:$0xff]
    %v1981 = vld [vmem:[%s3 + $0x78] sm:$0xff]
    %v1982 = vld [vmem:[%s3 + $0x80] sm:$0xff]
    %v1983 = vld [vmem:[%s3 + $0x88] sm:$0xff]
    %v1984 = vld [vmem:[%s3 + $0x90] sm:$0xff]
    %v1985 = vld [vmem:[%s3 + $0x98] sm:$0xff]
    %v1986 = vld [vmem:[%s3 + $0xa0] sm:$0xff]
    %v1987 = vld [vmem:[%s3 + $0xa8] sm:$0xff]
    %v1988 = vld [vmem:[%s3 + $0xb0] sm:$0xff]
    %v1989 = vld [vmem:[%s3 + $0xb8] sm:$0xff]
    %v1990 = vld [vmem:[%s3 + $0xc0] sm:$0xff]
    %v1991 = vld [vmem:[%s3 + $0xc8] sm:$0xff]
    %v1992 = vld [vmem:[%s3 + $0xd0] sm:$0xff]
    %v1993 = vld [vmem:[%s3 + $0xd8] sm:$0xff]
    %v1994 = vld [vmem:[%s3 + $0xe0] sm:$0xff]
    %v1995 = vld [vmem:[%s3 + $0xe8] sm:$0xff]
    %v1996 = vld [vmem:[%s3 + $0xf0] sm:$0xff]
    %v1997 = vld [vmem:[%s3 + $0xf8] sm:$0xff]
    %v1998 = vld [vmem:[%s3 + $0x100] sm:$0xff]
    %v1999 = vld [vmem:[%s3 + $0x108] sm:$0xff]
    %v2000 = vld [vmem:[%s3 + $0x110] sm:$0xff]
    %v2001 = vld [vmem:[%s3 + $0x118] sm:$0xff]
    %v2002 = vld [vmem:[%s3 + $0x120] sm:$0xff]
    %v2003 = vld [vmem:[%s3 + $0x128] sm:$0xff]
    %v2004 = vld [vmem:[%s3 + $0x130] sm:$0xff]
    %v2005 = vld [vmem:[%s3 + $0x138] sm:$0xff]
    %v2006 = vld [vmem:[%s3 + $0x140] sm:$0xff]
    %v2007 = vld [vmem:[%s3 + $0x148] sm:$0xff]
    %v2008 = vld [vmem:[%s3 + $0x150] sm:$0xff]
    %v2009 = vld [vmem:[%s3 + $0x158] sm:$0xff]
    %v2010 = vld [vmem:[%s3 + $0x160] sm:$0xff]
    %v2011 = vld [vmem:[%s3 + $0x168] sm:$0xff]
    %v2012 = vld [vmem:[%s3 + $0x170] sm:$0xff]
    %v2013 = vld [vmem:[%s3 + $0x178] sm:$0xff]
    %v2014 = vld [vmem:[%s3 + $0x180] sm:$0xff]
    %v2015 = vld [vmem:[%s3 + $0x188] sm:$0xff]
    %v2016 = vld [vmem:[%s3 + $0x190] sm:$0xff]
    %v2017 = vld [vmem:[%s3 + $0x198] sm:$0xff]
    %v2018 = vld [vmem:[%s3 + $0x1a0] sm:$0xff]
    %v2019 = vld [vmem:[%s3 + $0x1a8] sm:$0xff]
    %v2020 = vld [vmem:[%s3 + $0x1b0] sm:$0xff]
    %v2021 = vld [vmem:[%s3 + $0x1b8] sm:$0xff]
    %v2022 = vld [vmem:[%s3 + $0x1c0] sm:$0xff]
    %v2023 = vld [vmem:[%s3 + $0x1c8] sm:$0xff]
    %v2024 = vld [vmem:[%s3 + $0x1d0] sm:$0xff]
    %v2025 = vld [vmem:[%s3 + $0x1d8] sm:$0xff]
    %v2026 = vld [vmem:[%s3 + $0x1e0] sm:$0xff]
    %v2027 = vld [vmem:[%s3 + $0x1e8] sm:$0xff]
    %v2028 = vld [vmem:[%s3 + $0x1f0] sm:$0xff]
    %v2029 = vld [vmem:[%s3 + $0x1f8] sm:$0xff]
    %v2030 = vld [vmem:[%s3 + $0x200] sm:$0xff]
    %v2031 = vld [vmem:[%s3 + $0x208] sm:$0xff]
    %v2032 = vld [vmem:[%s3 + $0x210] sm:$0xff]
    %v2033 = vld [vmem:[%s3 + $0x218] sm:$0xff]
    %v2034 = vld [vmem:[%s3 + $0x220] sm:$0xff]
    %v2035 = vld [vmem:[%s3 + $0x228] sm:$0xff]
    %v2036 = vld [vmem:[#allocation2 + $0x1e0] sm:$0xff]
    %v2037 = vld [vmem:[#allocation2 + $0x1e8] sm:$0xff]
    %v2038 = vld [vmem:[#allocation2 + $0x1f0] sm:$0xff]
    %v2039 = vld [vmem:[#allocation2 + $0x1f8] sm:$0xff]
    %v2040 = vld [vmem:[#allocation2 + $0x200] sm:$0xff]
    %s2041 = scalar_lea.vmem %s3, 560
    %v2042 = vld [vmem:[%s2041] sm:$0xff]
    %v2043 = vld [vmem:[%s2041 + $0x8] sm:$0xff]
    %v2044 = vld [vmem:[%s2041 + $0x10] sm:$0xff]
    %v2045 = vld [vmem:[%s2041 + $0x18] sm:$0xff]
    %v2046 = vld [vmem:[%s2041 + $0x20] sm:$0xff]
    %v2047 = vld [vmem:[%s2041 + $0x28] sm:$0xff]
    %v2048 = vld [vmem:[%s2041 + $0x30] sm:$0xff]
    %v2049 = vld [vmem:[%s2041 + $0x38] sm:$0xff]
    %v2050 = vld [vmem:[%s2041 + $0x40] sm:$0xff]
    %v2051 = vld [vmem:[%s2041 + $0x48] sm:$0xff]
    %v2052 = vld [vmem:[%s2041 + $0x50] sm:$0xff]
    %v2053 = vld [vmem:[%s2041 + $0x58] sm:$0xff]
    %v2054 = vld [vmem:[%s2041 + $0x60] sm:$0xff]
    %v2055 = vld [vmem:[%s2041 + $0x68] sm:$0xff]
    %v2056 = vld [vmem:[%s2041 + $0x70] sm:$0xff]
    %v2057 = vld [vmem:[%s2041 + $0x78] sm:$0xff]
    %v2058 = vld [vmem:[%s2041 + $0x80] sm:$0xff]
    %v2059 = vld [vmem:[%s2041 + $0x88] sm:$0xff]
    %v2060 = vld [vmem:[%s2041 + $0x90] sm:$0xff]
    %v2061 = vld [vmem:[%s2041 + $0x98] sm:$0xff]
    %v2062 = vld [vmem:[%s2041 + $0xa0] sm:$0xff]
    %v2063 = vld [vmem:[%s2041 + $0xa8] sm:$0xff]
    %v2064 = vld [vmem:[%s2041 + $0xb0] sm:$0xff]
    %v2065 = vld [vmem:[%s2041 + $0xb8] sm:$0xff]
    %v2066 = vld [vmem:[%s2041 + $0xc0] sm:$0xff]
    %v2067 = vld [vmem:[%s2041 + $0xc8] sm:$0xff]
    %v2068 = vld [vmem:[%s2041 + $0xd0] sm:$0xff]
    %v2069 = vld [vmem:[%s2041 + $0xd8] sm:$0xff]
    %v2070 = vld [vmem:[%s2041 + $0xe0] sm:$0xff]
    %v2071 = vld [vmem:[%s2041 + $0xe8] sm:$0xff]
    %v2072 = vld [vmem:[%s2041 + $0xf0] sm:$0xff]
    %v2073 = vld [vmem:[%s2041 + $0xf8] sm:$0xff]
    %v2074 = vld [vmem:[%s2041 + $0x100] sm:$0xff]
    %v2075 = vld [vmem:[%s2041 + $0x108] sm:$0xff]
    %v2076 = vld [vmem:[%s2041 + $0x110] sm:$0xff]
    %v2077 = vld [vmem:[%s2041 + $0x118] sm:$0xff]
    %v2078 = vld [vmem:[%s2041 + $0x120] sm:$0xff]
    %v2079 = vld [vmem:[%s2041 + $0x128] sm:$0xff]
    %v2080 = vld [vmem:[%s2041 + $0x130] sm:$0xff]
    %v2081 = vld [vmem:[%s2041 + $0x138] sm:$0xff]
    %v2082 = vld [vmem:[%s2041 + $0x140] sm:$0xff]
    %v2083 = vld [vmem:[%s2041 + $0x148] sm:$0xff]
    %v2084 = vld [vmem:[%s2041 + $0x150] sm:$0xff]
    %v2085 = vld [vmem:[%s2041 + $0x158] sm:$0xff]
    %v2086 = vld [vmem:[%s2041 + $0x160] sm:$0xff]
    %v2087 = vld [vmem:[%s2041 + $0x168] sm:$0xff]
    %v2088 = vld [vmem:[%s2041 + $0x170] sm:$0xff]
    %v2089 = vld [vmem:[%s2041 + $0x178] sm:$0xff]
    %v2090 = vld [vmem:[%s2041 + $0x180] sm:$0xff]
    %v2091 = vld [vmem:[%s2041 + $0x188] sm:$0xff]
    %v2092 = vld [vmem:[%s2041 + $0x190] sm:$0xff]
    %v2093 = vld [vmem:[%s2041 + $0x198] sm:$0xff]
    %v2094 = vld [vmem:[%s2041 + $0x1a0] sm:$0xff]
    %v2095 = vld [vmem:[%s2041 + $0x1a8] sm:$0xff]
    %v2096 = vld [vmem:[%s2041 + $0x1b0] sm:$0xff]
    %v2097 = vld [vmem:[%s2041 + $0x1b8] sm:$0xff]
    %v2098 = vld [vmem:[%s2041 + $0x1c0] sm:$0xff]
    %v2099 = vld [vmem:[%s2041 + $0x1c8] sm:$0xff]
    %v2100 = vld [vmem:[%s2041 + $0x1d0] sm:$0xff]
    %v2101 = vld [vmem:[%s2041 + $0x1d8] sm:$0xff]
    %v2102 = vld [vmem:[%s2041 + $0x1e0] sm:$0xff]
    %v2103 = vld [vmem:[%s2041 + $0x1e8] sm:$0xff]
    %v2104 = vld [vmem:[%s2041 + $0x1f0] sm:$0xff]
    %v2105 = vld [vmem:[%s2041 + $0x1f8] sm:$0xff]
    %v2106 = vld [vmem:[%s2041 + $0x200] sm:$0xff]
    %v2107 = vld [vmem:[%s2041 + $0x208] sm:$0xff]
    %v2108 = vld [vmem:[%s2041 + $0x210] sm:$0xff]
    %v2109 = vld [vmem:[%s2041 + $0x218] sm:$0xff]
    %v2110 = vld [vmem:[%s2041 + $0x220] sm:$0xff]
    %v2111 = vld [vmem:[%s2041 + $0x228] sm:$0xff]
    %v2113 = vsel %vm1839, %v1915, 0
    %v2116 = vsel %vm1839, %v1920, 0
    %v2119 = vsel %vm1839, %v1925, 0
    %v2122 = vsel %vm1839, %v1930, 0
    %v2125 = vsel %vm1839, %v1935, 0
    %v2128 = vsel %vm1839, %v1940, 0
    %v2131 = vsel %vm1839, %v1945, 0
    %v2134 = vsel %vm1839, %v1950, 0
    %v2137 = vsel %vm1839, %v1955, 0
    %v2140 = vsel %vm1839, %v1960, 0
    %v2143 = vsel %vm1839, %v1965, 0
    %v2146 = vsel %vm1839, %v2040, 0
    %2148 = vmatprep.subr.mxu0 0.0
    %2149 = vmatpush1.msra.mxu0 %v2042
    %2150 = vmatprep.subr.mxu0 0.0
    %2151 = vmatpush1.msra.mxu0 %v2043
    %2152 = vmatprep.subr.mxu0 0.0
    %2153 = vmatpush1.msra.mxu0 %v2044
    %2154 = vmatprep.subr.mxu0 0.0
    %2155 = vmatpush1.msra.mxu0 %v2045
    %2156 = vmatprep.subr.mxu0 0.0
    %2157 = vmatpush1.msra.mxu0 %v2046
    %2158 = vmatprep.subr.mxu0 0.0
    %2159 = vmatpush1.msra.mxu0 %v2047
    %2160 = vmatprep.subr.mxu0 0.0
    %2161 = vmatpush1.msra.mxu0 %v2048
    %2162 = vmatprep.subr.mxu0 0.0
    %2163 = vmatpush1.msra.mxu0 %v2049
    %2164 = vmatprep.subr.mxu0 0.0
    %2165 = vmatpush1.msra.mxu0 %v2050
    %2166 = vmatprep.subr.mxu0 0.0
    %2167 = vmatpush1.msra.mxu0 %v2051
    %2168 = vmatprep.subr.mxu0 0.0
    %2169 = vmatpush1.msra.mxu0 %v2052
    %2170 = vmatprep.subr.mxu0 0.0
    %2171 = vmatpush1.msra.mxu0 %v2053
    %2172 = vmatprep.subr.mxu0 0.0
    %2173 = vmatpush1.msra.mxu0 %v2054
    %2174 = vmatprep.subr.mxu0 0.0
    %2175 = vmatpush1.msra.mxu0 %v2055
    %2176 = vmatprep.subr.mxu0 0.0
    %2177 = vmatpush1.msra.mxu0 %v2056
    %2178 = vmatprep.subr.mxu0 0.0
    %2179 = vmatpush1.msra.mxu0 %v2057
    %2180 = vmatprep.subr.mxu0 0.0
    %2181 = vmatpush1.msra.mxu0 %v2058
    %2182 = vmatprep.subr.mxu0 0.0
    %2183 = vmatpush1.msra.mxu0 %v2059
    %2184 = vmatprep.subr.mxu0 0.0
    %2185 = vmatpush1.msra.mxu0 %v2060
    %2186 = vmatprep.subr.mxu0 0.0
    %2187 = vmatpush1.msra.mxu0 %v2061
    %2188 = vmatprep.subr.mxu0 0.0
    %2189 = vmatpush1.msra.mxu0 %v2062
    %2190 = vmatprep.subr.mxu0 0.0
    %2191 = vmatpush1.msra.mxu0 %v2063
    %2192 = vmatprep.subr.mxu0 0.0
    %2193 = vmatpush1.msra.mxu0 %v2064
    %2194 = vmatprep.subr.mxu0 0.0
    %2195 = vmatpush1.msra.mxu0 %v2065
    %2196 = vmatprep.subr.mxu0 0.0
    %2197 = vmatpush1.msra.mxu0 %v2066
    %2198 = vmatprep.subr.mxu0 0.0
    %2199 = vmatpush1.msra.mxu0 %v2067
    %2200 = vmatprep.subr.mxu0 0.0
    %2201 = vmatpush1.msra.mxu0 %v2068
    %2202 = vmatprep.subr.mxu0 0.0
    %2203 = vmatpush1.msra.mxu0 %v2069
    %2204 = vmatprep.subr.mxu0 0.0
    %2205 = vmatpush1.msra.mxu0 %v2070
    %2206 = vmatprep.subr.mxu0 0.0
    %2207 = vmatpush1.msra.mxu0 %v2071
    %2208 = vmatprep.subr.mxu0 0.0
    %2209 = vmatpush1.msra.mxu0 %v2072
    %2210 = vmatprep.subr.mxu0 0.0
    %2211 = vmatpush1.msra.mxu0 %v2073
    %2212 = vmatprep.mubr.f32.mxu0 %v1912
    %2213 = vmatmul.mubr.f32.gmra.mrb[0].mxu0 %v1911
    %v2214 = vpop.f32.mrb[0].mxu0
    %v2215 = vadd.f32 0.0, %v2214
    %v2216 = vpop.f32.mrb[0].mxu0
    %2217 = vmatprep.mubr.f32.mxu0 %v1917
    %2218 = vmatmul.mubr.f32.gmra.mrb[0].mxu0 %v1916
    %v2219 = vpop.f32.mrb[0].mxu0
    %v2220 = vadd.f32 0.0, %v2219
    %v2221 = vpop.f32.mrb[0].mxu0
    %2222 = vmatprep.mubr.f32.mxu0 %v1922
    %2223 = vmatmul.mubr.f32.gmra.mrb[0].mxu0 %v1921
    %v2224 = vpop.f32.mrb[0].mxu0
    %v2225 = vadd.f32 0.0, %v2224
    %v2226 = vpop.f32.mrb[0].mxu0
    %2227 = vmatprep.mubr.f32.mxu0 %v1927
    %2228 = vmatmul.mubr.f32.gmra.mrb[0].mxu0 %v1926
    %v2229 = vpop.f32.mrb[0].mxu0
    %v2230 = vadd.f32 0.0, %v2229
    %v2231 = vpop.f32.mrb[0].mxu0
    %2232 = vmatprep.mubr.f32.mxu0 %v1932
    %2233 = vmatmul.mubr.f32.gmra.mrb[0].mxu0 %v1931
    %v2234 = vpop.f32.mrb[0].mxu0
    %v2235 = vadd.f32 0.0, %v2234
    %v2236 = vpop.f32.mrb[0].mxu0
    %2237 = vmatprep.mubr.f32.mxu0 %v1937
    %2238 = vmatmul.mubr.f32.gmra.mrb[0].mxu0 %v1936
    %v2239 = vpop.f32.mrb[0].mxu0
    %v2240 = vadd.f32 0.0, %v2239
    %v2241 = vpop.f32.mrb[0].mxu0
    %2242 = vmatprep.mubr.f32.mxu0 %v1942
    %2243 = vmatmul.mubr.f32.gmra.mrb[0].mxu0 %v1941
    %v2244 = vpop.f32.mrb[0].mxu0
    %v2245 = vadd.f32 0.0, %v2244
    %v2246 = vpop.f32.mrb[0].mxu0
    %2247 = vmatprep.mubr.f32.mxu0 %v1947
    %2248 = vmatmul.mubr.f32.gmra.mrb[0].mxu0 %v1946
    %v2249 = vpop.f32.mrb[0].mxu0
    %v2250 = vadd.f32 0.0, %v2249
    %v2251 = vpop.f32.mrb[0].mxu0
    %2252 = vmatprep.mubr.f32.mxu0 %v1952
    %2253 = vmatmul.mubr.f32.gmra.mrb[0].mxu0 %v1951
    %v2254 = vpop.f32.mrb[0].mxu0
    %v2255 = vadd.f32 0.0, %v2254
    %v2256 = vpop.f32.mrb[0].mxu0
    %2257 = vmatprep.mubr.f32.mxu0 %v1957
    %2258 = vmatmul.mubr.f32.gmra.mrb[0].mxu0 %v1956
    %v2259 = vpop.f32.mrb[0].mxu0
    %v2260 = vadd.f32 0.0, %v2259
    %v2261 = vpop.f32.mrb[0].mxu0
    %2262 = vmatprep.mubr.f32.mxu0 %v1962
    %2263 = vmatmul.mubr.f32.gmra.mrb[0].mxu0 %v1961
    %v2264 = vpop.f32.mrb[0].mxu0
    %v2265 = vadd.f32 0.0, %v2264
    %v2266 = vpop.f32.mrb[0].mxu0
    %2267 = vmatprep.mubr.f32.mxu0 %v2037
    %2268 = vmatmul.mubr.f32.gmra.mrb[0].mxu0 %v2036
    %v2269 = vpop.f32.mrb[0].mxu0
    %v2270 = vadd.f32 0.0, %v2269
    %v2271 = vpop.f32.mrb[0].mxu0
    %2272 = vdwg.mxu0
    %2273 = vmatprep.subr.mxu0 0.0
    %2274 = vmatpush1.msra.mxu0 %v2074
    %2275 = vmatprep.subr.mxu0 0.0
    %2276 = vmatpush1.msra.mxu0 %v2075
    %2277 = vmatprep.subr.mxu0 0.0
    %2278 = vmatpush1.msra.mxu0 %v2076
    %2279 = vmatprep.subr.mxu0 0.0
    %2280 = vmatpush1.msra.mxu0 %v2077
    %2281 = vmatprep.subr.mxu0 0.0
    %2282 = vmatpush1.msra.mxu0 %v2078
    %2283 = vmatprep.subr.mxu0 0.0
    %2284 = vmatpush1.msra.mxu0 %v2079
    %2285 = vmatprep.subr.mxu0 0.0
    %2286 = vmatpush1.msra.mxu0 %v2080
    %2287 = vmatprep.subr.mxu0 0.0
    %2288 = vmatpush1.msra.mxu0 %v2081
    %2289 = vmatprep.subr.mxu0 0.0
    %2290 = vmatpush1.msra.mxu0 %v2082
    %2291 = vmatprep.subr.mxu0 0.0
    %2292 = vmatpush1.msra.mxu0 %v2083
    %2293 = vmatprep.subr.mxu0 0.0
    %2294 = vmatpush1.msra.mxu0 %v2084
    %2295 = vmatprep.subr.mxu0 0.0
    %2296 = vmatpush1.msra.mxu0 %v2085
    %2297 = vmatprep.subr.mxu0 0.0
    %2298 = vmatpush1.msra.mxu0 %v2086
    %2299 = vmatprep.subr.mxu0 0.0
    %2300 = vmatpush1.msra.mxu0 %v2087
    %2301 = vmatprep.subr.mxu0 0.0
    %2302 = vmatpush1.msra.mxu0 %v2088
    %2303 = vmatprep.subr.mxu0 0.0
    %2304 = vmatpush1.msra.mxu0 %v2089
    %2305 = vmatprep.subr.mxu0 0.0
    %2306 = vmatpush1.msra.mxu0 %v2090
    %2307 = vmatprep.subr.mxu0 0.0
    %2308 = vmatpush1.msra.mxu0 %v2091
    %2309 = vmatprep.subr.mxu0 0.0
    %2310 = vmatpush1.msra.mxu0 %v2092
    %2311 = vmatprep.subr.mxu0 0.0
    %2312 = vmatpush1.msra.mxu0 %v2093
    %2313 = vmatprep.subr.mxu0 0.0
    %2314 = vmatpush1.msra.mxu0 %v2094
    %2315 = vmatprep.subr.mxu0 0.0
    %2316 = vmatpush1.msra.mxu0 %v2095
    %2317 = vmatprep.subr.mxu0 0.0
    %2318 = vmatpush1.msra.mxu0 %v2096
    %2319 = vmatprep.subr.mxu0 0.0
    %2320 = vmatpush1.msra.mxu0 %v2097
    %2321 = vmatprep.subr.mxu0 0.0
    %2322 = vmatpush1.msra.mxu0 %v2098
    %2323 = vmatprep.subr.mxu0 0.0
    %2324 = vmatpush1.msra.mxu0 %v2099
    %2325 = vmatprep.subr.mxu0 0.0
    %2326 = vmatpush1.msra.mxu0 %v2100
    %2327 = vmatprep.subr.mxu0 0.0
    %2328 = vmatpush1.msra.mxu0 %v2101
    %2329 = vmatprep.subr.mxu0 0.0
    %2330 = vmatpush1.msra.mxu0 %v2102
    %2331 = vmatprep.subr.mxu0 0.0
    %2332 = vmatpush1.msra.mxu0 %v2103
    %2333 = vmatprep.subr.mxu0 0.0
    %2334 = vmatpush1.msra.mxu0 %v2104
    %2335 = vmatprep.subr.mxu0 0.0
    %2336 = vmatpush1.msra.mxu0 %v2105
    %2337 = vmatprep.mubr.f32.mxu0 %v1914
    %2338 = vmatmul.mubr.f32.gmra.mrb[0].mxu0 %v1913
    %v2339 = vpop.f32.mrb[0].mxu0
    %v2340 = vadd.f32 %v2215, %v2339
    %v2341 = vpop.f32.mrb[0].mxu0
    %2342 = vmatprep.mubr.f32.mxu0 %v1919
    %2343 = vmatmul.mubr.f32.gmra.mrb[0].mxu0 %v1918
    %v2344 = vpop.f32.mrb[0].mxu0
    %v2345 = vadd.f32 %v2220, %v2344
    %v2346 = vpop.f32.mrb[0].mxu0
    %2347 = vmatprep.mubr.f32.mxu0 %v1924
    %2348 = vmatmul.mubr.f32.gmra.mrb[0].mxu0 %v1923
    %v2349 = vpop.f32.mrb[0].mxu0
    %v2350 = vadd.f32 %v2225, %v2349
    %v2351 = vpop.f32.mrb[0].mxu0
    %2352 = vmatprep.mubr.f32.mxu0 %v1929
    %2353 = vmatmul.mubr.f32.gmra.mrb[0].mxu0 %v1928
    %v2354 = vpop.f32.mrb[0].mxu0
    %v2355 = vadd.f32 %v2230, %v2354
    %v2356 = vpop.f32.mrb[0].mxu0
    %2357 = vmatprep.mubr.f32.mxu0 %v1934
    %2358 = vmatmul.mubr.f32.gmra.mrb[0].mxu0 %v1933
    %v2359 = vpop.f32.mrb[0].mxu0
    %v2360 = vadd.f32 %v2235, %v2359
    %v2361 = vpop.f32.mrb[0].mxu0
    %2362 = vmatprep.mubr.f32.mxu0 %v1939
    %2363 = vmatmul.mubr.f32.gmra.mrb[0].mxu0 %v1938
    %v2364 = vpop.f32.mrb[0].mxu0
    %v2365 = vadd.f32 %v2240, %v2364
    %v2366 = vpop.f32.mrb[0].mxu0
    %2367 = vmatprep.mubr.f32.mxu0 %v1944
    %2368 = vmatmul.mubr.f32.gmra.mrb[0].mxu0 %v1943
    %v2369 = vpop.f32.mrb[0].mxu0
    %v2370 = vadd.f32 %v2245, %v2369
    %v2371 = vpop.f32.mrb[0].mxu0
    %2372 = vmatprep.mubr.f32.mxu0 %v1949
    %2373 = vmatmul.mubr.f32.gmra.mrb[0].mxu0 %v1948
    %v2374 = vpop.f32.mrb[0].mxu0
    %v2375 = vadd.f32 %v2250, %v2374
    %v2376 = vpop.f32.mrb[0].mxu0
    %2377 = vmatprep.mubr.f32.mxu0 %v1954
    %2378 = vmatmul.mubr.f32.gmra.mrb[0].mxu0 %v1953
    %v2379 = vpop.f32.mrb[0].mxu0
    %v2380 = vadd.f32 %v2255, %v2379
    %v2381 = vpop.f32.mrb[0].mxu0
    %2382 = vmatprep.mubr.f32.mxu0 %v1959
    %2383 = vmatmul.mubr.f32.gmra.mrb[0].mxu0 %v1958
    %v2384 = vpop.f32.mrb[0].mxu0
    %v2385 = vadd.f32 %v2260, %v2384
    %v2386 = vpop.f32.mrb[0].mxu0
    %2387 = vmatprep.mubr.f32.mxu0 %v1964
    %2388 = vmatmul.mubr.f32.gmra.mrb[0].mxu0 %v1963
    %v2389 = vpop.f32.mrb[0].mxu0
    %v2390 = vadd.f32 %v2265, %v2389
    %v2391 = vpop.f32.mrb[0].mxu0
    %2392 = vmatprep.mubr.f32.mxu0 %v2039
    %2393 = vmatmul.mubr.f32.gmra.mrb[0].mxu0 %v2038
    %v2394 = vpop.f32.mrb[0].mxu0
    %v2395 = vadd.f32 %v2270, %v2394
    %v2396 = vpop.f32.mrb[0].mxu0
    %2397 = vdwg.mxu0
    %2398 = vmatprep.subr.mxu0 0.0
    %2399 = vmatpush1.msra.mxu0 %v2106
    %2400 = vmatprep.subr.mxu0 0.0
    %2401 = vmatpush1.msra.mxu0 %v2107
    %2402 = vmatprep.subr.mxu0 0.0
    %2403 = vmatpush1.msra.mxu0 %v2108
    %2404 = vmatprep.subr.mxu0 0.0
    %2405 = vmatpush1.msra.mxu0 %v2109
    %2406 = vmatprep.subr.mxu0 0.0
    %2407 = vmatpush1.msra.mxu0 %v2110
    %2408 = vmatprep.subr.mxu0 0.0
    %2409 = vmatpush1.msra.mxu0 %v2111
    %2410 = vmatprep.subr.mxu0 0.0
    %2411 = vmatpush1.msra.mxu0 0.0
    %2412 = vmatprep.subr.mxu0 0.0
    %2413 = vmatpush1.msra.mxu0 0.0
    %2414 = vmatprep.subr.mxu0 0.0
    %2415 = vmatpush1.msra.mxu0 0.0
    %2416 = vmatprep.subr.mxu0 0.0
    %2417 = vmatpush1.msra.mxu0 0.0
    %2418 = vmatprep.subr.mxu0 0.0
    %2419 = vmatpush1.msra.mxu0 0.0
    %2420 = vmatprep.subr.mxu0 0.0
    %2421 = vmatpush1.msra.mxu0 0.0
    %2422 = vmatprep.subr.mxu0 0.0
    %2423 = vmatpush1.msra.mxu0 0.0
    %2424 = vmatprep.subr.mxu0 0.0
    %2425 = vmatpush1.msra.mxu0 0.0
    %2426 = vmatprep.subr.mxu0 0.0
    %2427 = vmatpush1.msra.mxu0 0.0
    %2428 = vmatprep.subr.mxu0 0.0
    %2429 = vmatpush1.msra.mxu0 0.0
    %2430 = vmatprep.subr.mxu0 0.0
    %2431 = vmatpush1.msra.mxu0 0.0
    %2432 = vmatprep.subr.mxu0 0.0
    %2433 = vmatpush1.msra.mxu0 0.0
    %2434 = vmatprep.subr.mxu0 0.0
    %2435 = vmatpush1.msra.mxu0 0.0
    %2436 = vmatprep.subr.mxu0 0.0
    %2437 = vmatpush1.msra.mxu0 0.0
    %2438 = vmatprep.subr.mxu0 0.0
    %2439 = vmatpush1.msra.mxu0 0.0
    %2440 = vmatprep.subr.mxu0 0.0
    %2441 = vmatpush1.msra.mxu0 0.0
    %2442 = vmatprep.subr.mxu0 0.0
    %2443 = vmatpush1.msra.mxu0 0.0
    %2444 = vmatprep.subr.mxu0 0.0
    %2445 = vmatpush1.msra.mxu0 0.0
    %2446 = vmatprep.subr.mxu0 0.0
    %2447 = vmatpush1.msra.mxu0 0.0
    %2448 = vmatprep.subr.mxu0 0.0
    %2449 = vmatpush1.msra.mxu0 0.0
    %2450 = vmatprep.subr.mxu0 0.0
    %2451 = vmatpush1.msra.mxu0 0.0
    %2452 = vmatprep.subr.mxu0 0.0
    %2453 = vmatpush1.msra.mxu0 0.0
    %2454 = vmatprep.subr.mxu0 0.0
    %2455 = vmatpush1.msra.mxu0 0.0
    %2456 = vmatprep.subr.mxu0 0.0
    %2457 = vmatpush1.msra.mxu0 0.0
    %2458 = vmatprep.subr.mxu0 0.0
    %2459 = vmatpush1.msra.mxu0 0.0
    %2460 = vmatprep.subr.mxu0 0.0
    %2461 = vmatpush1.msra.mxu0 0.0
    %2462 = vmatprep.mubr.f32.mxu0 0.0
    %2463 = vmatmul.mubr.f32.gmra.mrb[0].mxu0 %v2113
    %v2464 = vpop.f32.mrb[0].mxu0
    %v2465 = vadd.f32 %v2340, %v2464
    %v2466 = vpop.f32.mrb[0].mxu0
    %2467 = vmatprep.mubr.f32.mxu0 0.0
    %2468 = vmatmul.mubr.f32.gmra.mrb[0].mxu0 %v2116
    %v2469 = vpop.f32.mrb[0].mxu0
    %v2470 = vadd.f32 %v2345, %v2469
    %v2471 = vpop.f32.mrb[0].mxu0
    %2472 = vmatprep.mubr.f32.mxu0 0.0
    %2473 = vmatmul.mubr.f32.gmra.mrb[0].mxu0 %v2119
    %v2474 = vpop.f32.mrb[0].mxu0
    %v2475 = vadd.f32 %v2350, %v2474
    %v2476 = vpop.f32.mrb[0].mxu0
    %2477 = vmatprep.mubr.f32.mxu0 0.0
    %2478 = vmatmul.mubr.f32.gmra.mrb[0].mxu0 %v2122
    %v2479 = vpop.f32.mrb[0].mxu0
    %v2480 = vadd.f32 %v2355, %v2479
    %v2481 = vpop.f32.mrb[0].mxu0
    %2482 = vmatprep.mubr.f32.mxu0 0.0
    %2483 = vmatmul.mubr.f32.gmra.mrb[0].mxu0 %v2125
    %v2484 = vpop.f32.mrb[0].mxu0
    %v2485 = vadd.f32 %v2360, %v2484
    %v2486 = vpop.f32.mrb[0].mxu0
    %2487 = vmatprep.mubr.f32.mxu0 0.0
    %2488 = vmatmul.mubr.f32.gmra.mrb[0].mxu0 %v2128
    %v2489 = vpop.f32.mrb[0].mxu0
    %v2490 = vadd.f32 %v2365, %v2489
    %v2491 = vpop.f32.mrb[0].mxu0
    %2492 = vmatprep.mubr.f32.mxu0 0.0
    %2493 = vmatmul.mubr.f32.gmra.mrb[0].mxu0 %v2131
    %v2494 = vpop.f32.mrb[0].mxu0
    %v2495 = vadd.f32 %v2370, %v2494
    %v2496 = vpop.f32.mrb[0].mxu0
    %2497 = vmatprep.mubr.f32.mxu0 0.0
    %2498 = vmatmul.mubr.f32.gmra.mrb[0].mxu0 %v2134
    %v2499 = vpop.f32.mrb[0].mxu0
    %v2500 = vadd.f32 %v2375, %v2499
    %v2501 = vpop.f32.mrb[0].mxu0
    %2502 = vmatprep.mubr.f32.mxu0 0.0
    %2503 = vmatmul.mubr.f32.gmra.mrb[0].mxu0 %v2137
    %v2504 = vpop.f32.mrb[0].mxu0
    %v2505 = vadd.f32 %v2380, %v2504
    %v2506 = vpop.f32.mrb[0].mxu0
    %2507 = vmatprep.mubr.f32.mxu0 0.0
    %2508 = vmatmul.mubr.f32.gmra.mrb[0].mxu0 %v2140
    %v2509 = vpop.f32.mrb[0].mxu0
    %v2510 = vadd.f32 %v2385, %v2509
    %v2511 = vpop.f32.mrb[0].mxu0
    %2512 = vmatprep.mubr.f32.mxu0 0.0
    %2513 = vmatmul.mubr.f32.gmra.mrb[0].mxu0 %v2143
    %v2514 = vpop.f32.mrb[0].mxu0
    %v2515 = vadd.f32 %v2390, %v2514
    %v2516 = vpop.f32.mrb[0].mxu0
    %2517 = vmatprep.mubr.f32.mxu0 0.0
    %2518 = vmatmul.mubr.f32.gmra.mrb[0].mxu0 %v2146
    %v2519 = vpop.f32.mrb[0].mxu0
    %v2520 = vadd.f32 %v2395, %v2519
    %v2521 = vpop.f32.mrb[0].mxu0
    %2522 = vdwg.mxu0
    %v2524 = vsel %vm1839, %v1910, 0
    %2526 = vmatprep.subr.mxu0 0.0
    %2527 = vmatpush1.msra.mxu0 %v1966
    %2528 = vmatprep.subr.mxu0 0.0
    %2529 = vmatpush1.msra.mxu0 %v1967
    %2530 = vmatprep.subr.mxu0 0.0
    %2531 = vmatpush1.msra.mxu0 %v1968
    %2532 = vmatprep.subr.mxu0 0.0
    %2533 = vmatpush1.msra.mxu0 %v1969
    %2534 = vmatprep.subr.mxu0 0.0
    %2535 = vmatpush1.msra.mxu0 %v1970
    %2536 = vmatprep.subr.mxu0 0.0
    %2537 = vmatpush1.msra.mxu0 %v1971
    %2538 = vmatprep.subr.mxu0 0.0
    %2539 = vmatpush1.msra.mxu0 %v1972
    %2540 = vmatprep.subr.mxu0 0.0
    %2541 = vmatpush1.msra.mxu0 %v1973
    %2542 = vmatprep.subr.mxu0 0.0
    %2543 = vmatpush1.msra.mxu0 %v1974
    %2544 = vmatprep.subr.mxu0 0.0
    %2545 = vmatpush1.msra.mxu0 %v1975
    %2546 = vmatprep.subr.mxu0 0.0
    %2547 = vmatpush1.msra.mxu0 %v1976
    %2548 = vmatprep.subr.mxu0 0.0
    %2549 = vmatpush1.msra.mxu0 %v1977
    %2550 = vmatprep.subr.mxu0 0.0
    %2551 = vmatpush1.msra.mxu0 %v1978
    %2552 = vmatprep.subr.mxu0 0.0
    %2553 = vmatpush1.msra.mxu0 %v1979
    %2554 = vmatprep.subr.mxu0 0.0
    %2555 = vmatpush1.msra.mxu0 %v1980
    %2556 = vmatprep.subr.mxu0 0.0
    %2557 = vmatpush1.msra.mxu0 %v1981
    %2558 = vmatprep.subr.mxu0 0.0
    %2559 = vmatpush1.msra.mxu0 %v1982
    %2560 = vmatprep.subr.mxu0 0.0
    %2561 = vmatpush1.msra.mxu0 %v1983
    %2562 = vmatprep.subr.mxu0 0.0
    %2563 = vmatpush1.msra.mxu0 %v1984
    %2564 = vmatprep.subr.mxu0 0.0
    %2565 = vmatpush1.msra.mxu0 %v1985
    %2566 = vmatprep.subr.mxu0 0.0
    %2567 = vmatpush1.msra.mxu0 %v1986
    %2568 = vmatprep.subr.mxu0 0.0
    %2569 = vmatpush1.msra.mxu0 %v1987
    %2570 = vmatprep.subr.mxu0 0.0
    %2571 = vmatpush1.msra.mxu0 %v1988
    %2572 = vmatprep.subr.mxu0 0.0
    %2573 = vmatpush1.msra.mxu0 %v1989
    %2574 = vmatprep.subr.mxu0 0.0
    %2575 = vmatpush1.msra.mxu0 %v1990
    %2576 = vmatprep.subr.mxu0 0.0
    %2577 = vmatpush1.msra.mxu0 %v1991
    %2578 = vmatprep.subr.mxu0 0.0
    %2579 = vmatpush1.msra.mxu0 %v1992
    %2580 = vmatprep.subr.mxu0 0.0
    %2581 = vmatpush1.msra.mxu0 %v1993
    %2582 = vmatprep.subr.mxu0 0.0
    %2583 = vmatpush1.msra.mxu0 %v1994
    %2584 = vmatprep.subr.mxu0 0.0
    %2585 = vmatpush1.msra.mxu0 %v1995
    %2586 = vmatprep.subr.mxu0 0.0
    %2587 = vmatpush1.msra.mxu0 %v1996
    %2588 = vmatprep.subr.mxu0 0.0
    %2589 = vmatpush1.msra.mxu0 %v1997
    %2590 = vmatprep.mubr.f32.mxu0 %v1907
    %2591 = vmatmul.mubr.f32.gmra.mrb[0].mxu0 %v1906
    %v2592 = vpop.f32.mrb[0].mxu0
    %v2593 = vadd.f32 %v2465, %v2592
    %v2594 = vpop.f32.mrb[0].mxu0
    %2595 = vmatprep.mubr.f32.mxu0 %v1912
    %2596 = vmatmul.mubr.f32.gmra.mrb[0].mxu0 %v1911
    %v2597 = vpop.f32.mrb[0].mxu0
    %v2598 = vadd.f32 %v2470, %v2597
    %v2599 = vpop.f32.mrb[0].mxu0
    %2600 = vmatprep.mubr.f32.mxu0 %v1917
    %2601 = vmatmul.mubr.f32.gmra.mrb[0].mxu0 %v1916
    %v2602 = vpop.f32.mrb[0].mxu0
    %v2603 = vadd.f32 %v2475, %v2602
    %v2604 = vpop.f32.mrb[0].mxu0
    %2605 = vmatprep.mubr.f32.mxu0 %v1922
    %2606 = vmatmul.mubr.f32.gmra.mrb[0].mxu0 %v1921
    %v2607 = vpop.f32.mrb[0].mxu0
    %v2608 = vadd.f32 %v2480, %v2607
    %v2609 = vpop.f32.mrb[0].mxu0
    %2610 = vmatprep.mubr.f32.mxu0 %v1927
    %2611 = vmatmul.mubr.f32.gmra.mrb[0].mxu0 %v1926
    %v2612 = vpop.f32.mrb[0].mxu0
    %v2613 = vadd.f32 %v2485, %v2612
    %v2614 = vpop.f32.mrb[0].mxu0
    %2615 = vmatprep.mubr.f32.mxu0 %v1932
    %2616 = vmatmul.mubr.f32.gmra.mrb[0].mxu0 %v1931
    %v2617 = vpop.f32.mrb[0].mxu0
    %v2618 = vadd.f32 %v2490, %v2617
    %v2619 = vpop.f32.mrb[0].mxu0
    %2620 = vmatprep.mubr.f32.mxu0 %v1937
    %2621 = vmatmul.mubr.f32.gmra.mrb[0].mxu0 %v1936
    %v2622 = vpop.f32.mrb[0].mxu0
    %v2623 = vadd.f32 %v2495, %v2622
    %v2624 = vpop.f32.mrb[0].mxu0
    %2625 = vmatprep.mubr.f32.mxu0 %v1942
    %2626 = vmatmul.mubr.f32.gmra.mrb[0].mxu0 %v1941
    %v2627 = vpop.f32.mrb[0].mxu0
    %v2628 = vadd.f32 %v2500, %v2627
    %v2629 = vpop.f32.mrb[0].mxu0
    %2630 = vmatprep.mubr.f32.mxu0 %v1947
    %2631 = vmatmul.mubr.f32.gmra.mrb[0].mxu0 %v1946
    %v2632 = vpop.f32.mrb[0].mxu0
    %v2633 = vadd.f32 %v2505, %v2632
    %v2634 = vpop.f32.mrb[0].mxu0
    %2635 = vmatprep.mubr.f32.mxu0 %v1952
    %2636 = vmatmul.mubr.f32.gmra.mrb[0].mxu0 %v1951
    %v2637 = vpop.f32.mrb[0].mxu0
    %v2638 = vadd.f32 %v2510, %v2637
    %v2639 = vpop.f32.mrb[0].mxu0
    %2640 = vmatprep.mubr.f32.mxu0 %v1957
    %2641 = vmatmul.mubr.f32.gmra.mrb[0].mxu0 %v1956
    %v2642 = vpop.f32.mrb[0].mxu0
    %v2643 = vadd.f32 %v2515, %v2642
    %v2644 = vpop.f32.mrb[0].mxu0
    %2645 = vmatprep.mubr.f32.mxu0 %v1962
    %2646 = vmatmul.mubr.f32.gmra.mrb[0].mxu0 %v1961
    %v2647 = vpop.f32.mrb[0].mxu0
    %v2648 = vadd.f32 %v2520, %v2647
    %v2649 = vpop.f32.mrb[0].mxu0
    %2650 = vdwg.mxu0
    %2651 = vmatprep.subr.mxu0 0.0
    %2652 = vmatpush1.msra.mxu0 %v1998
    %2653 = vmatprep.subr.mxu0 0.0
    %2654 = vmatpush1.msra.mxu0 %v1999
    %2655 = vmatprep.subr.mxu0 0.0
    %2656 = vmatpush1.msra.mxu0 %v2000
    %2657 = vmatprep.subr.mxu0 0.0
    %2658 = vmatpush1.msra.mxu0 %v2001
    %2659 = vmatprep.subr.mxu0 0.0
    %2660 = vmatpush1.msra.mxu0 %v2002
    %2661 = vmatprep.subr.mxu0 0.0
    %2662 = vmatpush1.msra.mxu0 %v2003
    %2663 = vmatprep.subr.mxu0 0.0
    %2664 = vmatpush1.msra.mxu0 %v2004
    %2665 = vmatprep.subr.mxu0 0.0
    %2666 = vmatpush1.msra.mxu0 %v2005
    %2667 = vmatprep.subr.mxu0 0.0
    %2668 = vmatpush1.msra.mxu0 %v2006
    %2669 = vmatprep.subr.mxu0 0.0
    %2670 = vmatpush1.msra.mxu0 %v2007
    %2671 = vmatprep.subr.mxu0 0.0
    %2672 = vmatpush1.msra.mxu0 %v2008
    %2673 = vmatprep.subr.mxu0 0.0
    %2674 = vmatpush1.msra.mxu0 %v2009
    %2675 = vmatprep.subr.mxu0 0.0
    %2676 = vmatpush1.msra.mxu0 %v2010
    %2677 = vmatprep.subr.mxu0 0.0
    %2678 = vmatpush1.msra.mxu0 %v2011
    %2679 = vmatprep.subr.mxu0 0.0
    %2680 = vmatpush1.msra.mxu0 %v2012
    %2681 = vmatprep.subr.mxu0 0.0
    %2682 = vmatpush1.msra.mxu0 %v2013
    %2683 = vmatprep.subr.mxu0 0.0
    %2684 = vmatpush1.msra.mxu0 %v2014
    %2685 = vmatprep.subr.mxu0 0.0
    %2686 = vmatpush1.msra.mxu0 %v2015
    %2687 = vmatprep.subr.mxu0 0.0
    %2688 = vmatpush1.msra.mxu0 %v2016
    %2689 = vmatprep.subr.mxu0 0.0
    %2690 = vmatpush1.msra.mxu0 %v2017
    %2691 = vmatprep.subr.mxu0 0.0
    %2692 = vmatpush1.msra.mxu0 %v2018
    %2693 = vmatprep.subr.mxu0 0.0
    %2694 = vmatpush1.msra.mxu0 %v2019
    %2695 = vmatprep.subr.mxu0 0.0
    %2696 = vmatpush1.msra.mxu0 %v2020
    %2697 = vmatprep.subr.mxu0 0.0
    %2698 = vmatpush1.msra.mxu0 %v2021
    %2699 = vmatprep.subr.mxu0 0.0
    %2700 = vmatpush1.msra.mxu0 %v2022
    %2701 = vmatprep.subr.mxu0 0.0
    %2702 = vmatpush1.msra.mxu0 %v2023
    %2703 = vmatprep.subr.mxu0 0.0
    %2704 = vmatpush1.msra.mxu0 %v2024
    %2705 = vmatprep.subr.mxu0 0.0
    %2706 = vmatpush1.msra.mxu0 %v2025
    %2707 = vmatprep.subr.mxu0 0.0
    %2708 = vmatpush1.msra.mxu0 %v2026
    %2709 = vmatprep.subr.mxu0 0.0
    %2710 = vmatpush1.msra.mxu0 %v2027
    %2711 = vmatprep.subr.mxu0 0.0
    %2712 = vmatpush1.msra.mxu0 %v2028
    %2713 = vmatprep.subr.mxu0 0.0
    %2714 = vmatpush1.msra.mxu0 %v2029
    %2715 = vmatprep.mubr.f32.mxu0 %v1909
    %2716 = vmatmul.mubr.f32.gmra.mrb[0].mxu0 %v1908
    %v2717 = vpop.f32.mrb[0].mxu0
    %v2718 = vadd.f32 %v2593, %v2717
    %v2719 = vpop.f32.mrb[0].mxu0
    %2720 = vmatprep.mubr.f32.mxu0 %v1914
    %2721 = vmatmul.mubr.f32.gmra.mrb[0].mxu0 %v1913
    %v2722 = vpop.f32.mrb[0].mxu0
    %v2723 = vadd.f32 %v2598, %v2722
    %v2724 = vpop.f32.mrb[0].mxu0
    %2725 = vmatprep.mubr.f32.mxu0 %v1919
    %2726 = vmatmul.mubr.f32.gmra.mrb[0].mxu0 %v1918
    %v2727 = vpop.f32.mrb[0].mxu0
    %v2728 = vadd.f32 %v2603, %v2727
    %v2729 = vpop.f32.mrb[0].mxu0
    %2730 = vmatprep.mubr.f32.mxu0 %v1924
    %2731 = vmatmul.mubr.f32.gmra.mrb[0].mxu0 %v1923
    %v2732 = vpop.f32.mrb[0].mxu0
    %v2733 = vadd.f32 %v2608, %v2732
    %v2734 = vpop.f32.mrb[0].mxu0
    %2735 = vmatprep.mubr.f32.mxu0 %v1929
    %2736 = vmatmul.mubr.f32.gmra.mrb[0].mxu0 %v1928
    %v2737 = vpop.f32.mrb[0].mxu0
    %v2738 = vadd.f32 %v2613, %v2737
    %v2739 = vpop.f32.mrb[0].mxu0
    %2740 = vmatprep.mubr.f32.mxu0 %v1934
    %2741 = vmatmul.mubr.f32.gmra.mrb[0].mxu0 %v1933
    %v2742 = vpop.f32.mrb[0].mxu0
    %v2743 = vadd.f32 %v2618, %v2742
    %v2744 = vpop.f32.mrb[0].mxu0
    %2745 = vmatprep.mubr.f32.mxu0 %v1939
    %2746 = vmatmul.mubr.f32.gmra.mrb[0].mxu0 %v1938
    %v2747 = vpop.f32.mrb[0].mxu0
    %v2748 = vadd.f32 %v2623, %v2747
    %v2749 = vpop.f32.mrb[0].mxu0
    %2750 = vmatprep.mubr.f32.mxu0 %v1944
    %2751 = vmatmul.mubr.f32.gmra.mrb[0].mxu0 %v1943
    %v2752 = vpop.f32.mrb[0].mxu0
    %v2753 = vadd.f32 %v2628, %v2752
    %v2754 = vpop.f32.mrb[0].mxu0
    %2755 = vmatprep.mubr.f32.mxu0 %v1949
    %2756 = vmatmul.mubr.f32.gmra.mrb[0].mxu0 %v1948
    %v2757 = vpop.f32.mrb[0].mxu0
    %v2758 = vadd.f32 %v2633, %v2757
    %v2759 = vpop.f32.mrb[0].mxu0
    %2760 = vmatprep.mubr.f32.mxu0 %v1954
    %2761 = vmatmul.mubr.f32.gmra.mrb[0].mxu0 %v1953
    %v2762 = vpop.f32.mrb[0].mxu0
    %v2763 = vadd.f32 %v2638, %v2762
    %v2764 = vpop.f32.mrb[0].mxu0
    %2765 = vmatprep.mubr.f32.mxu0 %v1959
    %2766 = vmatmul.mubr.f32.gmra.mrb[0].mxu0 %v1958
    %v2767 = vpop.f32.mrb[0].mxu0
    %v2768 = vadd.f32 %v2643, %v2767
    %v2769 = vpop.f32.mrb[0].mxu0
    %2770 = vmatprep.mubr.f32.mxu0 %v1964
    %2771 = vmatmul.mubr.f32.gmra.mrb[0].mxu0 %v1963
    %v2772 = vpop.f32.mrb[0].mxu0
    %v2773 = vadd.f32 %v2648, %v2772
    %v2774 = vpop.f32.mrb[0].mxu0
    %2775 = vdwg.mxu0
    %2776 = vmatprep.subr.mxu0 0.0
    %2777 = vmatpush1.msra.mxu0 %v2030
    %2778 = vmatprep.subr.mxu0 0.0
    %2779 = vmatpush1.msra.mxu0 %v2031
    %2780 = vmatprep.subr.mxu0 0.0
    %2781 = vmatpush1.msra.mxu0 %v2032
    %2782 = vmatprep.subr.mxu0 0.0
    %2783 = vmatpush1.msra.mxu0 %v2033
    %2784 = vmatprep.subr.mxu0 0.0
    %2785 = vmatpush1.msra.mxu0 %v2034
    %2786 = vmatprep.subr.mxu0 0.0
    %2787 = vmatpush1.msra.mxu0 %v2035
    %2788 = vmatprep.subr.mxu0 0.0
    %2789 = vmatpush1.msra.mxu0 0.0
    %2790 = vmatprep.subr.mxu0 0.0
    %2791 = vmatpush1.msra.mxu0 0.0
    %2792 = vmatprep.subr.mxu0 0.0
    %2793 = vmatpush1.msra.mxu0 0.0
    %2794 = vmatprep.subr.mxu0 0.0
    %2795 = vmatpush1.msra.mxu0 0.0
    %2796 = vmatprep.subr.mxu0 0.0
    %2797 = vmatpush1.msra.mxu0 0.0
    %2798 = vmatprep.subr.mxu0 0.0
    %2799 = vmatpush1.msra.mxu0 0.0
    %2800 = vmatprep.subr.mxu0 0.0
    %2801 = vmatpush1.msra.mxu0 0.0
    %2802 = vmatprep.subr.mxu0 0.0
    %2803 = vmatpush1.msra.mxu0 0.0
    %2804 = vmatprep.subr.mxu0 0.0
    %2805 = vmatpush1.msra.mxu0 0.0
    %2806 = vmatprep.subr.mxu0 0.0
    %2807 = vmatpush1.msra.mxu0 0.0
    %2808 = vmatprep.subr.mxu0 0.0
    %2809 = vmatpush1.msra.mxu0 0.0
    %2810 = vmatprep.subr.mxu0 0.0
    %2811 = vmatpush1.msra.mxu0 0.0
    %2812 = vmatprep.subr.mxu0 0.0
    %2813 = vmatpush1.msra.mxu0 0.0
    %2814 = vmatprep.subr.mxu0 0.0
    %2815 = vmatpush1.msra.mxu0 0.0
    %2816 = vmatprep.subr.mxu0 0.0
    %2817 = vmatpush1.msra.mxu0 0.0
    %2818 = vmatprep.subr.mxu0 0.0
    %2819 = vmatpush1.msra.mxu0 0.0
    %2820 = vmatprep.subr.mxu0 0.0
    %2821 = vmatpush1.msra.mxu0 0.0
    %2822 = vmatprep.subr.mxu0 0.0
    %2823 = vmatpush1.msra.mxu0 0.0
    %2824 = vmatprep.subr.mxu0 0.0
    %2825 = vmatpush1.msra.mxu0 0.0
    %2826 = vmatprep.subr.mxu0 0.0
    %2827 = vmatpush1.msra.mxu0 0.0
    %2828 = vmatprep.subr.mxu0 0.0
    %2829 = vmatpush1.msra.mxu0 0.0
    %2830 = vmatprep.subr.mxu0 0.0
    %2831 = vmatpush1.msra.mxu0 0.0
    %2832 = vmatprep.subr.mxu0 0.0
    %2833 = vmatpush1.msra.mxu0 0.0
    %2834 = vmatprep.subr.mxu0 0.0
    %2835 = vmatpush1.msra.mxu0 0.0
    %2836 = vmatprep.subr.mxu0 0.0
    %2837 = vmatpush1.msra.mxu0 0.0
    %2838 = vmatprep.subr.mxu0 0.0
    %2839 = vmatpush1.msra.mxu0 0.0
    %2840 = vmatprep.mubr.f32.mxu0 0.0
    %2841 = vmatmul.mubr.f32.gmra.mrb[0].mxu0 %v2524
    %v2842 = vpop.f32.mrb[0].mxu0
    %v2843 = vadd.f32 %v2718, %v2842
    %v2844 = vpop.f32.mrb[0].mxu0
    %2845 = vmatprep.mubr.f32.mxu0 0.0
    %2846 = vmatmul.mubr.f32.gmra.mrb[0].mxu0 %v2113
    %v2847 = vpop.f32.mrb[0].mxu0
    %v2848 = vadd.f32 %v2723, %v2847
    %v2849 = vpop.f32.mrb[0].mxu0
    %2850 = vmatprep.mubr.f32.mxu0 0.0
    %2851 = vmatmul.mubr.f32.gmra.mrb[0].mxu0 %v2116
    %v2852 = vpop.f32.mrb[0].mxu0
    %v2853 = vadd.f32 %v2728, %v2852
    %v2854 = vpop.f32.mrb[0].mxu0
    %2855 = vmatprep.mubr.f32.mxu0 0.0
    %2856 = vmatmul.mubr.f32.gmra.mrb[0].mxu0 %v2119
    %v2857 = vpop.f32.mrb[0].mxu0
    %v2858 = vadd.f32 %v2733, %v2857
    %v2859 = vpop.f32.mrb[0].mxu0
    %2860 = vmatprep.mubr.f32.mxu0 0.0
    %2861 = vmatmul.mubr.f32.gmra.mrb[0].mxu0 %v2122
    %v2862 = vpop.f32.mrb[0].mxu0
    %v2863 = vadd.f32 %v2738, %v2862
    %v2864 = vpop.f32.mrb[0].mxu0
    %2865 = vmatprep.mubr.f32.mxu0 0.0
    %2866 = vmatmul.mubr.f32.gmra.mrb[0].mxu0 %v2125
    %v2867 = vpop.f32.mrb[0].mxu0
    %v2868 = vadd.f32 %v2743, %v2867
    %v2869 = vpop.f32.mrb[0].mxu0
    %2870 = vmatprep.mubr.f32.mxu0 0.0
    %2871 = vmatmul.mubr.f32.gmra.mrb[0].mxu0 %v2128
    %v2872 = vpop.f32.mrb[0].mxu0
    %v2873 = vadd.f32 %v2748, %v2872
    %v2874 = vpop.f32.mrb[0].mxu0
    %2875 = vmatprep.mubr.f32.mxu0 0.0
    %2876 = vmatmul.mubr.f32.gmra.mrb[0].mxu0 %v2131
    %v2877 = vpop.f32.mrb[0].mxu0
    %v2878 = vadd.f32 %v2753, %v2877
    %v2879 = vpop.f32.mrb[0].mxu0
    %2880 = vmatprep.mubr.f32.mxu0 0.0
    %2881 = vmatmul.mubr.f32.gmra.mrb[0].mxu0 %v2134
    %v2882 = vpop.f32.mrb[0].mxu0
    %v2883 = vadd.f32 %v2758, %v2882
    %v2884 = vpop.f32.mrb[0].mxu0
    %2885 = vmatprep.mubr.f32.mxu0 0.0
    %2886 = vmatmul.mubr.f32.gmra.mrb[0].mxu0 %v2137
    %v2887 = vpop.f32.mrb[0].mxu0
    %v2888 = vadd.f32 %v2763, %v2887
    %v2889 = vpop.f32.mrb[0].mxu0
    %2890 = vmatprep.mubr.f32.mxu0 0.0
    %2891 = vmatmul.mubr.f32.gmra.mrb[0].mxu0 %v2140
    %v2892 = vpop.f32.mrb[0].mxu0
    %v2893 = vadd.f32 %v2768, %v2892
    %v2894 = vpop.f32.mrb[0].mxu0
    %2895 = vmatprep.mubr.f32.mxu0 0.0
    %2896 = vmatmul.mubr.f32.gmra.mrb[0].mxu0 %v2143
    %v2897 = vpop.f32.mrb[0].mxu0
    %v2898 = vadd.f32 %v2773, %v2897
    %v2899 = vpop.f32.mrb[0].mxu0
    %2900 = vdwg.mxu0
    %v2901 = vld [vmem:[#allocation2 + $0x50] sm:$0xff]
    %v2902 = vld [vmem:[#allocation2 + $0x58] sm:$0xff]
    %v2903 = vld [vmem:[#allocation2 + $0x60] sm:$0xff]
    %v2904 = vld [vmem:[#allocation2 + $0x68] sm:$0xff]
    %v2905 = vld [vmem:[#allocation2 + $0x70] sm:$0xff]
    %v2906 = vld [vmem:[#allocation2 + $0x78] sm:$0xff]
    %v2907 = vld [vmem:[#allocation2 + $0x80] sm:$0xff]
    %v2908 = vld [vmem:[#allocation2 + $0x88] sm:$0xff]
    %v2909 = vld [vmem:[#allocation2 + $0x90] sm:$0xff]
    %v2910 = vld [vmem:[#allocation2 + $0x98] sm:$0xff]
    %v2911 = vld [vmem:[#allocation2 + $0xa0] sm:$0xff]
    %v2912 = vld [vmem:[#allocation2 + $0xa8] sm:$0xff]
    %v2913 = vld [vmem:[#allocation2 + $0xb0] sm:$0xff]
    %v2914 = vld [vmem:[#allocation2 + $0xb8] sm:$0xff]
    %v2915 = vld [vmem:[#allocation2 + $0xc0] sm:$0xff]
    %v2916 = vld [vmem:[#allocation2 + $0xc8] sm:$0xff]
    %v2917 = vld [vmem:[#allocation2 + $0xd0] sm:$0xff]
    %v2918 = vld [vmem:[#allocation2 + $0xd8] sm:$0xff]
    %v2919 = vld [vmem:[#allocation2 + $0xe0] sm:$0xff]
    %v2920 = vld [vmem:[#allocation2 + $0xe8] sm:$0xff]
    %v2921 = vld [vmem:[#allocation2 + $0xf0] sm:$0xff]
    %v2922 = vld [vmem:[#allocation2 + $0xf8] sm:$0xff]
    %v2923 = vld [vmem:[#allocation2 + $0x100] sm:$0xff]
    %v2924 = vld [vmem:[#allocation2 + $0x108] sm:$0xff]
    %v2925 = vld [vmem:[#allocation2 + $0x110] sm:$0xff]
    %v2926 = vld [vmem:[#allocation2 + $0x118] sm:$0xff]
    %v2927 = vld [vmem:[#allocation2 + $0x120] sm:$0xff]
    %v2928 = vld [vmem:[#allocation2 + $0x128] sm:$0xff]
    %v2929 = vld [vmem:[#allocation2 + $0x130] sm:$0xff]
    %v2930 = vld [vmem:[#allocation2 + $0x138] sm:$0xff]
    %v2931 = vld [vmem:[#allocation2 + $0x140] sm:$0xff]
    %v2932 = vld [vmem:[#allocation2 + $0x148] sm:$0xff]
    %v2933 = vld [vmem:[#allocation2 + $0x150] sm:$0xff]
    %v2934 = vld [vmem:[#allocation2 + $0x158] sm:$0xff]
    %v2935 = vld [vmem:[#allocation2 + $0x160] sm:$0xff]
    %v2936 = vld [vmem:[#allocation2 + $0x168] sm:$0xff]
    %v2937 = vld [vmem:[#allocation2 + $0x170] sm:$0xff]
    %v2938 = vld [vmem:[#allocation2 + $0x178] sm:$0xff]
    %v2939 = vld [vmem:[#allocation2 + $0x180] sm:$0xff]
    %v2940 = vld [vmem:[#allocation2 + $0x188] sm:$0xff]
    %v2941 = vld [vmem:[#allocation2 + $0x190] sm:$0xff]
    %v2942 = vld [vmem:[#allocation2 + $0x198] sm:$0xff]
    %v2943 = vld [vmem:[#allocation2 + $0x1a0] sm:$0xff]
    %v2944 = vld [vmem:[#allocation2 + $0x1a8] sm:$0xff]
    %v2945 = vld [vmem:[#allocation2 + $0x1b0] sm:$0xff]
    %v2946 = vld [vmem:[#allocation2 + $0x1b8] sm:$0xff]
    %v2947 = vld [vmem:[#allocation2 + $0x1c0] sm:$0xff]
    %v2948 = vld [vmem:[#allocation2 + $0x1c8] sm:$0xff]
    %v2949 = vld [vmem:[#allocation2 + $0x1d0] sm:$0xff]
    %v2950 = vld [vmem:[#allocation2 + $0x1d8] sm:$0xff]
    %v2951 = vld [vmem:[#allocation2 + $0x1e0] sm:$0xff]
    %v2952 = vld [vmem:[#allocation2 + $0x1e8] sm:$0xff]
    %v2953 = vld [vmem:[#allocation2 + $0x1f0] sm:$0xff]
    %v2954 = vld [vmem:[#allocation2 + $0x1f8] sm:$0xff]
    %v2955 = vld [vmem:[#allocation2 + $0x200] sm:$0xff]
    %v2956 = vld [vmem:[#allocation2 + $0x208] sm:$0xff]
    %v2957 = vld [vmem:[#allocation2 + $0x210] sm:$0xff]
    %v2958 = vld [vmem:[#allocation2 + $0x218] sm:$0xff]
    %v2959 = vld [vmem:[#allocation2 + $0x220] sm:$0xff]
    %v2960 = vld [vmem:[#allocation2 + $0x228] sm:$0xff]
    %s2961 = scalar_lea.vmem %s3, 1120
    %v2962 = vld [vmem:[%s2961] sm:$0xff]
    %v2963 = vld [vmem:[%s2961 + $0x8] sm:$0xff]
    %v2964 = vld [vmem:[%s2961 + $0x10] sm:$0xff]
    %v2965 = vld [vmem:[%s2961 + $0x18] sm:$0xff]
    %v2966 = vld [vmem:[%s2961 + $0x20] sm:$0xff]
    %v2967 = vld [vmem:[%s2961 + $0x28] sm:$0xff]
    %v2968 = vld [vmem:[%s2961 + $0x30] sm:$0xff]
    %v2969 = vld [vmem:[%s2961 + $0x38] sm:$0xff]
    %v2970 = vld [vmem:[%s2961 + $0x40] sm:$0xff]
    %v2971 = vld [vmem:[%s2961 + $0x48] sm:$0xff]
    %v2972 = vld [vmem:[%s2961 + $0x50] sm:$0xff]
    %v2973 = vld [vmem:[%s2961 + $0x58] sm:$0xff]
    %v2974 = vld [vmem:[%s2961 + $0x60] sm:$0xff]
    %v2975 = vld [vmem:[%s2961 + $0x68] sm:$0xff]
    %v2976 = vld [vmem:[%s2961 + $0x70] sm:$0xff]
    %v2977 = vld [vmem:[%s2961 + $0x78] sm:$0xff]
    %v2978 = vld [vmem:[%s2961 + $0x80] sm:$0xff]
    %v2979 = vld [vmem:[%s2961 + $0x88] sm:$0xff]
    %v2980 = vld [vmem:[%s2961 + $0x90] sm:$0xff]
    %v2981 = vld [vmem:[%s2961 + $0x98] sm:$0xff]
    %v2982 = vld [vmem:[%s2961 + $0xa0] sm:$0xff]
    %v2983 = vld [vmem:[%s2961 + $0xa8] sm:$0xff]
    %v2984 = vld [vmem:[%s2961 + $0xb0] sm:$0xff]
    %v2985 = vld [vmem:[%s2961 + $0xb8] sm:$0xff]
    %v2986 = vld [vmem:[%s2961 + $0xc0] sm:$0xff]
    %v2987 = vld [vmem:[%s2961 + $0xc8] sm:$0xff]
    %v2988 = vld [vmem:[%s2961 + $0xd0] sm:$0xff]
    %v2989 = vld [vmem:[%s2961 + $0xd8] sm:$0xff]
    %v2990 = vld [vmem:[%s2961 + $0xe0] sm:$0xff]
    %v2991 = vld [vmem:[%s2961 + $0xe8] sm:$0xff]
    %v2992 = vld [vmem:[%s2961 + $0xf0] sm:$0xff]
    %v2993 = vld [vmem:[%s2961 + $0xf8] sm:$0xff]
    %v2994 = vld [vmem:[%s2961 + $0x100] sm:$0xff]
    %v2995 = vld [vmem:[%s2961 + $0x108] sm:$0xff]
    %v2996 = vld [vmem:[%s2961 + $0x110] sm:$0xff]
    %v2997 = vld [vmem:[%s2961 + $0x118] sm:$0xff]
    %v2998 = vld [vmem:[%s2961 + $0x120] sm:$0xff]
    %v2999 = vld [vmem:[%s2961 + $0x128] sm:$0xff]
    %v3000 = vld [vmem:[%s2961 + $0x130] sm:$0xff]
    %v3001 = vld [vmem:[%s2961 + $0x138] sm:$0xff]
    %v3002 = vld [vmem:[%s2961 + $0x140] sm:$0xff]
    %v3003 = vld [vmem:[%s2961 + $0x148] sm:$0xff]
    %v3004 = vld [vmem:[%s2961 + $0x150] sm:$0xff]
    %v3005 = vld [vmem:[%s2961 + $0x158] sm:$0xff]
    %v3006 = vld [vmem:[%s2961 + $0x160] sm:$0xff]
    %v3007 = vld [vmem:[%s2961 + $0x168] sm:$0xff]
    %v3008 = vld [vmem:[%s2961 + $0x170] sm:$0xff]
    %v3009 = vld [vmem:[%s2961 + $0x178] sm:$0xff]
    %v3010 = vld [vmem:[%s2961 + $0x180] sm:$0xff]
    %v3011 = vld [vmem:[%s2961 + $0x188] sm:$0xff]
    %v3012 = vld [vmem:[%s2961 + $0x190] sm:$0xff]
    %v3013 = vld [vmem:[%s2961 + $0x198] sm:$0xff]
    %v3014 = vld [vmem:[%s2961 + $0x1a0] sm:$0xff]
    %v3015 = vld [vmem:[%s2961 + $0x1a8] sm:$0xff]
    %v3016 = vld [vmem:[%s2961 + $0x1b0] sm:$0xff]
    %v3017 = vld [vmem:[%s2961 + $0x1b8] sm:$0xff]
    %v3018 = vld [vmem:[%s2961 + $0x1c0] sm:$0xff]
    %v3019 = vld [vmem:[%s2961 + $0x1c8] sm:$0xff]
    %v3020 = vld [vmem:[%s2961 + $0x1d0] sm:$0xff]
    %v3021 = vld [vmem:[%s2961 + $0x1d8] sm:$0xff]
    %v3022 = vld [vmem:[%s2961 + $0x1e0] sm:$0xff]
    %v3023 = vld [vmem:[%s2961 + $0x1e8] sm:$0xff]
    %v3024 = vld [vmem:[%s2961 + $0x1f0] sm:$0xff]
    %v3025 = vld [vmem:[%s2961 + $0x1f8] sm:$0xff]
    %v3026 = vld [vmem:[%s2961 + $0x200] sm:$0xff]
    %v3027 = vld [vmem:[%s2961 + $0x208] sm:$0xff]
    %v3028 = vld [vmem:[%s2961 + $0x210] sm:$0xff]
    %v3029 = vld [vmem:[%s2961 + $0x218] sm:$0xff]
    %v3030 = vld [vmem:[%s2961 + $0x220] sm:$0xff]
    %v3031 = vld [vmem:[%s2961 + $0x228] sm:$0xff]
    %v3033 = vsel %vm1839, %v2905, 0
    %v3036 = vsel %vm1839, %v2910, 0
    %v3039 = vsel %vm1839, %v2915, 0
    %v3042 = vsel %vm1839, %v2920, 0
    %v3045 = vsel %vm1839, %v2925, 0
    %v3048 = vsel %vm1839, %v2930, 0
    %v3051 = vsel %vm1839, %v2935, 0
    %v3054 = vsel %vm1839, %v2940, 0
    %v3057 = vsel %vm1839, %v2945, 0
    %v3060 = vsel %vm1839, %v2950, 0
    %v3063 = vsel %vm1839, %v2955, 0
    %v3066 = vsel %vm1839, %v2960, 0
    %3068 = vmatprep.subr.mxu0 0.0
    %3069 = vmatpush1.msra.mxu0 %v2962
    %3070 = vmatprep.subr.mxu0 0.0
    %3071 = vmatpush1.msra.mxu0 %v2963
    %3072 = vmatprep.subr.mxu0 0.0
    %3073 = vmatpush1.msra.mxu0 %v2964
    %3074 = vmatprep.subr.mxu0 0.0
    %3075 = vmatpush1.msra.mxu0 %v2965
    %3076 = vmatprep.subr.mxu0 0.0
    %3077 = vmatpush1.msra.mxu0 %v2966
    %3078 = vmatprep.subr.mxu0 0.0
    %3079 = vmatpush1.msra.mxu0 %v2967
    %3080 = vmatprep.subr.mxu0 0.0
    %3081 = vmatpush1.msra.mxu0 %v2968
    %3082 = vmatprep.subr.mxu0 0.0
    %3083 = vmatpush1.msra.mxu0 %v2969
    %3084 = vmatprep.subr.mxu0 0.0
    %3085 = vmatpush1.msra.mxu0 %v2970
    %3086 = vmatprep.subr.mxu0 0.0
    %3087 = vmatpush1.msra.mxu0 %v2971
    %3088 = vmatprep.subr.mxu0 0.0
    %3089 = vmatpush1.msra.mxu0 %v2972
    %3090 = vmatprep.subr.mxu0 0.0
    %3091 = vmatpush1.msra.mxu0 %v2973
    %3092 = vmatprep.subr.mxu0 0.0
    %3093 = vmatpush1.msra.mxu0 %v2974
    %3094 = vmatprep.subr.mxu0 0.0
    %3095 = vmatpush1.msra.mxu0 %v2975
    %3096 = vmatprep.subr.mxu0 0.0
    %3097 = vmatpush1.msra.mxu0 %v2976
    %3098 = vmatprep.subr.mxu0 0.0
    %3099 = vmatpush1.msra.mxu0 %v2977
    %3100 = vmatprep.subr.mxu0 0.0
    %3101 = vmatpush1.msra.mxu0 %v2978
    %3102 = vmatprep.subr.mxu0 0.0
    %3103 = vmatpush1.msra.mxu0 %v2979
    %3104 = vmatprep.subr.mxu0 0.0
    %3105 = vmatpush1.msra.mxu0 %v2980
    %3106 = vmatprep.subr.mxu0 0.0
    %3107 = vmatpush1.msra.mxu0 %v2981
    %3108 = vmatprep.subr.mxu0 0.0
    %3109 = vmatpush1.msra.mxu0 %v2982
    %3110 = vmatprep.subr.mxu0 0.0
    %3111 = vmatpush1.msra.mxu0 %v2983
    %3112 = vmatprep.subr.mxu0 0.0
    %3113 = vmatpush1.msra.mxu0 %v2984
    %3114 = vmatprep.subr.mxu0 0.0
    %3115 = vmatpush1.msra.mxu0 %v2985
    %3116 = vmatprep.subr.mxu0 0.0
    %3117 = vmatpush1.msra.mxu0 %v2986
    %3118 = vmatprep.subr.mxu0 0.0
    %3119 = vmatpush1.msra.mxu0 %v2987
    %3120 = vmatprep.subr.mxu0 0.0
    %3121 = vmatpush1.msra.mxu0 %v2988
    %3122 = vmatprep.subr.mxu0 0.0
    %3123 = vmatpush1.msra.mxu0 %v2989
    %3124 = vmatprep.subr.mxu0 0.0
    %3125 = vmatpush1.msra.mxu0 %v2990
    %3126 = vmatprep.subr.mxu0 0.0
    %3127 = vmatpush1.msra.mxu0 %v2991
    %3128 = vmatprep.subr.mxu0 0.0
    %3129 = vmatpush1.msra.mxu0 %v2992
    %3130 = vmatprep.subr.mxu0 0.0
    %3131 = vmatpush1.msra.mxu0 %v2993
    %3132 = vmatprep.mubr.f32.mxu0 %v2902
    %3133 = vmatmul.mubr.f32.gmra.mrb[0].mxu0 %v2901
    %v3134 = vpop.f32.mrb[0].mxu0
    %v3135 = vadd.f32 0.0, %v3134
    %v3136 = vpop.f32.mrb[0].mxu0
    %3137 = vmatprep.mubr.f32.mxu0 %v2907
    %3138 = vmatmul.mubr.f32.gmra.mrb[0].mxu0 %v2906
    %v3139 = vpop.f32.mrb[0].mxu0
    %v3140 = vadd.f32 0.0, %v3139
    %v3141 = vpop.f32.mrb[0].mxu0
    %3142 = vmatprep.mubr.f32.mxu0 %v2912
    %3143 = vmatmul.mubr.f32.gmra.mrb[0].mxu0 %v2911
    %v3144 = vpop.f32.mrb[0].mxu0
    %v3145 = vadd.f32 0.0, %v3144
    %v3146 = vpop.f32.mrb[0].mxu0
    %3147 = vmatprep.mubr.f32.mxu0 %v2917
    %3148 = vmatmul.mubr.f32.gmra.mrb[0].mxu0 %v2916
    %v3149 = vpop.f32.mrb[0].mxu0
    %v3150 = vadd.f32 0.0, %v3149
    %v3151 = vpop.f32.mrb[0].mxu0
    %3152 = vmatprep.mubr.f32.mxu0 %v2922
    %3153 = vmatmul.mubr.f32.gmra.mrb[0].mxu0 %v2921
    %v3154 = vpop.f32.mrb[0].mxu0
    %v3155 = vadd.f32 0.0, %v3154
    %v3156 = vpop.f32.mrb[0].mxu0
    %3157 = vmatprep.mubr.f32.mxu0 %v2927
    %3158 = vmatmul.mubr.f32.gmra.mrb[0].mxu0 %v2926
    %v3159 = vpop.f32.mrb[0].mxu0
    %v3160 = vadd.f32 0.0, %v3159
    %v3161 = vpop.f32.mrb[0].mxu0
    %3162 = vmatprep.mubr.f32.mxu0 %v2932
    %3163 = vmatmul.mubr.f32.gmra.mrb[0].mxu0 %v2931
    %v3164 = vpop.f32.mrb[0].mxu0
    %v3165 = vadd.f32 0.0, %v3164
    %v3166 = vpop.f32.mrb[0].mxu0
    %3167 = vmatprep.mubr.f32.mxu0 %v2937
    %3168 = vmatmul.mubr.f32.gmra.mrb[0].mxu0 %v2936
    %v3169 = vpop.f32.mrb[0].mxu0
    %v3170 = vadd.f32 0.0, %v3169
    %v3171 = vpop.f32.mrb[0].mxu0
    %3172 = vmatprep.mubr.f32.mxu0 %v2942
    %3173 = vmatmul.mubr.f32.gmra.mrb[0].mxu0 %v2941
    %v3174 = vpop.f32.mrb[0].mxu0
    %v3175 = vadd.f32 0.0, %v3174
    %v3176 = vpop.f32.mrb[0].mxu0
    %3177 = vmatprep.mubr.f32.mxu0 %v2947
    %3178 = vmatmul.mubr.f32.gmra.mrb[0].mxu0 %v2946
    %v3179 = vpop.f32.mrb[0].mxu0
    %v3180 = vadd.f32 0.0, %v3179
    %v3181 = vpop.f32.mrb[0].mxu0
    %3182 = vmatprep.mubr.f32.mxu0 %v2952
    %3183 = vmatmul.mubr.f32.gmra.mrb[0].mxu0 %v2951
    %v3184 = vpop.f32.mrb[0].mxu0
    %v3185 = vadd.f32 0.0, %v3184
    %v3186 = vpop.f32.mrb[0].mxu0
    %3187 = vmatprep.mubr.f32.mxu0 %v2957
    %3188 = vmatmul.mubr.f32.gmra.mrb[0].mxu0 %v2956
    %v3189 = vpop.f32.mrb[0].mxu0
    %v3190 = vadd.f32 0.0, %v3189
    %v3191 = vpop.f32.mrb[0].mxu0
    %3192 = vdwg.mxu0
    %3193 = vmatprep.subr.mxu0 0.0
    %3194 = vmatpush1.msra.mxu0 %v2994
    %3195 = vmatprep.subr.mxu0 0.0
    %3196 = vmatpush1.msra.mxu0 %v2995
    %3197 = vmatprep.subr.mxu0 0.0
    %3198 = vmatpush1.msra.mxu0 %v2996
    %3199 = vmatprep.subr.mxu0 0.0
    %3200 = vmatpush1.msra.mxu0 %v2997
    %3201 = vmatprep.subr.mxu0 0.0
    %3202 = vmatpush1.msra.mxu0 %v2998
    %3203 = vmatprep.subr.mxu0 0.0
    %3204 = vmatpush1.msra.mxu0 %v2999
    %3205 = vmatprep.subr.mxu0 0.0
    %3206 = vmatpush1.msra.mxu0 %v3000
    %3207 = vmatprep.subr.mxu0 0.0
    %3208 = vmatpush1.msra.mxu0 %v3001
    %3209 = vmatprep.subr.mxu0 0.0
    %3210 = vmatpush1.msra.mxu0 %v3002
    %3211 = vmatprep.subr.mxu0 0.0
    %3212 = vmatpush1.msra.mxu0 %v3003
    %3213 = vmatprep.subr.mxu0 0.0
    %3214 = vmatpush1.msra.mxu0 %v3004
    %3215 = vmatprep.subr.mxu0 0.0
    %3216 = vmatpush1.msra.mxu0 %v3005
    %3217 = vmatprep.subr.mxu0 0.0
    %3218 = vmatpush1.msra.mxu0 %v3006
    %3219 = vmatprep.subr.mxu0 0.0
    %3220 = vmatpush1.msra.mxu0 %v3007
    %3221 = vmatprep.subr.mxu0 0.0
    %3222 = vmatpush1.msra.mxu0 %v3008
    %3223 = vmatprep.subr.mxu0 0.0
    %3224 = vmatpush1.msra.mxu0 %v3009
    %3225 = vmatprep.subr.mxu0 0.0
    %3226 = vmatpush1.msra.mxu0 %v3010
    %3227 = vmatprep.subr.mxu0 0.0
    %3228 = vmatpush1.msra.mxu0 %v3011
    %3229 = vmatprep.subr.mxu0 0.0
    %3230 = vmatpush1.msra.mxu0 %v3012
    %3231 = vmatprep.subr.mxu0 0.0
    %3232 = vmatpush1.msra.mxu0 %v3013
    %3233 = vmatprep.subr.mxu0 0.0
    %3234 = vmatpush1.msra.mxu0 %v3014
    %3235 = vmatprep.subr.mxu0 0.0
    %3236 = vmatpush1.msra.mxu0 %v3015
    %3237 = vmatprep.subr.mxu0 0.0
    %3238 = vmatpush1.msra.mxu0 %v3016
    %3239 = vmatprep.subr.mxu0 0.0
    %3240 = vmatpush1.msra.mxu0 %v3017
    %3241 = vmatprep.subr.mxu0 0.0
    %3242 = vmatpush1.msra.mxu0 %v3018
    %3243 = vmatprep.subr.mxu0 0.0
    %3244 = vmatpush1.msra.mxu0 %v3019
    %3245 = vmatprep.subr.mxu0 0.0
    %3246 = vmatpush1.msra.mxu0 %v3020
    %3247 = vmatprep.subr.mxu0 0.0
    %3248 = vmatpush1.msra.mxu0 %v3021
    %3249 = vmatprep.subr.mxu0 0.0
    %3250 = vmatpush1.msra.mxu0 %v3022
    %3251 = vmatprep.subr.mxu0 0.0
    %3252 = vmatpush1.msra.mxu0 %v3023
    %3253 = vmatprep.subr.mxu0 0.0
    %3254 = vmatpush1.msra.mxu0 %v3024
    %3255 = vmatprep.subr.mxu0 0.0
    %3256 = vmatpush1.msra.mxu0 %v3025
    %3257 = vmatprep.mubr.f32.mxu0 %v2904
    %3258 = vmatmul.mubr.f32.gmra.mrb[0].mxu0 %v2903
    %v3259 = vpop.f32.mrb[0].mxu0
    %v3260 = vadd.f32 %v3135, %v3259
    %v3261 = vpop.f32.mrb[0].mxu0
    %3262 = vmatprep.mubr.f32.mxu0 %v2909
    %3263 = vmatmul.mubr.f32.gmra.mrb[0].mxu0 %v2908
    %v3264 = vpop.f32.mrb[0].mxu0
    %v3265 = vadd.f32 %v3140, %v3264
    %v3266 = vpop.f32.mrb[0].mxu0
    %3267 = vmatprep.mubr.f32.mxu0 %v2914
    %3268 = vmatmul.mubr.f32.gmra.mrb[0].mxu0 %v2913
    %v3269 = vpop.f32.mrb[0].mxu0
    %v3270 = vadd.f32 %v3145, %v3269
    %v3271 = vpop.f32.mrb[0].mxu0
    %3272 = vmatprep.mubr.f32.mxu0 %v2919
    %3273 = vmatmul.mubr.f32.gmra.mrb[0].mxu0 %v2918
    %v3274 = vpop.f32.mrb[0].mxu0
    %v3275 = vadd.f32 %v3150, %v3274
    %v3276 = vpop.f32.mrb[0].mxu0
    %3277 = vmatprep.mubr.f32.mxu0 %v2924
    %3278 = vmatmul.mubr.f32.gmra.mrb[0].mxu0 %v2923
    %v3279 = vpop.f32.mrb[0].mxu0
    %v3280 = vadd.f32 %v3155, %v3279
    %v3281 = vpop.f32.mrb[0].mxu0
    %3282 = vmatprep.mubr.f32.mxu0 %v2929
    %3283 = vmatmul.mubr.f32.gmra.mrb[0].mxu0 %v2928
    %v3284 = vpop.f32.mrb[0].mxu0
    %v3285 = vadd.f32 %v3160, %v3284
    %v3286 = vpop.f32.mrb[0].mxu0
    %3287 = vmatprep.mubr.f32.mxu0 %v2934
    %3288 = vmatmul.mubr.f32.gmra.mrb[0].mxu0 %v2933
    %v3289 = vpop.f32.mrb[0].mxu0
    %v3290 = vadd.f32 %v3165, %v3289
    %v3291 = vpop.f32.mrb[0].mxu0
    %3292 = vmatprep.mubr.f32.mxu0 %v2939
    %3293 = vmatmul.mubr.f32.gmra.mrb[0].mxu0 %v2938
    %v3294 = vpop.f32.mrb[0].mxu0
    %v3295 = vadd.f32 %v3170, %v3294
    %v3296 = vpop.f32.mrb[0].mxu0
    %3297 = vmatprep.mubr.f32.mxu0 %v2944
    %3298 = vmatmul.mubr.f32.gmra.mrb[0].mxu0 %v2943
    %v3299 = vpop.f32.mrb[0].mxu0
    %v3300 = vadd.f32 %v3175, %v3299
    %v3301 = vpop.f32.mrb[0].mxu0
    %3302 = vmatprep.mubr.f32.mxu0 %v2949
    %3303 = vmatmul.mubr.f32.gmra.mrb[0].mxu0 %v2948
    %v3304 = vpop.f32.mrb[0].mxu0
    %v3305 = vadd.f32 %v3180, %v3304
    %v3306 = vpop.f32.mrb[0].mxu0
    %3307 = vmatprep.mubr.f32.mxu0 %v2954
    %3308 = vmatmul.mubr.f32.gmra.mrb[0].mxu0 %v2953
    %v3309 = vpop.f32.mrb[0].mxu0
    %v3310 = vadd.f32 %v3185, %v3309
    %v3311 = vpop.f32.mrb[0].mxu0
    %3312 = vmatprep.mubr.f32.mxu0 %v2959
    %3313 = vmatmul.mubr.f32.gmra.mrb[0].mxu0 %v2958
    %v3314 = vpop.f32.mrb[0].mxu0
    %v3315 = vadd.f32 %v3190, %v3314
    %v3316 = vpop.f32.mrb[0].mxu0
    %3317 = vdwg.mxu0
    %3318 = vmatprep.subr.mxu0 0.0
    %3319 = vmatpush1.msra.mxu0 %v3026
    %3320 = vmatprep.subr.mxu0 0.0
    %3321 = vmatpush1.msra.mxu0 %v3027
    %3322 = vmatprep.subr.mxu0 0.0
    %3323 = vmatpush1.msra.mxu0 %v3028
    %3324 = vmatprep.subr.mxu0 0.0
    %3325 = vmatpush1.msra.mxu0 %v3029
    %3326 = vmatprep.subr.mxu0 0.0
    %3327 = vmatpush1.msra.mxu0 %v3030
    %3328 = vmatprep.subr.mxu0 0.0
    %3329 = vmatpush1.msra.mxu0 %v3031
    %3330 = vmatprep.subr.mxu0 0.0
    %3331 = vmatpush1.msra.mxu0 0.0
    %3332 = vmatprep.subr.mxu0 0.0
    %3333 = vmatpush1.msra.mxu0 0.0
    %3334 = vmatprep.subr.mxu0 0.0
    %3335 = vmatpush1.msra.mxu0 0.0
    %3336 = vmatprep.subr.mxu0 0.0
    %3337 = vmatpush1.msra.mxu0 0.0
    %3338 = vmatprep.subr.mxu0 0.0
    %3339 = vmatpush1.msra.mxu0 0.0
    %3340 = vmatprep.subr.mxu0 0.0
    %3341 = vmatpush1.msra.mxu0 0.0
    %3342 = vmatprep.subr.mxu0 0.0
    %3343 = vmatpush1.msra.mxu0 0.0
    %3344 = vmatprep.subr.mxu0 0.0
    %3345 = vmatpush1.msra.mxu0 0.0
    %3346 = vmatprep.subr.mxu0 0.0
    %3347 = vmatpush1.msra.mxu0 0.0
    %3348 = vmatprep.subr.mxu0 0.0
    %3349 = vmatpush1.msra.mxu0 0.0
    %3350 = vmatprep.subr.mxu0 0.0
    %3351 = vmatpush1.msra.mxu0 0.0
    %3352 = vmatprep.subr.mxu0 0.0
    %3353 = vmatpush1.msra.mxu0 0.0
    %3354 = vmatprep.subr.mxu0 0.0
    %3355 = vmatpush1.msra.mxu0 0.0
    %3356 = vmatprep.subr.mxu0 0.0
    %3357 = vmatpush1.msra.mxu0 0.0
    %3358 = vmatprep.subr.mxu0 0.0
    %3359 = vmatpush1.msra.mxu0 0.0
    %3360 = vmatprep.subr.mxu0 0.0
    %3361 = vmatpush1.msra.mxu0 0.0
    %3362 = vmatprep.subr.mxu0 0.0
    %3363 = vmatpush1.msra.mxu0 0.0
    %3364 = vmatprep.subr.mxu0 0.0
    %3365 = vmatpush1.msra.mxu0 0.0
    %3366 = vmatprep.subr.mxu0 0.0
    %3367 = vmatpush1.msra.mxu0 0.0
    %3368 = vmatprep.subr.mxu0 0.0
    %3369 = vmatpush1.msra.mxu0 0.0
    %3370 = vmatprep.subr.mxu0 0.0
    %3371 = vmatpush1.msra.mxu0 0.0
    %3372 = vmatprep.subr.mxu0 0.0
    %3373 = vmatpush1.msra.mxu0 0.0
    %3374 = vmatprep.subr.mxu0 0.0
    %3375 = vmatpush1.msra.mxu0 0.0
    %3376 = vmatprep.subr.mxu0 0.0
    %3377 = vmatpush1.msra.mxu0 0.0
    %3378 = vmatprep.subr.mxu0 0.0
    %3379 = vmatpush1.msra.mxu0 0.0
    %3380 = vmatprep.subr.mxu0 0.0
    %3381 = vmatpush1.msra.mxu0 0.0
    %3382 = vmatprep.mubr.f32.mxu0 0.0
    %3383 = vmatmul.mubr.f32.gmra.mrb[0].mxu0 %v3033
    %v3384 = vpop.f32.mrb[0].mxu0
    %v3385 = vadd.f32 %v3260, %v3384
    %v3386 = vpop.f32.mrb[0].mxu0
    %3387 = vmatprep.mubr.f32.mxu0 0.0
    %3388 = vmatmul.mubr.f32.gmra.mrb[0].mxu0 %v3036
    %v3389 = vpop.f32.mrb[0].mxu0
    %v3390 = vadd.f32 %v3265, %v3389
    %v3391 = vpop.f32.mrb[0].mxu0
    %3392 = vmatprep.mubr.f32.mxu0 0.0
    %3393 = vmatmul.mubr.f32.gmra.mrb[0].mxu0 %v3039
    %v3394 = vpop.f32.mrb[0].mxu0
    %v3395 = vadd.f32 %v3270, %v3394
    %v3396 = vpop.f32.mrb[0].mxu0
    %3397 = vmatprep.mubr.f32.mxu0 0.0
    %3398 = vmatmul.mubr.f32.gmra.mrb[0].mxu0 %v3042
    %v3399 = vpop.f32.mrb[0].mxu0
    %v3400 = vadd.f32 %v3275, %v3399
    %v3401 = vpop.f32.mrb[0].mxu0
    %3402 = vmatprep.mubr.f32.mxu0 0.0
    %3403 = vmatmul.mubr.f32.gmra.mrb[0].mxu0 %v3045
    %v3404 = vpop.f32.mrb[0].mxu0
    %v3405 = vadd.f32 %v3280, %v3404
    %v3406 = vpop.f32.mrb[0].mxu0
    %3407 = vmatprep.mubr.f32.mxu0 0.0
    %3408 = vmatmul.mubr.f32.gmra.mrb[0].mxu0 %v3048
    %v3409 = vpop.f32.mrb[0].mxu0
    %v3410 = vadd.f32 %v3285, %v3409
    %v3411 = vpop.f32.mrb[0].mxu0
    %3412 = vmatprep.mubr.f32.mxu0 0.0
    %3413 = vmatmul.mubr.f32.gmra.mrb[0].mxu0 %v3051
    %v3414 = vpop.f32.mrb[0].mxu0
    %v3415 = vadd.f32 %v3290, %v3414
    %v3416 = vpop.f32.mrb[0].mxu0
    %3417 = vmatprep.mubr.f32.mxu0 0.0
    %3418 = vmatmul.mubr.f32.gmra.mrb[0].mxu0 %v3054
    %v3419 = vpop.f32.mrb[0].mxu0
    %v3420 = vadd.f32 %v3295, %v3419
    %v3421 = vpop.f32.mrb[0].mxu0
    %3422 = vmatprep.mubr.f32.mxu0 0.0
    %3423 = vmatmul.mubr.f32.gmra.mrb[0].mxu0 %v3057
    %v3424 = vpop.f32.mrb[0].mxu0
    %v3425 = vadd.f32 %v3300, %v3424
    %v3426 = vpop.f32.mrb[0].mxu0
    %3427 = vmatprep.mubr.f32.mxu0 0.0
    %3428 = vmatmul.mubr.f32.gmra.mrb[0].mxu0 %v3060
    %v3429 = vpop.f32.mrb[0].mxu0
    %v3430 = vadd.f32 %v3305, %v3429
    %v3431 = vpop.f32.mrb[0].mxu0
    %3432 = vmatprep.mubr.f32.mxu0 0.0
    %3433 = vmatmul.mubr.f32.gmra.mrb[0].mxu0 %v3063
    %v3434 = vpop.f32.mrb[0].mxu0
    %v3435 = vadd.f32 %v3310, %v3434
    %v3436 = vpop.f32.mrb[0].mxu0
    %3437 = vmatprep.mubr.f32.mxu0 0.0
    %3438 = vmatmul.mubr.f32.gmra.mrb[0].mxu0 %v3066
    %v3439 = vpop.f32.mrb[0].mxu0
    %v3440 = vadd.f32 %v3315, %v3439
    %v3441 = vpop.f32.mrb[0].mxu0
    %3442 = vdwg.mxu0
    %v3443 = vadd.f32 %v2843, %v3385
    %v3444 = vadd.f32 %v2848, %v3390
    %v3445 = vadd.f32 %v2853, %v3395
    %v3446 = vadd.f32 %v2858, %v3400
    %v3447 = vadd.f32 %v2863, %v3405
    %v3448 = vadd.f32 %v2868, %v3410
    %v3449 = vadd.f32 %v2873, %v3415
    %v3450 = vadd.f32 %v2878, %v3420
    %v3451 = vadd.f32 %v2883, %v3425
    %v3452 = vadd.f32 %v2888, %v3430
    %v3453 = vadd.f32 %v2893, %v3435
    %v3454 = vadd.f32 %v2898, %v3440
    %v3455 = vld [vmem:[%s4] sm:$0x1]
    %v3457 = vlaneseq
    %v3458 = vshrl.u32 %v3457, 7
    %v3459 = vsub.s32 0, %v3458
    %v3460 = vrot.slane %v3455, %v3459
    %v3462 = vadd.f32 %v3443, %v3460
    %v3463 = vadd.f32 %v3444, %v3460
    %v3464 = vadd.f32 %v3445, %v3460
    %v3465 = vadd.f32 %v3446, %v3460
    %v3466 = vadd.f32 %v3447, %v3460
    %v3467 = vadd.f32 %v3448, %v3460
    %v3468 = vadd.f32 %v3449, %v3460
    %v3469 = vadd.f32 %v3450, %v3460
    %v3470 = vadd.f32 %v3451, %v3460
    %v3471 = vadd.f32 %v3452, %v3460
    %v3472 = vadd.f32 %v3453, %v3460
    %v3473 = vadd.f32 %v3454, %v3460
    %v3474 = vmax.f32 %v3462, 0.0
    %v3475 = vmax.f32 %v3463, 0.0
    %v3476 = vmax.f32 %v3464, 0.0
    %v3477 = vmax.f32 %v3465, 0.0
    %v3478 = vmax.f32 %v3466, 0.0
    %v3479 = vmax.f32 %v3467, 0.0
    %v3480 = vmax.f32 %v3468, 0.0
    %v3481 = vmax.f32 %v3469, 0.0
    %v3482 = vmax.f32 %v3470, 0.0
    %v3483 = vmax.f32 %v3471, 0.0
    %v3484 = vmax.f32 %v3472, 0.0
    %v3485 = vmax.f32 %v3473, 0.0
    %vm3486 = vcmask 982016
    %3487 = vst.msk [vmem:[#allocation3] sm:$0xff] %vm3486, %v3474
    %3488 = vst.msk [vmem:[#allocation3 + $0x8] sm:$0xff] %vm3486, %v3475
    %3489 = vst.msk [vmem:[#allocation3 + $0x10] sm:$0xff] %vm3486, %v3476
    %3490 = vst.msk [vmem:[#allocation3 + $0x18] sm:$0xff] %vm3486, %v3477
    %3491 = vst.msk [vmem:[#allocation3 + $0x20] sm:$0xff] %vm3486, %v3478
    %3492 = vst.msk [vmem:[#allocation3 + $0x28] sm:$0xff] %vm3486, %v3479
    %3493 = vst.msk [vmem:[#allocation3 + $0x30] sm:$0xff] %vm3486, %v3480
    %3494 = vst.msk [vmem:[#allocation3 + $0x38] sm:$0xff] %vm3486, %v3481
    %3495 = vst.msk [vmem:[#allocation3 + $0x40] sm:$0xff] %vm3486, %v3482
    %3496 = vst.msk [vmem:[#allocation3 + $0x48] sm:$0xff] %vm3486, %v3483
    %3497 = vst.msk [vmem:[#allocation3 + $0x50] sm:$0xff] %vm3486, %v3484
    %3498 = vst.msk [vmem:[#allocation3 + $0x58] sm:$0xff] %vm3486, %v3485
    %v3499 = vld [vmem:[#allocation3] sm:$0xff]
    %v3500 = vld [vmem:[#allocation6] sm:$0xff]
    %v3501 = vld [vmem:[#allocation6 + $0x8] sm:$0xff]
    %v3502 = vld [vmem:[#allocation6 + $0x10] sm:$0xff]
    %v3503 = vld [vmem:[#allocation6 + $0x18] sm:$0xff]
    %v3504 = vld [vmem:[#allocation6 + $0x20] sm:$0xff]
    %v3505 = vld [vmem:[#allocation6 + $0x28] sm:$0xff]
    %v3506 = vld [vmem:[#allocation6 + $0x30] sm:$0xff]
    %v3507 = vld [vmem:[#allocation6 + $0x38] sm:$0xff]
    %v3508 = vld [vmem:[#allocation6 + $0x40] sm:$0xff]
    %v3509 = vld [vmem:[#allocation6 + $0x48] sm:$0xff]
    %v3510 = vld [vmem:[#allocation6 + $0x50] sm:$0xff]
    %v3511 = vld [vmem:[#allocation6 + $0x58] sm:$0xff]
    %v3512 = vld [vmem:[#allocation6 + $0x60] sm:$0xff]
    %v3513 = vld [vmem:[#allocation6 + $0x68] sm:$0xff]
    %v3514 = vld [vmem:[#allocation6 + $0x70] sm:$0xff]
    %v3515 = vld [vmem:[#allocation3 + $0x8] sm:$0xff]
    %s3516 = scalar_lea.vmem [#allocation6], 120
    %v3517 = vld [vmem:[%s3516] sm:$0xff]
    %v3518 = vld [vmem:[%s3516 + $0x8] sm:$0xff]
    %v3519 = vld [vmem:[%s3516 + $0x10] sm:$0xff]
    %v3520 = vld [vmem:[%s3516 + $0x18] sm:$0xff]
    %v3521 = vld [vmem:[%s3516 + $0x20] sm:$0xff]
    %v3522 = vld [vmem:[%s3516 + $0x28] sm:$0xff]
    %v3523 = vld [vmem:[%s3516 + $0x30] sm:$0xff]
    %v3524 = vld [vmem:[%s3516 + $0x38] sm:$0xff]
    %v3525 = vld [vmem:[%s3516 + $0x40] sm:$0xff]
    %v3526 = vld [vmem:[%s3516 + $0x48] sm:$0xff]
    %v3527 = vld [vmem:[%s3516 + $0x50] sm:$0xff]
    %v3528 = vld [vmem:[%s3516 + $0x58] sm:$0xff]
    %v3529 = vld [vmem:[%s3516 + $0x60] sm:$0xff]
    %v3530 = vld [vmem:[%s3516 + $0x68] sm:$0xff]
    %v3531 = vld [vmem:[%s3516 + $0x70] sm:$0xff]
    %v3533 = vsel %vm3486, %v3515, 0
    %3535 = vmatprep.subr.mxu0 0.0
    %3536 = vmatpush1.msra.mxu0 %v3517
    %3537 = vmatprep.subr.mxu0 0.0
    %3538 = vmatpush1.msra.mxu0 %v3518
    %3539 = vmatprep.subr.mxu0 0.0
    %3540 = vmatpush1.msra.mxu0 %v3519
    %3541 = vmatprep.subr.mxu0 0.0
    %3542 = vmatpush1.msra.mxu0 %v3520
    %3543 = vmatprep.subr.mxu0 0.0
    %3544 = vmatpush1.msra.mxu0 %v3521
    %3545 = vmatprep.subr.mxu0 0.0
    %3546 = vmatpush1.msra.mxu0 %v3522
    %3547 = vmatprep.subr.mxu0 0.0
    %3548 = vmatpush1.msra.mxu0 %v3523
    %3549 = vmatprep.subr.mxu0 0.0
    %3550 = vmatpush1.msra.mxu0 %v3524
    %3551 = vmatprep.subr.mxu0 0.0
    %3552 = vmatpush1.msra.mxu0 %v3525
    %3553 = vmatprep.subr.mxu0 0.0
    %3554 = vmatpush1.msra.mxu0 %v3526
    %3555 = vmatprep.subr.mxu0 0.0
    %3556 = vmatpush1.msra.mxu0 %v3527
    %3557 = vmatprep.subr.mxu0 0.0
    %3558 = vmatpush1.msra.mxu0 %v3528
    %3559 = vmatprep.subr.mxu0 0.0
    %3560 = vmatpush1.msra.mxu0 %v3529
    %3561 = vmatprep.subr.mxu0 0.0
    %3562 = vmatpush1.msra.mxu0 %v3530
    %3563 = vmatprep.subr.mxu0 0.0
    %3564 = vmatpush1.msra.mxu0 %v3531
    %3565 = vmatprep.subr.mxu0 0.0
    %3566 = vmatpush1.msra.mxu0 0.0
    %3567 = vmatprep.subr.mxu0 0.0
    %3568 = vmatpush1.msra.mxu0 0.0
    %3569 = vmatprep.subr.mxu0 0.0
    %3570 = vmatpush1.msra.mxu0 0.0
    %3571 = vmatprep.subr.mxu0 0.0
    %3572 = vmatpush1.msra.mxu0 0.0
    %3573 = vmatprep.subr.mxu0 0.0
    %3574 = vmatpush1.msra.mxu0 0.0
    %3575 = vmatprep.subr.mxu0 0.0
    %3576 = vmatpush1.msra.mxu0 0.0
    %3577 = vmatprep.subr.mxu0 0.0
    %3578 = vmatpush1.msra.mxu0 0.0
    %3579 = vmatprep.subr.mxu0 0.0
    %3580 = vmatpush1.msra.mxu0 0.0
    %3581 = vmatprep.subr.mxu0 0.0
    %3582 = vmatpush1.msra.mxu0 0.0
    %3583 = vmatprep.subr.mxu0 0.0
    %3584 = vmatpush1.msra.mxu0 0.0
    %3585 = vmatprep.subr.mxu0 0.0
    %3586 = vmatpush1.msra.mxu0 0.0
    %3587 = vmatprep.subr.mxu0 0.0
    %3588 = vmatpush1.msra.mxu0 0.0
    %3589 = vmatprep.subr.mxu0 0.0
    %3590 = vmatpush1.msra.mxu0 0.0
    %3591 = vmatprep.subr.mxu0 0.0
    %3592 = vmatpush1.msra.mxu0 0.0
    %3593 = vmatprep.subr.mxu0 0.0
    %3594 = vmatpush1.msra.mxu0 0.0
    %3595 = vmatprep.subr.mxu0 0.0
    %3596 = vmatpush1.msra.mxu0 0.0
    %3597 = vmatprep.subr.mxu0 0.0
    %3598 = vmatpush1.msra.mxu0 0.0
    %3599 = vmatprep.mubr.f32.mxu0 0.0
    %3600 = vmatmul.mubr.f32.gmra.mrb[0].mxu0 %v3533
    %v3601 = vpop.f32.mrb[0].mxu0
    %v3602 = vadd.f32 0.0, %v3601
    %v3603 = vpop.f32.mrb[0].mxu0
    %3604 = vdwg.mxu0
    %v3606 = vsel %vm3486, %v3499, 0
    %3608 = vmatprep.subr.mxu0 0.0
    %3609 = vmatpush1.msra.mxu0 %v3500
    %3610 = vmatprep.subr.mxu0 0.0
    %3611 = vmatpush1.msra.mxu0 %v3501
    %3612 = vmatprep.subr.mxu0 0.0
    %3613 = vmatpush1.msra.mxu0 %v3502
    %3614 = vmatprep.subr.mxu0 0.0
    %3615 = vmatpush1.msra.mxu0 %v3503
    %3616 = vmatprep.subr.mxu0 0.0
    %3617 = vmatpush1.msra.mxu0 %v3504
    %3618 = vmatprep.subr.mxu0 0.0
    %3619 = vmatpush1.msra.mxu0 %v3505
    %3620 = vmatprep.subr.mxu0 0.0
    %3621 = vmatpush1.msra.mxu0 %v3506
    %3622 = vmatprep.subr.mxu0 0.0
    %3623 = vmatpush1.msra.mxu0 %v3507
    %3624 = vmatprep.subr.mxu0 0.0
    %3625 = vmatpush1.msra.mxu0 %v3508
    %3626 = vmatprep.subr.mxu0 0.0
    %3627 = vmatpush1.msra.mxu0 %v3509
    %3628 = vmatprep.subr.mxu0 0.0
    %3629 = vmatpush1.msra.mxu0 %v3510
    %3630 = vmatprep.subr.mxu0 0.0
    %3631 = vmatpush1.msra.mxu0 %v3511
    %3632 = vmatprep.subr.mxu0 0.0
    %3633 = vmatpush1.msra.mxu0 %v3512
    %3634 = vmatprep.subr.mxu0 0.0
    %3635 = vmatpush1.msra.mxu0 %v3513
    %3636 = vmatprep.subr.mxu0 0.0
    %3637 = vmatpush1.msra.mxu0 %v3514
    %3638 = vmatprep.subr.mxu0 0.0
    %3639 = vmatpush1.msra.mxu0 0.0
    %3640 = vmatprep.subr.mxu0 0.0
    %3641 = vmatpush1.msra.mxu0 0.0
    %3642 = vmatprep.subr.mxu0 0.0
    %3643 = vmatpush1.msra.mxu0 0.0
    %3644 = vmatprep.subr.mxu0 0.0
    %3645 = vmatpush1.msra.mxu0 0.0
    %3646 = vmatprep.subr.mxu0 0.0
    %3647 = vmatpush1.msra.mxu0 0.0
    %3648 = vmatprep.subr.mxu0 0.0
    %3649 = vmatpush1.msra.mxu0 0.0
    %3650 = vmatprep.subr.mxu0 0.0
    %3651 = vmatpush1.msra.mxu0 0.0
    %3652 = vmatprep.subr.mxu0 0.0
    %3653 = vmatpush1.msra.mxu0 0.0
    %3654 = vmatprep.subr.mxu0 0.0
    %3655 = vmatpush1.msra.mxu0 0.0
    %3656 = vmatprep.subr.mxu0 0.0
    %3657 = vmatpush1.msra.mxu0 0.0
    %3658 = vmatprep.subr.mxu0 0.0
    %3659 = vmatpush1.msra.mxu0 0.0
    %3660 = vmatprep.subr.mxu0 0.0
    %3661 = vmatpush1.msra.mxu0 0.0
    %3662 = vmatprep.subr.mxu0 0.0
    %3663 = vmatpush1.msra.mxu0 0.0
    %3664 = vmatprep.subr.mxu0 0.0
    %3665 = vmatpush1.msra.mxu0 0.0
    %3666 = vmatprep.subr.mxu0 0.0
    %3667 = vmatpush1.msra.mxu0 0.0
    %3668 = vmatprep.subr.mxu0 0.0
    %3669 = vmatpush1.msra.mxu0 0.0
    %3670 = vmatprep.subr.mxu0 0.0
    %3671 = vmatpush1.msra.mxu0 0.0
    %3672 = vmatprep.mubr.f32.mxu0 0.0
    %3673 = vmatmul.mubr.f32.gmra.mrb[0].mxu0 %v3606
    %v3674 = vpop.f32.mrb[0].mxu0
    %v3675 = vadd.f32 %v3602, %v3674
    %v3676 = vpop.f32.mrb[0].mxu0
    %3677 = vdwg.mxu0
    %v3678 = vld [vmem:[#allocation3 + $0x10] sm:$0xff]
    %s3679 = scalar_lea.vmem [#allocation6], 240
    %v3680 = vld [vmem:[%s3679] sm:$0xff]
    %v3681 = vld [vmem:[%s3679 + $0x8] sm:$0xff]
    %v3682 = vld [vmem:[%s3679 + $0x10] sm:$0xff]
    %v3683 = vld [vmem:[%s3679 + $0x18] sm:$0xff]
    %v3684 = vld [vmem:[%s3679 + $0x20] sm:$0xff]
    %v3685 = vld [vmem:[%s3679 + $0x28] sm:$0xff]
    %v3686 = vld [vmem:[%s3679 + $0x30] sm:$0xff]
    %v3687 = vld [vmem:[%s3679 + $0x38] sm:$0xff]
    %v3688 = vld [vmem:[%s3679 + $0x40] sm:$0xff]
    %v3689 = vld [vmem:[%s3679 + $0x48] sm:$0xff]
    %v3690 = vld [vmem:[%s3679 + $0x50] sm:$0xff]
    %v3691 = vld [vmem:[%s3679 + $0x58] sm:$0xff]
    %v3692 = vld [vmem:[%s3679 + $0x60] sm:$0xff]
    %v3693 = vld [vmem:[%s3679 + $0x68] sm:$0xff]
    %v3694 = vld [vmem:[%s3679 + $0x70] sm:$0xff]
    %v3696 = vsel %vm3486, %v3678, 0
    %3698 = vmatprep.subr.mxu0 0.0
    %3699 = vmatpush1.msra.mxu0 %v3680
    %3700 = vmatprep.subr.mxu0 0.0
    %3701 = vmatpush1.msra.mxu0 %v3681
    %3702 = vmatprep.subr.mxu0 0.0
    %3703 = vmatpush1.msra.mxu0 %v3682
    %3704 = vmatprep.subr.mxu0 0.0
    %3705 = vmatpush1.msra.mxu0 %v3683
    %3706 = vmatprep.subr.mxu0 0.0
    %3707 = vmatpush1.msra.mxu0 %v3684
    %3708 = vmatprep.subr.mxu0 0.0
    %3709 = vmatpush1.msra.mxu0 %v3685
    %3710 = vmatprep.subr.mxu0 0.0
    %3711 = vmatpush1.msra.mxu0 %v3686
    %3712 = vmatprep.subr.mxu0 0.0
    %3713 = vmatpush1.msra.mxu0 %v3687
    %3714 = vmatprep.subr.mxu0 0.0
    %3715 = vmatpush1.msra.mxu0 %v3688
    %3716 = vmatprep.subr.mxu0 0.0
    %3717 = vmatpush1.msra.mxu0 %v3689
    %3718 = vmatprep.subr.mxu0 0.0
    %3719 = vmatpush1.msra.mxu0 %v3690
    %3720 = vmatprep.subr.mxu0 0.0
    %3721 = vmatpush1.msra.mxu0 %v3691
    %3722 = vmatprep.subr.mxu0 0.0
    %3723 = vmatpush1.msra.mxu0 %v3692
    %3724 = vmatprep.subr.mxu0 0.0
    %3725 = vmatpush1.msra.mxu0 %v3693
    %3726 = vmatprep.subr.mxu0 0.0
    %3727 = vmatpush1.msra.mxu0 %v3694
    %3728 = vmatprep.subr.mxu0 0.0
    %3729 = vmatpush1.msra.mxu0 0.0
    %3730 = vmatprep.subr.mxu0 0.0
    %3731 = vmatpush1.msra.mxu0 0.0
    %3732 = vmatprep.subr.mxu0 0.0
    %3733 = vmatpush1.msra.mxu0 0.0
    %3734 = vmatprep.subr.mxu0 0.0
    %3735 = vmatpush1.msra.mxu0 0.0
    %3736 = vmatprep.subr.mxu0 0.0
    %3737 = vmatpush1.msra.mxu0 0.0
    %3738 = vmatprep.subr.mxu0 0.0
    %3739 = vmatpush1.msra.mxu0 0.0
    %3740 = vmatprep.subr.mxu0 0.0
    %3741 = vmatpush1.msra.mxu0 0.0
    %3742 = vmatprep.subr.mxu0 0.0
    %3743 = vmatpush1.msra.mxu0 0.0
    %3744 = vmatprep.subr.mxu0 0.0
    %3745 = vmatpush1.msra.mxu0 0.0
    %3746 = vmatprep.subr.mxu0 0.0
    %3747 = vmatpush1.msra.mxu0 0.0
    %3748 = vmatprep.subr.mxu0 0.0
    %3749 = vmatpush1.msra.mxu0 0.0
    %3750 = vmatprep.subr.mxu0 0.0
    %3751 = vmatpush1.msra.mxu0 0.0
    %3752 = vmatprep.subr.mxu0 0.0
    %3753 = vmatpush1.msra.mxu0 0.0
    %3754 = vmatprep.subr.mxu0 0.0
    %3755 = vmatpush1.msra.mxu0 0.0
    %3756 = vmatprep.subr.mxu0 0.0
    %3757 = vmatpush1.msra.mxu0 0.0
    %3758 = vmatprep.subr.mxu0 0.0
    %3759 = vmatpush1.msra.mxu0 0.0
    %3760 = vmatprep.subr.mxu0 0.0
    %3761 = vmatpush1.msra.mxu0 0.0
    %3762 = vmatprep.mubr.f32.mxu0 0.0
    %3763 = vmatmul.mubr.f32.gmra.mrb[0].mxu0 %v3696
    %v3764 = vpop.f32.mrb[0].mxu0
    %v3765 = vadd.f32 0.0, %v3764
    %v3766 = vpop.f32.mrb[0].mxu0
    %3767 = vdwg.mxu0
    %v3768 = vadd.f32 %v3675, %v3765
    %v3769 = vld [vmem:[#allocation3 + $0x18] sm:$0xff]
    %s3770 = scalar_lea.vmem [#allocation6], 360
    %v3771 = vld [vmem:[%s3770] sm:$0xff]
    %v3772 = vld [vmem:[%s3770 + $0x8] sm:$0xff]
    %v3773 = vld [vmem:[%s3770 + $0x10] sm:$0xff]
    %v3774 = vld [vmem:[%s3770 + $0x18] sm:$0xff]
    %v3775 = vld [vmem:[%s3770 + $0x20] sm:$0xff]
    %v3776 = vld [vmem:[%s3770 + $0x28] sm:$0xff]
    %v3777 = vld [vmem:[%s3770 + $0x30] sm:$0xff]
    %v3778 = vld [vmem:[%s3770 + $0x38] sm:$0xff]
    %v3779 = vld [vmem:[%s3770 + $0x40] sm:$0xff]
    %v3780 = vld [vmem:[%s3770 + $0x48] sm:$0xff]
    %v3781 = vld [vmem:[%s3770 + $0x50] sm:$0xff]
    %v3782 = vld [vmem:[%s3770 + $0x58] sm:$0xff]
    %v3783 = vld [vmem:[%s3770 + $0x60] sm:$0xff]
    %v3784 = vld [vmem:[%s3770 + $0x68] sm:$0xff]
    %v3785 = vld [vmem:[%s3770 + $0x70] sm:$0xff]
    %v3787 = vsel %vm3486, %v3769, 0
    %3789 = vmatprep.subr.mxu0 0.0
    %3790 = vmatpush1.msra.mxu0 %v3771
    %3791 = vmatprep.subr.mxu0 0.0
    %3792 = vmatpush1.msra.mxu0 %v3772
    %3793 = vmatprep.subr.mxu0 0.0
    %3794 = vmatpush1.msra.mxu0 %v3773
    %3795 = vmatprep.subr.mxu0 0.0
    %3796 = vmatpush1.msra.mxu0 %v3774
    %3797 = vmatprep.subr.mxu0 0.0
    %3798 = vmatpush1.msra.mxu0 %v3775
    %3799 = vmatprep.subr.mxu0 0.0
    %3800 = vmatpush1.msra.mxu0 %v3776
    %3801 = vmatprep.subr.mxu0 0.0
    %3802 = vmatpush1.msra.mxu0 %v3777
    %3803 = vmatprep.subr.mxu0 0.0
    %3804 = vmatpush1.msra.mxu0 %v3778
    %3805 = vmatprep.subr.mxu0 0.0
    %3806 = vmatpush1.msra.mxu0 %v3779
    %3807 = vmatprep.subr.mxu0 0.0
    %3808 = vmatpush1.msra.mxu0 %v3780
    %3809 = vmatprep.subr.mxu0 0.0
    %3810 = vmatpush1.msra.mxu0 %v3781
    %3811 = vmatprep.subr.mxu0 0.0
    %3812 = vmatpush1.msra.mxu0 %v3782
    %3813 = vmatprep.subr.mxu0 0.0
    %3814 = vmatpush1.msra.mxu0 %v3783
    %3815 = vmatprep.subr.mxu0 0.0
    %3816 = vmatpush1.msra.mxu0 %v3784
    %3817 = vmatprep.subr.mxu0 0.0
    %3818 = vmatpush1.msra.mxu0 %v3785
    %3819 = vmatprep.subr.mxu0 0.0
    %3820 = vmatpush1.msra.mxu0 0.0
    %3821 = vmatprep.subr.mxu0 0.0
    %3822 = vmatpush1.msra.mxu0 0.0
    %3823 = vmatprep.subr.mxu0 0.0
    %3824 = vmatpush1.msra.mxu0 0.0
    %3825 = vmatprep.subr.mxu0 0.0
    %3826 = vmatpush1.msra.mxu0 0.0
    %3827 = vmatprep.subr.mxu0 0.0
    %3828 = vmatpush1.msra.mxu0 0.0
    %3829 = vmatprep.subr.mxu0 0.0
    %3830 = vmatpush1.msra.mxu0 0.0
    %3831 = vmatprep.subr.mxu0 0.0
    %3832 = vmatpush1.msra.mxu0 0.0
    %3833 = vmatprep.subr.mxu0 0.0
    %3834 = vmatpush1.msra.mxu0 0.0
    %3835 = vmatprep.subr.mxu0 0.0
    %3836 = vmatpush1.msra.mxu0 0.0
    %3837 = vmatprep.subr.mxu0 0.0
    %3838 = vmatpush1.msra.mxu0 0.0
    %3839 = vmatprep.subr.mxu0 0.0
    %3840 = vmatpush1.msra.mxu0 0.0
    %3841 = vmatprep.subr.mxu0 0.0
    %3842 = vmatpush1.msra.mxu0 0.0
    %3843 = vmatprep.subr.mxu0 0.0
    %3844 = vmatpush1.msra.mxu0 0.0
    %3845 = vmatprep.subr.mxu0 0.0
    %3846 = vmatpush1.msra.mxu0 0.0
    %3847 = vmatprep.subr.mxu0 0.0
    %3848 = vmatpush1.msra.mxu0 0.0
    %3849 = vmatprep.subr.mxu0 0.0
    %3850 = vmatpush1.msra.mxu0 0.0
    %3851 = vmatprep.subr.mxu0 0.0
    %3852 = vmatpush1.msra.mxu0 0.0
    %3853 = vmatprep.mubr.f32.mxu0 0.0
    %3854 = vmatmul.mubr.f32.gmra.mrb[0].mxu0 %v3787
    %v3855 = vpop.f32.mrb[0].mxu0
    %v3856 = vadd.f32 0.0, %v3855
    %v3857 = vpop.f32.mrb[0].mxu0
    %3858 = vdwg.mxu0
    %v3859 = vadd.f32 %v3768, %v3856
    %v3860 = vld [vmem:[#allocation3 + $0x20] sm:$0xff]
    %s3861 = scalar_lea.vmem [#allocation6], 480
    %v3862 = vld [vmem:[%s3861] sm:$0xff]
    %v3863 = vld [vmem:[%s3861 + $0x8] sm:$0xff]
    %v3864 = vld [vmem:[%s3861 + $0x10] sm:$0xff]
    %v3865 = vld [vmem:[%s3861 + $0x18] sm:$0xff]
    %v3866 = vld [vmem:[%s3861 + $0x20] sm:$0xff]
    %v3867 = vld [vmem:[%s3861 + $0x28] sm:$0xff]
    %v3868 = vld [vmem:[%s3861 + $0x30] sm:$0xff]
    %v3869 = vld [vmem:[%s3861 + $0x38] sm:$0xff]
    %v3870 = vld [vmem:[%s3861 + $0x40] sm:$0xff]
    %v3871 = vld [vmem:[%s3861 + $0x48] sm:$0xff]
    %v3872 = vld [vmem:[%s3861 + $0x50] sm:$0xff]
    %v3873 = vld [vmem:[%s3861 + $0x58] sm:$0xff]
    %v3874 = vld [vmem:[%s3861 + $0x60] sm:$0xff]
    %v3875 = vld [vmem:[%s3861 + $0x68] sm:$0xff]
    %v3876 = vld [vmem:[%s3861 + $0x70] sm:$0xff]
    %v3878 = vsel %vm3486, %v3860, 0
    %3880 = vmatprep.subr.mxu0 0.0
    %3881 = vmatpush1.msra.mxu0 %v3862
    %3882 = vmatprep.subr.mxu0 0.0
    %3883 = vmatpush1.msra.mxu0 %v3863
    %3884 = vmatprep.subr.mxu0 0.0
    %3885 = vmatpush1.msra.mxu0 %v3864
    %3886 = vmatprep.subr.mxu0 0.0
    %3887 = vmatpush1.msra.mxu0 %v3865
    %3888 = vmatprep.subr.mxu0 0.0
    %3889 = vmatpush1.msra.mxu0 %v3866
    %3890 = vmatprep.subr.mxu0 0.0
    %3891 = vmatpush1.msra.mxu0 %v3867
    %3892 = vmatprep.subr.mxu0 0.0
    %3893 = vmatpush1.msra.mxu0 %v3868
    %3894 = vmatprep.subr.mxu0 0.0
    %3895 = vmatpush1.msra.mxu0 %v3869
    %3896 = vmatprep.subr.mxu0 0.0
    %3897 = vmatpush1.msra.mxu0 %v3870
    %3898 = vmatprep.subr.mxu0 0.0
    %3899 = vmatpush1.msra.mxu0 %v3871
    %3900 = vmatprep.subr.mxu0 0.0
    %3901 = vmatpush1.msra.mxu0 %v3872
    %3902 = vmatprep.subr.mxu0 0.0
    %3903 = vmatpush1.msra.mxu0 %v3873
    %3904 = vmatprep.subr.mxu0 0.0
    %3905 = vmatpush1.msra.mxu0 %v3874
    %3906 = vmatprep.subr.mxu0 0.0
    %3907 = vmatpush1.msra.mxu0 %v3875
    %3908 = vmatprep.subr.mxu0 0.0
    %3909 = vmatpush1.msra.mxu0 %v3876
    %3910 = vmatprep.subr.mxu0 0.0
    %3911 = vmatpush1.msra.mxu0 0.0
    %3912 = vmatprep.subr.mxu0 0.0
    %3913 = vmatpush1.msra.mxu0 0.0
    %3914 = vmatprep.subr.mxu0 0.0
    %3915 = vmatpush1.msra.mxu0 0.0
    %3916 = vmatprep.subr.mxu0 0.0
    %3917 = vmatpush1.msra.mxu0 0.0
    %3918 = vmatprep.subr.mxu0 0.0
    %3919 = vmatpush1.msra.mxu0 0.0
    %3920 = vmatprep.subr.mxu0 0.0
    %3921 = vmatpush1.msra.mxu0 0.0
    %3922 = vmatprep.subr.mxu0 0.0
    %3923 = vmatpush1.msra.mxu0 0.0
    %3924 = vmatprep.subr.mxu0 0.0
    %3925 = vmatpush1.msra.mxu0 0.0
    %3926 = vmatprep.subr.mxu0 0.0
    %3927 = vmatpush1.msra.mxu0 0.0
    %3928 = vmatprep.subr.mxu0 0.0
    %3929 = vmatpush1.msra.mxu0 0.0
    %3930 = vmatprep.subr.mxu0 0.0
    %3931 = vmatpush1.msra.mxu0 0.0
    %3932 = vmatprep.subr.mxu0 0.0
    %3933 = vmatpush1.msra.mxu0 0.0
    %3934 = vmatprep.subr.mxu0 0.0
    %3935 = vmatpush1.msra.mxu0 0.0
    %3936 = vmatprep.subr.mxu0 0.0
    %3937 = vmatpush1.msra.mxu0 0.0
    %3938 = vmatprep.subr.mxu0 0.0
    %3939 = vmatpush1.msra.mxu0 0.0
    %3940 = vmatprep.subr.mxu0 0.0
    %3941 = vmatpush1.msra.mxu0 0.0
    %3942 = vmatprep.subr.mxu0 0.0
    %3943 = vmatpush1.msra.mxu0 0.0
    %3944 = vmatprep.mubr.f32.mxu0 0.0
    %3945 = vmatmul.mubr.f32.gmra.mrb[0].mxu0 %v3878
    %v3946 = vpop.f32.mrb[0].mxu0
    %v3947 = vadd.f32 0.0, %v3946
    %v3948 = vpop.f32.mrb[0].mxu0
    %3949 = vdwg.mxu0
    %v3950 = vadd.f32 %v3859, %v3947
    %v3951 = vld [vmem:[#allocation3 + $0x28] sm:$0xff]
    %s3952 = scalar_lea.vmem [#allocation6], 600
    %v3953 = vld [vmem:[%s3952] sm:$0xff]
    %v3954 = vld [vmem:[%s3952 + $0x8] sm:$0xff]
    %v3955 = vld [vmem:[%s3952 + $0x10] sm:$0xff]
    %v3956 = vld [vmem:[%s3952 + $0x18] sm:$0xff]
    %v3957 = vld [vmem:[%s3952 + $0x20] sm:$0xff]
    %v3958 = vld [vmem:[%s3952 + $0x28] sm:$0xff]
    %v3959 = vld [vmem:[%s3952 + $0x30] sm:$0xff]
    %v3960 = vld [vmem:[%s3952 + $0x38] sm:$0xff]
    %v3961 = vld [vmem:[%s3952 + $0x40] sm:$0xff]
    %v3962 = vld [vmem:[%s3952 + $0x48] sm:$0xff]
    %v3963 = vld [vmem:[%s3952 + $0x50] sm:$0xff]
    %v3964 = vld [vmem:[%s3952 + $0x58] sm:$0xff]
    %v3965 = vld [vmem:[%s3952 + $0x60] sm:$0xff]
    %v3966 = vld [vmem:[%s3952 + $0x68] sm:$0xff]
    %v3967 = vld [vmem:[%s3952 + $0x70] sm:$0xff]
    %v3969 = vsel %vm3486, %v3951, 0
    %3971 = vmatprep.subr.mxu0 0.0
    %3972 = vmatpush1.msra.mxu0 %v3953
    %3973 = vmatprep.subr.mxu0 0.0
    %3974 = vmatpush1.msra.mxu0 %v3954
    %3975 = vmatprep.subr.mxu0 0.0
    %3976 = vmatpush1.msra.mxu0 %v3955
    %3977 = vmatprep.subr.mxu0 0.0
    %3978 = vmatpush1.msra.mxu0 %v3956
    %3979 = vmatprep.subr.mxu0 0.0
    %3980 = vmatpush1.msra.mxu0 %v3957
    %3981 = vmatprep.subr.mxu0 0.0
    %3982 = vmatpush1.msra.mxu0 %v3958
    %3983 = vmatprep.subr.mxu0 0.0
    %3984 = vmatpush1.msra.mxu0 %v3959
    %3985 = vmatprep.subr.mxu0 0.0
    %3986 = vmatpush1.msra.mxu0 %v3960
    %3987 = vmatprep.subr.mxu0 0.0
    %3988 = vmatpush1.msra.mxu0 %v3961
    %3989 = vmatprep.subr.mxu0 0.0
    %3990 = vmatpush1.msra.mxu0 %v3962
    %3991 = vmatprep.subr.mxu0 0.0
    %3992 = vmatpush1.msra.mxu0 %v3963
    %3993 = vmatprep.subr.mxu0 0.0
    %3994 = vmatpush1.msra.mxu0 %v3964
    %3995 = vmatprep.subr.mxu0 0.0
    %3996 = vmatpush1.msra.mxu0 %v3965
    %3997 = vmatprep.subr.mxu0 0.0
    %3998 = vmatpush1.msra.mxu0 %v3966
    %3999 = vmatprep.subr.mxu0 0.0
    %4000 = vmatpush1.msra.mxu0 %v3967
    %4001 = vmatprep.subr.mxu0 0.0
    %4002 = vmatpush1.msra.mxu0 0.0
    %4003 = vmatprep.subr.mxu0 0.0
    %4004 = vmatpush1.msra.mxu0 0.0
    %4005 = vmatprep.subr.mxu0 0.0
    %4006 = vmatpush1.msra.mxu0 0.0
    %4007 = vmatprep.subr.mxu0 0.0
    %4008 = vmatpush1.msra.mxu0 0.0
    %4009 = vmatprep.subr.mxu0 0.0
    %4010 = vmatpush1.msra.mxu0 0.0
    %4011 = vmatprep.subr.mxu0 0.0
    %4012 = vmatpush1.msra.mxu0 0.0
    %4013 = vmatprep.subr.mxu0 0.0
    %4014 = vmatpush1.msra.mxu0 0.0
    %4015 = vmatprep.subr.mxu0 0.0
    %4016 = vmatpush1.msra.mxu0 0.0
    %4017 = vmatprep.subr.mxu0 0.0
    %4018 = vmatpush1.msra.mxu0 0.0
    %4019 = vmatprep.subr.mxu0 0.0
    %4020 = vmatpush1.msra.mxu0 0.0
    %4021 = vmatprep.subr.mxu0 0.0
    %4022 = vmatpush1.msra.mxu0 0.0
    %4023 = vmatprep.subr.mxu0 0.0
    %4024 = vmatpush1.msra.mxu0 0.0
    %4025 = vmatprep.subr.mxu0 0.0
    %4026 = vmatpush1.msra.mxu0 0.0
    %4027 = vmatprep.subr.mxu0 0.0
    %4028 = vmatpush1.msra.mxu0 0.0
    %4029 = vmatprep.subr.mxu0 0.0
    %4030 = vmatpush1.msra.mxu0 0.0
    %4031 = vmatprep.subr.mxu0 0.0
    %4032 = vmatpush1.msra.mxu0 0.0
    %4033 = vmatprep.subr.mxu0 0.0
    %4034 = vmatpush1.msra.mxu0 0.0
    %4035 = vmatprep.mubr.f32.mxu0 0.0
    %4036 = vmatmul.mubr.f32.gmra.mrb[0].mxu0 %v3969
    %v4037 = vpop.f32.mrb[0].mxu0
    %v4038 = vadd.f32 0.0, %v4037
    %v4039 = vpop.f32.mrb[0].mxu0
    %4040 = vdwg.mxu0
    %v4041 = vadd.f32 %v3950, %v4038
    %v4042 = vld [vmem:[#allocation3 + $0x30] sm:$0xff]
    %s4043 = scalar_lea.vmem [#allocation6], 720
    %v4044 = vld [vmem:[%s4043] sm:$0xff]
    %v4045 = vld [vmem:[%s4043 + $0x8] sm:$0xff]
    %v4046 = vld [vmem:[%s4043 + $0x10] sm:$0xff]
    %v4047 = vld [vmem:[%s4043 + $0x18] sm:$0xff]
    %v4048 = vld [vmem:[%s4043 + $0x20] sm:$0xff]
    %v4049 = vld [vmem:[%s4043 + $0x28] sm:$0xff]
    %v4050 = vld [vmem:[%s4043 + $0x30] sm:$0xff]
    %v4051 = vld [vmem:[%s4043 + $0x38] sm:$0xff]
    %v4052 = vld [vmem:[%s4043 + $0x40] sm:$0xff]
    %v4053 = vld [vmem:[%s4043 + $0x48] sm:$0xff]
    %v4054 = vld [vmem:[%s4043 + $0x50] sm:$0xff]
    %v4055 = vld [vmem:[%s4043 + $0x58] sm:$0xff]
    %v4056 = vld [vmem:[%s4043 + $0x60] sm:$0xff]
    %v4057 = vld [vmem:[%s4043 + $0x68] sm:$0xff]
    %v4058 = vld [vmem:[%s4043 + $0x70] sm:$0xff]
    %v4060 = vsel %vm3486, %v4042, 0
    %4062 = vmatprep.subr.mxu0 0.0
    %4063 = vmatpush1.msra.mxu0 %v4044
    %4064 = vmatprep.subr.mxu0 0.0
    %4065 = vmatpush1.msra.mxu0 %v4045
    %4066 = vmatprep.subr.mxu0 0.0
    %4067 = vmatpush1.msra.mxu0 %v4046
    %4068 = vmatprep.subr.mxu0 0.0
    %4069 = vmatpush1.msra.mxu0 %v4047
    %4070 = vmatprep.subr.mxu0 0.0
    %4071 = vmatpush1.msra.mxu0 %v4048
    %4072 = vmatprep.subr.mxu0 0.0
    %4073 = vmatpush1.msra.mxu0 %v4049
    %4074 = vmatprep.subr.mxu0 0.0
    %4075 = vmatpush1.msra.mxu0 %v4050
    %4076 = vmatprep.subr.mxu0 0.0
    %4077 = vmatpush1.msra.mxu0 %v4051
    %4078 = vmatprep.subr.mxu0 0.0
    %4079 = vmatpush1.msra.mxu0 %v4052
    %4080 = vmatprep.subr.mxu0 0.0
    %4081 = vmatpush1.msra.mxu0 %v4053
    %4082 = vmatprep.subr.mxu0 0.0
    %4083 = vmatpush1.msra.mxu0 %v4054
    %4084 = vmatprep.subr.mxu0 0.0
    %4085 = vmatpush1.msra.mxu0 %v4055
    %4086 = vmatprep.subr.mxu0 0.0
    %4087 = vmatpush1.msra.mxu0 %v4056
    %4088 = vmatprep.subr.mxu0 0.0
    %4089 = vmatpush1.msra.mxu0 %v4057
    %4090 = vmatprep.subr.mxu0 0.0
    %4091 = vmatpush1.msra.mxu0 %v4058
    %4092 = vmatprep.subr.mxu0 0.0
    %4093 = vmatpush1.msra.mxu0 0.0
    %4094 = vmatprep.subr.mxu0 0.0
    %4095 = vmatpush1.msra.mxu0 0.0
    %4096 = vmatprep.subr.mxu0 0.0
    %4097 = vmatpush1.msra.mxu0 0.0
    %4098 = vmatprep.subr.mxu0 0.0
    %4099 = vmatpush1.msra.mxu0 0.0
    %4100 = vmatprep.subr.mxu0 0.0
    %4101 = vmatpush1.msra.mxu0 0.0
    %4102 = vmatprep.subr.mxu0 0.0
    %4103 = vmatpush1.msra.mxu0 0.0
    %4104 = vmatprep.subr.mxu0 0.0
    %4105 = vmatpush1.msra.mxu0 0.0
    %4106 = vmatprep.subr.mxu0 0.0
    %4107 = vmatpush1.msra.mxu0 0.0
    %4108 = vmatprep.subr.mxu0 0.0
    %4109 = vmatpush1.msra.mxu0 0.0
    %4110 = vmatprep.subr.mxu0 0.0
    %4111 = vmatpush1.msra.mxu0 0.0
    %4112 = vmatprep.subr.mxu0 0.0
    %4113 = vmatpush1.msra.mxu0 0.0
    %4114 = vmatprep.subr.mxu0 0.0
    %4115 = vmatpush1.msra.mxu0 0.0
    %4116 = vmatprep.subr.mxu0 0.0
    %4117 = vmatpush1.msra.mxu0 0.0
    %4118 = vmatprep.subr.mxu0 0.0
    %4119 = vmatpush1.msra.mxu0 0.0
    %4120 = vmatprep.subr.mxu0 0.0
    %4121 = vmatpush1.msra.mxu0 0.0
    %4122 = vmatprep.subr.mxu0 0.0
    %4123 = vmatpush1.msra.mxu0 0.0
    %4124 = vmatprep.subr.mxu0 0.0
    %4125 = vmatpush1.msra.mxu0 0.0
    %4126 = vmatprep.mubr.f32.mxu0 0.0
    %4127 = vmatmul.mubr.f32.gmra.mrb[0].mxu0 %v4060
    %v4128 = vpop.f32.mrb[0].mxu0
    %v4129 = vadd.f32 0.0, %v4128
    %v4130 = vpop.f32.mrb[0].mxu0
    %4131 = vdwg.mxu0
    %v4132 = vadd.f32 %v4041, %v4129
    %v4133 = vld [vmem:[#allocation3 + $0x38] sm:$0xff]
    %s4134 = scalar_lea.vmem [#allocation6], 840
    %v4135 = vld [vmem:[%s4134] sm:$0xff]
    %v4136 = vld [vmem:[%s4134 + $0x8] sm:$0xff]
    %v4137 = vld [vmem:[%s4134 + $0x10] sm:$0xff]
    %v4138 = vld [vmem:[%s4134 + $0x18] sm:$0xff]
    %v4139 = vld [vmem:[%s4134 + $0x20] sm:$0xff]
    %v4140 = vld [vmem:[%s4134 + $0x28] sm:$0xff]
    %v4141 = vld [vmem:[%s4134 + $0x30] sm:$0xff]
    %v4142 = vld [vmem:[%s4134 + $0x38] sm:$0xff]
    %v4143 = vld [vmem:[%s4134 + $0x40] sm:$0xff]
    %v4144 = vld [vmem:[%s4134 + $0x48] sm:$0xff]
    %v4145 = vld [vmem:[%s4134 + $0x50] sm:$0xff]
    %v4146 = vld [vmem:[%s4134 + $0x58] sm:$0xff]
    %v4147 = vld [vmem:[%s4134 + $0x60] sm:$0xff]
    %v4148 = vld [vmem:[%s4134 + $0x68] sm:$0xff]
    %v4149 = vld [vmem:[%s4134 + $0x70] sm:$0xff]
    %v4151 = vsel %vm3486, %v4133, 0
    %4153 = vmatprep.subr.mxu0 0.0
    %4154 = vmatpush1.msra.mxu0 %v4135
    %4155 = vmatprep.subr.mxu0 0.0
    %4156 = vmatpush1.msra.mxu0 %v4136
    %4157 = vmatprep.subr.mxu0 0.0
    %4158 = vmatpush1.msra.mxu0 %v4137
    %4159 = vmatprep.subr.mxu0 0.0
    %4160 = vmatpush1.msra.mxu0 %v4138
    %4161 = vmatprep.subr.mxu0 0.0
    %4162 = vmatpush1.msra.mxu0 %v4139
    %4163 = vmatprep.subr.mxu0 0.0
    %4164 = vmatpush1.msra.mxu0 %v4140
    %4165 = vmatprep.subr.mxu0 0.0
    %4166 = vmatpush1.msra.mxu0 %v4141
    %4167 = vmatprep.subr.mxu0 0.0
    %4168 = vmatpush1.msra.mxu0 %v4142
    %4169 = vmatprep.subr.mxu0 0.0
    %4170 = vmatpush1.msra.mxu0 %v4143
    %4171 = vmatprep.subr.mxu0 0.0
    %4172 = vmatpush1.msra.mxu0 %v4144
    %4173 = vmatprep.subr.mxu0 0.0
    %4174 = vmatpush1.msra.mxu0 %v4145
    %4175 = vmatprep.subr.mxu0 0.0
    %4176 = vmatpush1.msra.mxu0 %v4146
    %4177 = vmatprep.subr.mxu0 0.0
    %4178 = vmatpush1.msra.mxu0 %v4147
    %4179 = vmatprep.subr.mxu0 0.0
    %4180 = vmatpush1.msra.mxu0 %v4148
    %4181 = vmatprep.subr.mxu0 0.0
    %4182 = vmatpush1.msra.mxu0 %v4149
    %4183 = vmatprep.subr.mxu0 0.0
    %4184 = vmatpush1.msra.mxu0 0.0
    %4185 = vmatprep.subr.mxu0 0.0
    %4186 = vmatpush1.msra.mxu0 0.0
    %4187 = vmatprep.subr.mxu0 0.0
    %4188 = vmatpush1.msra.mxu0 0.0
    %4189 = vmatprep.subr.mxu0 0.0
    %4190 = vmatpush1.msra.mxu0 0.0
    %4191 = vmatprep.subr.mxu0 0.0
    %4192 = vmatpush1.msra.mxu0 0.0
    %4193 = vmatprep.subr.mxu0 0.0
    %4194 = vmatpush1.msra.mxu0 0.0
    %4195 = vmatprep.subr.mxu0 0.0
    %4196 = vmatpush1.msra.mxu0 0.0
    %4197 = vmatprep.subr.mxu0 0.0
    %4198 = vmatpush1.msra.mxu0 0.0
    %4199 = vmatprep.subr.mxu0 0.0
    %4200 = vmatpush1.msra.mxu0 0.0
    %4201 = vmatprep.subr.mxu0 0.0
    %4202 = vmatpush1.msra.mxu0 0.0
    %4203 = vmatprep.subr.mxu0 0.0
    %4204 = vmatpush1.msra.mxu0 0.0
    %4205 = vmatprep.subr.mxu0 0.0
    %4206 = vmatpush1.msra.mxu0 0.0
    %4207 = vmatprep.subr.mxu0 0.0
    %4208 = vmatpush1.msra.mxu0 0.0
    %4209 = vmatprep.subr.mxu0 0.0
    %4210 = vmatpush1.msra.mxu0 0.0
    %4211 = vmatprep.subr.mxu0 0.0
    %4212 = vmatpush1.msra.mxu0 0.0
    %4213 = vmatprep.subr.mxu0 0.0
    %4214 = vmatpush1.msra.mxu0 0.0
    %4215 = vmatprep.subr.mxu0 0.0
    %4216 = vmatpush1.msra.mxu0 0.0
    %4217 = vmatprep.mubr.f32.mxu0 0.0
    %4218 = vmatmul.mubr.f32.gmra.mrb[0].mxu0 %v4151
    %v4219 = vpop.f32.mrb[0].mxu0
    %v4220 = vadd.f32 0.0, %v4219
    %v4221 = vpop.f32.mrb[0].mxu0
    %4222 = vdwg.mxu0
    %v4223 = vadd.f32 %v4132, %v4220
    %v4224 = vld [vmem:[#allocation3 + $0x40] sm:$0xff]
    %s4225 = scalar_lea.vmem [#allocation6], 960
    %v4226 = vld [vmem:[%s4225] sm:$0xff]
    %v4227 = vld [vmem:[%s4225 + $0x8] sm:$0xff]
    %v4228 = vld [vmem:[%s4225 + $0x10] sm:$0xff]
    %v4229 = vld [vmem:[%s4225 + $0x18] sm:$0xff]
    %v4230 = vld [vmem:[%s4225 + $0x20] sm:$0xff]
    %v4231 = vld [vmem:[%s4225 + $0x28] sm:$0xff]
    %v4232 = vld [vmem:[%s4225 + $0x30] sm:$0xff]
    %v4233 = vld [vmem:[%s4225 + $0x38] sm:$0xff]
    %v4234 = vld [vmem:[%s4225 + $0x40] sm:$0xff]
    %v4235 = vld [vmem:[%s4225 + $0x48] sm:$0xff]
    %v4236 = vld [vmem:[%s4225 + $0x50] sm:$0xff]
    %v4237 = vld [vmem:[%s4225 + $0x58] sm:$0xff]
    %v4238 = vld [vmem:[%s4225 + $0x60] sm:$0xff]
    %v4239 = vld [vmem:[%s4225 + $0x68] sm:$0xff]
    %v4240 = vld [vmem:[%s4225 + $0x70] sm:$0xff]
    %v4242 = vsel %vm3486, %v4224, 0
    %4244 = vmatprep.subr.mxu0 0.0
    %4245 = vmatpush1.msra.mxu0 %v4226
    %4246 = vmatprep.subr.mxu0 0.0
    %4247 = vmatpush1.msra.mxu0 %v4227
    %4248 = vmatprep.subr.mxu0 0.0
    %4249 = vmatpush1.msra.mxu0 %v4228
    %4250 = vmatprep.subr.mxu0 0.0
    %4251 = vmatpush1.msra.mxu0 %v4229
    %4252 = vmatprep.subr.mxu0 0.0
    %4253 = vmatpush1.msra.mxu0 %v4230
    %4254 = vmatprep.subr.mxu0 0.0
    %4255 = vmatpush1.msra.mxu0 %v4231
    %4256 = vmatprep.subr.mxu0 0.0
    %4257 = vmatpush1.msra.mxu0 %v4232
    %4258 = vmatprep.subr.mxu0 0.0
    %4259 = vmatpush1.msra.mxu0 %v4233
    %4260 = vmatprep.subr.mxu0 0.0
    %4261 = vmatpush1.msra.mxu0 %v4234
    %4262 = vmatprep.subr.mxu0 0.0
    %4263 = vmatpush1.msra.mxu0 %v4235
    %4264 = vmatprep.subr.mxu0 0.0
    %4265 = vmatpush1.msra.mxu0 %v4236
    %4266 = vmatprep.subr.mxu0 0.0
    %4267 = vmatpush1.msra.mxu0 %v4237
    %4268 = vmatprep.subr.mxu0 0.0
    %4269 = vmatpush1.msra.mxu0 %v4238
    %4270 = vmatprep.subr.mxu0 0.0
    %4271 = vmatpush1.msra.mxu0 %v4239
    %4272 = vmatprep.subr.mxu0 0.0
    %4273 = vmatpush1.msra.mxu0 %v4240
    %4274 = vmatprep.subr.mxu0 0.0
    %4275 = vmatpush1.msra.mxu0 0.0
    %4276 = vmatprep.subr.mxu0 0.0
    %4277 = vmatpush1.msra.mxu0 0.0
    %4278 = vmatprep.subr.mxu0 0.0
    %4279 = vmatpush1.msra.mxu0 0.0
    %4280 = vmatprep.subr.mxu0 0.0
    %4281 = vmatpush1.msra.mxu0 0.0
    %4282 = vmatprep.subr.mxu0 0.0
    %4283 = vmatpush1.msra.mxu0 0.0
    %4284 = vmatprep.subr.mxu0 0.0
    %4285 = vmatpush1.msra.mxu0 0.0
    %4286 = vmatprep.subr.mxu0 0.0
    %4287 = vmatpush1.msra.mxu0 0.0
    %4288 = vmatprep.subr.mxu0 0.0
    %4289 = vmatpush1.msra.mxu0 0.0
    %4290 = vmatprep.subr.mxu0 0.0
    %4291 = vmatpush1.msra.mxu0 0.0
    %4292 = vmatprep.subr.mxu0 0.0
    %4293 = vmatpush1.msra.mxu0 0.0
    %4294 = vmatprep.subr.mxu0 0.0
    %4295 = vmatpush1.msra.mxu0 0.0
    %4296 = vmatprep.subr.mxu0 0.0
    %4297 = vmatpush1.msra.mxu0 0.0
    %4298 = vmatprep.subr.mxu0 0.0
    %4299 = vmatpush1.msra.mxu0 0.0
    %4300 = vmatprep.subr.mxu0 0.0
    %4301 = vmatpush1.msra.mxu0 0.0
    %4302 = vmatprep.subr.mxu0 0.0
    %4303 = vmatpush1.msra.mxu0 0.0
    %4304 = vmatprep.subr.mxu0 0.0
    %4305 = vmatpush1.msra.mxu0 0.0
    %4306 = vmatprep.subr.mxu0 0.0
    %4307 = vmatpush1.msra.mxu0 0.0
    %4308 = vmatprep.mubr.f32.mxu0 0.0
    %4309 = vmatmul.mubr.f32.gmra.mrb[0].mxu0 %v4242
    %v4310 = vpop.f32.mrb[0].mxu0
    %v4311 = vadd.f32 0.0, %v4310
    %v4312 = vpop.f32.mrb[0].mxu0
    %4313 = vdwg.mxu0
    %v4314 = vadd.f32 %v4223, %v4311
    %v4315 = vld [vmem:[#allocation3 + $0x48] sm:$0xff]
    %s4316 = scalar_lea.vmem [#allocation6], 1080
    %v4317 = vld [vmem:[%s4316] sm:$0xff]
    %v4318 = vld [vmem:[%s4316 + $0x8] sm:$0xff]
    %v4319 = vld [vmem:[%s4316 + $0x10] sm:$0xff]
    %v4320 = vld [vmem:[%s4316 + $0x18] sm:$0xff]
    %v4321 = vld [vmem:[%s4316 + $0x20] sm:$0xff]
    %v4322 = vld [vmem:[%s4316 + $0x28] sm:$0xff]
    %v4323 = vld [vmem:[%s4316 + $0x30] sm:$0xff]
    %v4324 = vld [vmem:[%s4316 + $0x38] sm:$0xff]
    %v4325 = vld [vmem:[%s4316 + $0x40] sm:$0xff]
    %v4326 = vld [vmem:[%s4316 + $0x48] sm:$0xff]
    %v4327 = vld [vmem:[%s4316 + $0x50] sm:$0xff]
    %v4328 = vld [vmem:[%s4316 + $0x58] sm:$0xff]
    %v4329 = vld [vmem:[%s4316 + $0x60] sm:$0xff]
    %v4330 = vld [vmem:[%s4316 + $0x68] sm:$0xff]
    %v4331 = vld [vmem:[%s4316 + $0x70] sm:$0xff]
    %v4333 = vsel %vm3486, %v4315, 0
    %4335 = vmatprep.subr.mxu0 0.0
    %4336 = vmatpush1.msra.mxu0 %v4317
    %4337 = vmatprep.subr.mxu0 0.0
    %4338 = vmatpush1.msra.mxu0 %v4318
    %4339 = vmatprep.subr.mxu0 0.0
    %4340 = vmatpush1.msra.mxu0 %v4319
    %4341 = vmatprep.subr.mxu0 0.0
    %4342 = vmatpush1.msra.mxu0 %v4320
    %4343 = vmatprep.subr.mxu0 0.0
    %4344 = vmatpush1.msra.mxu0 %v4321
    %4345 = vmatprep.subr.mxu0 0.0
    %4346 = vmatpush1.msra.mxu0 %v4322
    %4347 = vmatprep.subr.mxu0 0.0
    %4348 = vmatpush1.msra.mxu0 %v4323
    %4349 = vmatprep.subr.mxu0 0.0
    %4350 = vmatpush1.msra.mxu0 %v4324
    %4351 = vmatprep.subr.mxu0 0.0
    %4352 = vmatpush1.msra.mxu0 %v4325
    %4353 = vmatprep.subr.mxu0 0.0
    %4354 = vmatpush1.msra.mxu0 %v4326
    %4355 = vmatprep.subr.mxu0 0.0
    %4356 = vmatpush1.msra.mxu0 %v4327
    %4357 = vmatprep.subr.mxu0 0.0
    %4358 = vmatpush1.msra.mxu0 %v4328
    %4359 = vmatprep.subr.mxu0 0.0
    %4360 = vmatpush1.msra.mxu0 %v4329
    %4361 = vmatprep.subr.mxu0 0.0
    %4362 = vmatpush1.msra.mxu0 %v4330
    %4363 = vmatprep.subr.mxu0 0.0
    %4364 = vmatpush1.msra.mxu0 %v4331
    %4365 = vmatprep.subr.mxu0 0.0
    %4366 = vmatpush1.msra.mxu0 0.0
    %4367 = vmatprep.subr.mxu0 0.0
    %4368 = vmatpush1.msra.mxu0 0.0
    %4369 = vmatprep.subr.mxu0 0.0
    %4370 = vmatpush1.msra.mxu0 0.0
    %4371 = vmatprep.subr.mxu0 0.0
    %4372 = vmatpush1.msra.mxu0 0.0
    %4373 = vmatprep.subr.mxu0 0.0
    %4374 = vmatpush1.msra.mxu0 0.0
    %4375 = vmatprep.subr.mxu0 0.0
    %4376 = vmatpush1.msra.mxu0 0.0
    %4377 = vmatprep.subr.mxu0 0.0
    %4378 = vmatpush1.msra.mxu0 0.0
    %4379 = vmatprep.subr.mxu0 0.0
    %4380 = vmatpush1.msra.mxu0 0.0
    %4381 = vmatprep.subr.mxu0 0.0
    %4382 = vmatpush1.msra.mxu0 0.0
    %4383 = vmatprep.subr.mxu0 0.0
    %4384 = vmatpush1.msra.mxu0 0.0
    %4385 = vmatprep.subr.mxu0 0.0
    %4386 = vmatpush1.msra.mxu0 0.0
    %4387 = vmatprep.subr.mxu0 0.0
    %4388 = vmatpush1.msra.mxu0 0.0
    %4389 = vmatprep.subr.mxu0 0.0
    %4390 = vmatpush1.msra.mxu0 0.0
    %4391 = vmatprep.subr.mxu0 0.0
    %4392 = vmatpush1.msra.mxu0 0.0
    %4393 = vmatprep.subr.mxu0 0.0
    %4394 = vmatpush1.msra.mxu0 0.0
    %4395 = vmatprep.subr.mxu0 0.0
    %4396 = vmatpush1.msra.mxu0 0.0
    %4397 = vmatprep.subr.mxu0 0.0
    %4398 = vmatpush1.msra.mxu0 0.0
    %4399 = vmatprep.mubr.f32.mxu0 0.0
    %4400 = vmatmul.mubr.f32.gmra.mrb[0].mxu0 %v4333
    %v4401 = vpop.f32.mrb[0].mxu0
    %v4402 = vadd.f32 0.0, %v4401
    %v4403 = vpop.f32.mrb[0].mxu0
    %4404 = vdwg.mxu0
    %v4405 = vadd.f32 %v4314, %v4402
    %v4406 = vld [vmem:[#allocation3 + $0x50] sm:$0xff]
    %s4407 = scalar_lea.vmem [#allocation6], 1200
    %v4408 = vld [vmem:[%s4407] sm:$0xff]
    %v4409 = vld [vmem:[%s4407 + $0x8] sm:$0xff]
    %v4410 = vld [vmem:[%s4407 + $0x10] sm:$0xff]
    %v4411 = vld [vmem:[%s4407 + $0x18] sm:$0xff]
    %v4412 = vld [vmem:[%s4407 + $0x20] sm:$0xff]
    %v4413 = vld [vmem:[%s4407 + $0x28] sm:$0xff]
    %v4414 = vld [vmem:[%s4407 + $0x30] sm:$0xff]
    %v4415 = vld [vmem:[%s4407 + $0x38] sm:$0xff]
    %v4416 = vld [vmem:[%s4407 + $0x40] sm:$0xff]
    %v4417 = vld [vmem:[%s4407 + $0x48] sm:$0xff]
    %v4418 = vld [vmem:[%s4407 + $0x50] sm:$0xff]
    %v4419 = vld [vmem:[%s4407 + $0x58] sm:$0xff]
    %v4420 = vld [vmem:[%s4407 + $0x60] sm:$0xff]
    %v4421 = vld [vmem:[%s4407 + $0x68] sm:$0xff]
    %v4422 = vld [vmem:[%s4407 + $0x70] sm:$0xff]
    %v4424 = vsel %vm3486, %v4406, 0
    %4426 = vmatprep.subr.mxu0 0.0
    %4427 = vmatpush1.msra.mxu0 %v4408
    %4428 = vmatprep.subr.mxu0 0.0
    %4429 = vmatpush1.msra.mxu0 %v4409
    %4430 = vmatprep.subr.mxu0 0.0
    %4431 = vmatpush1.msra.mxu0 %v4410
    %4432 = vmatprep.subr.mxu0 0.0
    %4433 = vmatpush1.msra.mxu0 %v4411
    %4434 = vmatprep.subr.mxu0 0.0
    %4435 = vmatpush1.msra.mxu0 %v4412
    %4436 = vmatprep.subr.mxu0 0.0
    %4437 = vmatpush1.msra.mxu0 %v4413
    %4438 = vmatprep.subr.mxu0 0.0
    %4439 = vmatpush1.msra.mxu0 %v4414
    %4440 = vmatprep.subr.mxu0 0.0
    %4441 = vmatpush1.msra.mxu0 %v4415
    %4442 = vmatprep.subr.mxu0 0.0
    %4443 = vmatpush1.msra.mxu0 %v4416
    %4444 = vmatprep.subr.mxu0 0.0
    %4445 = vmatpush1.msra.mxu0 %v4417
    %4446 = vmatprep.subr.mxu0 0.0
    %4447 = vmatpush1.msra.mxu0 %v4418
    %4448 = vmatprep.subr.mxu0 0.0
    %4449 = vmatpush1.msra.mxu0 %v4419
    %4450 = vmatprep.subr.mxu0 0.0
    %4451 = vmatpush1.msra.mxu0 %v4420
    %4452 = vmatprep.subr.mxu0 0.0
    %4453 = vmatpush1.msra.mxu0 %v4421
    %4454 = vmatprep.subr.mxu0 0.0
    %4455 = vmatpush1.msra.mxu0 %v4422
    %4456 = vmatprep.subr.mxu0 0.0
    %4457 = vmatpush1.msra.mxu0 0.0
    %4458 = vmatprep.subr.mxu0 0.0
    %4459 = vmatpush1.msra.mxu0 0.0
    %4460 = vmatprep.subr.mxu0 0.0
    %4461 = vmatpush1.msra.mxu0 0.0
    %4462 = vmatprep.subr.mxu0 0.0
    %4463 = vmatpush1.msra.mxu0 0.0
    %4464 = vmatprep.subr.mxu0 0.0
    %4465 = vmatpush1.msra.mxu0 0.0
    %4466 = vmatprep.subr.mxu0 0.0
    %4467 = vmatpush1.msra.mxu0 0.0
    %4468 = vmatprep.subr.mxu0 0.0
    %4469 = vmatpush1.msra.mxu0 0.0
    %4470 = vmatprep.subr.mxu0 0.0
    %4471 = vmatpush1.msra.mxu0 0.0
    %4472 = vmatprep.subr.mxu0 0.0
    %4473 = vmatpush1.msra.mxu0 0.0
    %4474 = vmatprep.subr.mxu0 0.0
    %4475 = vmatpush1.msra.mxu0 0.0
    %4476 = vmatprep.subr.mxu0 0.0
    %4477 = vmatpush1.msra.mxu0 0.0
    %4478 = vmatprep.subr.mxu0 0.0
    %4479 = vmatpush1.msra.mxu0 0.0
    %4480 = vmatprep.subr.mxu0 0.0
    %4481 = vmatpush1.msra.mxu0 0.0
    %4482 = vmatprep.subr.mxu0 0.0
    %4483 = vmatpush1.msra.mxu0 0.0
    %4484 = vmatprep.subr.mxu0 0.0
    %4485 = vmatpush1.msra.mxu0 0.0
    %4486 = vmatprep.subr.mxu0 0.0
    %4487 = vmatpush1.msra.mxu0 0.0
    %4488 = vmatprep.subr.mxu0 0.0
    %4489 = vmatpush1.msra.mxu0 0.0
    %4490 = vmatprep.mubr.f32.mxu0 0.0
    %4491 = vmatmul.mubr.f32.gmra.mrb[0].mxu0 %v4424
    %v4492 = vpop.f32.mrb[0].mxu0
    %v4493 = vadd.f32 0.0, %v4492
    %v4494 = vpop.f32.mrb[0].mxu0
    %4495 = vdwg.mxu0
    %v4496 = vadd.f32 %v4405, %v4493
    %v4497 = vld [vmem:[#allocation3 + $0x58] sm:$0xff]
    %s4498 = scalar_lea.vmem [#allocation6], 1320
    %v4499 = vld [vmem:[%s4498] sm:$0xff]
    %v4500 = vld [vmem:[%s4498 + $0x8] sm:$0xff]
    %v4501 = vld [vmem:[%s4498 + $0x10] sm:$0xff]
    %v4502 = vld [vmem:[%s4498 + $0x18] sm:$0xff]
    %v4503 = vld [vmem:[%s4498 + $0x20] sm:$0xff]
    %v4504 = vld [vmem:[%s4498 + $0x28] sm:$0xff]
    %v4505 = vld [vmem:[%s4498 + $0x30] sm:$0xff]
    %v4506 = vld [vmem:[%s4498 + $0x38] sm:$0xff]
    %v4507 = vld [vmem:[%s4498 + $0x40] sm:$0xff]
    %v4508 = vld [vmem:[%s4498 + $0x48] sm:$0xff]
    %v4509 = vld [vmem:[%s4498 + $0x50] sm:$0xff]
    %v4510 = vld [vmem:[%s4498 + $0x58] sm:$0xff]
    %v4511 = vld [vmem:[%s4498 + $0x60] sm:$0xff]
    %v4512 = vld [vmem:[%s4498 + $0x68] sm:$0xff]
    %v4513 = vld [vmem:[%s4498 + $0x70] sm:$0xff]
    %v4515 = vsel %vm3486, %v4497, 0
    %4517 = vmatprep.subr.mxu0 0.0
    %4518 = vmatpush1.msra.mxu0 %v4499
    %4519 = vmatprep.subr.mxu0 0.0
    %4520 = vmatpush1.msra.mxu0 %v4500
    %4521 = vmatprep.subr.mxu0 0.0
    %4522 = vmatpush1.msra.mxu0 %v4501
    %4523 = vmatprep.subr.mxu0 0.0
    %4524 = vmatpush1.msra.mxu0 %v4502
    %4525 = vmatprep.subr.mxu0 0.0
    %4526 = vmatpush1.msra.mxu0 %v4503
    %4527 = vmatprep.subr.mxu0 0.0
    %4528 = vmatpush1.msra.mxu0 %v4504
    %4529 = vmatprep.subr.mxu0 0.0
    %4530 = vmatpush1.msra.mxu0 %v4505
    %4531 = vmatprep.subr.mxu0 0.0
    %4532 = vmatpush1.msra.mxu0 %v4506
    %4533 = vmatprep.subr.mxu0 0.0
    %4534 = vmatpush1.msra.mxu0 %v4507
    %4535 = vmatprep.subr.mxu0 0.0
    %4536 = vmatpush1.msra.mxu0 %v4508
    %4537 = vmatprep.subr.mxu0 0.0
    %4538 = vmatpush1.msra.mxu0 %v4509
    %4539 = vmatprep.subr.mxu0 0.0
    %4540 = vmatpush1.msra.mxu0 %v4510
    %4541 = vmatprep.subr.mxu0 0.0
    %4542 = vmatpush1.msra.mxu0 %v4511
    %4543 = vmatprep.subr.mxu0 0.0
    %4544 = vmatpush1.msra.mxu0 %v4512
    %4545 = vmatprep.subr.mxu0 0.0
    %4546 = vmatpush1.msra.mxu0 %v4513
    %4547 = vmatprep.subr.mxu0 0.0
    %4548 = vmatpush1.msra.mxu0 0.0
    %4549 = vmatprep.subr.mxu0 0.0
    %4550 = vmatpush1.msra.mxu0 0.0
    %4551 = vmatprep.subr.mxu0 0.0
    %4552 = vmatpush1.msra.mxu0 0.0
    %4553 = vmatprep.subr.mxu0 0.0
    %4554 = vmatpush1.msra.mxu0 0.0
    %4555 = vmatprep.subr.mxu0 0.0
    %4556 = vmatpush1.msra.mxu0 0.0
    %4557 = vmatprep.subr.mxu0 0.0
    %4558 = vmatpush1.msra.mxu0 0.0
    %4559 = vmatprep.subr.mxu0 0.0
    %4560 = vmatpush1.msra.mxu0 0.0
    %4561 = vmatprep.subr.mxu0 0.0
    %4562 = vmatpush1.msra.mxu0 0.0
    %4563 = vmatprep.subr.mxu0 0.0
    %4564 = vmatpush1.msra.mxu0 0.0
    %4565 = vmatprep.subr.mxu0 0.0
    %4566 = vmatpush1.msra.mxu0 0.0
    %4567 = vmatprep.subr.mxu0 0.0
    %4568 = vmatpush1.msra.mxu0 0.0
    %4569 = vmatprep.subr.mxu0 0.0
    %4570 = vmatpush1.msra.mxu0 0.0
    %4571 = vmatprep.subr.mxu0 0.0
    %4572 = vmatpush1.msra.mxu0 0.0
    %4573 = vmatprep.subr.mxu0 0.0
    %4574 = vmatpush1.msra.mxu0 0.0
    %4575 = vmatprep.subr.mxu0 0.0
    %4576 = vmatpush1.msra.mxu0 0.0
    %4577 = vmatprep.subr.mxu0 0.0
    %4578 = vmatpush1.msra.mxu0 0.0
    %4579 = vmatprep.subr.mxu0 0.0
    %4580 = vmatpush1.msra.mxu0 0.0
    %4581 = vmatprep.mubr.f32.mxu0 0.0
    %4582 = vmatmul.mubr.f32.gmra.mrb[0].mxu0 %v4515
    %v4583 = vpop.f32.mrb[0].mxu0
    %v4584 = vadd.f32 0.0, %v4583
    %v4585 = vpop.f32.mrb[0].mxu0
    %4586 = vdwg.mxu0
    %v4587 = vadd.f32 %v4496, %v4584
    %v4588 = vld [vmem:[%s6] sm:$0x1]
    %v4590 = vlaneseq
    %v4591 = vshrl.u32 %v4590, 7
    %v4592 = vsub.s32 0, %v4591
    %v4593 = vrot.slane %v4588, %v4592
    %v4595 = vadd.f32 %v4587, %v4593
    %v4596 = vmax.f32 %v4595, 0.0
    %v4597 = vld [vmem:[%s7] sm:$0xff]
    %v4598 = vld [vmem:[%s7 + $0x8] sm:$0xff]
    %v4599 = vld [vmem:[%s7 + $0x10] sm:$0xff]
    %v4600 = vld [vmem:[%s7 + $0x18] sm:$0xff]
    %v4601 = vld [vmem:[%s7 + $0x20] sm:$0xff]
    %v4602 = vld [vmem:[%s7 + $0x28] sm:$0xff]
    %v4603 = vld [vmem:[%s7 + $0x30] sm:$0xff]
    %v4604 = vld [vmem:[%s7 + $0x38] sm:$0xff]
    %v4605 = vld [vmem:[%s7 + $0x40] sm:$0xff]
    %v4606 = vld [vmem:[%s7 + $0x48] sm:$0xff]
    %v4607 = vld [vmem:[%s7 + $0x50] sm:$0xff]
    %v4608 = vld [vmem:[%s7 + $0x58] sm:$0xff]
    %v4609 = vld [vmem:[%s7 + $0x60] sm:$0xff]
    %v4610 = vld [vmem:[%s7 + $0x68] sm:$0xff]
    %v4611 = vld [vmem:[%s7 + $0x70] sm:$0xff]
    %v4612 = vld [vmem:[%s7 + $0x78] sm:$0xff]
    %v4613 = vld [vmem:[%s8] sm:$0x1]
    %v4615 = vlaneseq
    %v4616 = vshrl.u32 %v4615, 7
    %v4617 = vsub.s32 0, %v4616
    %v4618 = vrot.slane %v4613, %v4617
    %4620 = vmatprep.subr.mxu0 0.0
    %4621 = vmatpush1.msra.mxu0 %v4597
    %4622 = vmatprep.subr.mxu0 0.0
    %4623 = vmatpush1.msra.mxu0 %v4598
    %4624 = vmatprep.subr.mxu0 0.0
    %4625 = vmatpush1.msra.mxu0 %v4599
    %4626 = vmatprep.subr.mxu0 0.0
    %4627 = vmatpush1.msra.mxu0 %v4600
    %4628 = vmatprep.subr.mxu0 0.0
    %4629 = vmatpush1.msra.mxu0 %v4601
    %4630 = vmatprep.subr.mxu0 0.0
    %4631 = vmatpush1.msra.mxu0 %v4602
    %4632 = vmatprep.subr.mxu0 0.0
    %4633 = vmatpush1.msra.mxu0 %v4603
    %4634 = vmatprep.subr.mxu0 0.0
    %4635 = vmatpush1.msra.mxu0 %v4604
    %4636 = vmatprep.subr.mxu0 0.0
    %4637 = vmatpush1.msra.mxu0 %v4605
    %4638 = vmatprep.subr.mxu0 0.0
    %4639 = vmatpush1.msra.mxu0 %v4606
    %4640 = vmatprep.subr.mxu0 0.0
    %4641 = vmatpush1.msra.mxu0 %v4607
    %4642 = vmatprep.subr.mxu0 0.0
    %4643 = vmatpush1.msra.mxu0 %v4608
    %4644 = vmatprep.subr.mxu0 0.0
    %4645 = vmatpush1.msra.mxu0 %v4609
    %4646 = vmatprep.subr.mxu0 0.0
    %4647 = vmatpush1.msra.mxu0 %v4610
    %4648 = vmatprep.subr.mxu0 0.0
    %4649 = vmatpush1.msra.mxu0 %v4611
    %4650 = vmatprep.subr.mxu0 0.0
    %4651 = vmatpush1.msra.mxu0 %v4612
    %4652 = vmatprep.subr.mxu0 0.0
    %4653 = vmatpush1.msra.mxu0 0.0
    %4654 = vmatprep.subr.mxu0 0.0
    %4655 = vmatpush1.msra.mxu0 0.0
    %4656 = vmatprep.subr.mxu0 0.0
    %4657 = vmatpush1.msra.mxu0 0.0
    %4658 = vmatprep.subr.mxu0 0.0
    %4659 = vmatpush1.msra.mxu0 0.0
    %4660 = vmatprep.subr.mxu0 0.0
    %4661 = vmatpush1.msra.mxu0 0.0
    %4662 = vmatprep.subr.mxu0 0.0
    %4663 = vmatpush1.msra.mxu0 0.0
    %4664 = vmatprep.subr.mxu0 0.0
    %4665 = vmatpush1.msra.mxu0 0.0
    %4666 = vmatprep.subr.mxu0 0.0
    %4667 = vmatpush1.msra.mxu0 0.0
    %4668 = vmatprep.subr.mxu0 0.0
    %4669 = vmatpush1.msra.mxu0 0.0
    %4670 = vmatprep.subr.mxu0 0.0
    %4671 = vmatpush1.msra.mxu0 0.0
    %4672 = vmatprep.subr.mxu0 0.0
    %4673 = vmatpush1.msra.mxu0 0.0
    %4674 = vmatprep.subr.mxu0 0.0
    %4675 = vmatpush1.msra.mxu0 0.0
    %4676 = vmatprep.subr.mxu0 0.0
    %4677 = vmatpush1.msra.mxu0 0.0
    %4678 = vmatprep.subr.mxu0 0.0
    %4679 = vmatpush1.msra.mxu0 0.0
    %4680 = vmatprep.subr.mxu0 0.0
    %4681 = vmatpush1.msra.mxu0 0.0
    %4682 = vmatprep.subr.mxu0 0.0
    %4683 = vmatpush1.msra.mxu0 0.0
    %4684 = vmatprep.mubr.f32.mxu0 0.0
    %4685 = vmatmul.mubr.f32.gmra.mrb[0].mxu0 %v4596
    %v4686 = vpop.f32.mrb[0].mxu0
    %v4687 = vadd.f32 %v4618, %v4686
    %v4688 = vpop.f32.mrb[0].mxu0
    %4689 = vdwg.mxu0
    %v4690 = vmax.f32 %v4687, 0.0
    %vm4691 = vcmask 162816
    %4692 = vst.msk [vmem:[%s9] sm:$0xff] %vm4691, %v4690
    // Predicated region
    $region46: #{conv_encoder_forward.1} parent=1 // pred_check
      _
    $region47: #{conv_encoder_forward.1} parent=1 // pred_check_branch
      %4694 = sbr.rel (0) target = $region49
    $region48: #{conv_encoder_forward.1} parent=1 // pred_region
      _
    $region49: #{conv_encoder_forward.1} parent=1 // pred_fallthru
      _
    // Predicated region
    $region50: #{conv_encoder_forward.1} parent=1 // pred_check
      _
    $region51: #{conv_encoder_forward.1} parent=1 // pred_check_branch
      %4696 = sbr.rel (0) target = $region53
    $region52: #{conv_encoder_forward.1} parent=1 // pred_region
      _
    $region53: #{conv_encoder_forward.1} parent=1 // pred_fallthru
      _
    %4697 = vsyncpa [#allocation5], 1
    %4698 = vsyncpa [#allocation7], 1

</llo_original>
